<compile_context>
chip_gen: v7x
topology: tpu7x:2x2x1
jax: 0.10.0
libtpu: 0.0.40
codegen_flags: <defaults>
</compile_context>

<pallas_src>
import functools
import math

import numpy as np
import jax
import jax.numpy as jnp
from jax.experimental import pallas as pl
from jax.experimental.pallas import tpu as pltpu


# ----------------------------------------------------------------------------
# Config (small shapes consistent with the module)
# ----------------------------------------------------------------------------
FULL_IMSIZE = 16
INNER_IMSIZE = 8
N_LABELS = 4
NC_BASE = 16
NC_MAX = 512
SMALLEST_IMSIZE = 8
PRED_FROM_SEG_ONLY = False


def nearest_lower_power_of_2(x):
    return 2 ** int(math.floor(math.log2(x)))


def log2_diff(a, b):
    return int(round(math.log2(a) - math.log2(b)))


MODEL_IMSIZE = nearest_lower_power_of_2(FULL_IMSIZE)                 # 16
N_DOWN_UP = log2_diff(MODEL_IMSIZE, SMALLEST_IMSIZE)                 # 1
NC = [min(NC_MAX, NC_BASE * 2 ** i) for i in range(N_DOWN_UP + 1)]   # [16, 32]
NC_IN = N_LABELS if PRED_FROM_SEG_ONLY else N_LABELS + 3             # 7
CIN_PAD = 8                                                          # 7 -> 8 (sublane-friendly K)

FULL = MODEL_IMSIZE        # 16
HALF = SMALLEST_IMSIZE     # 8


# ----------------------------------------------------------------------------
# get_masks (same semantics as the PyTorch helper)
# ----------------------------------------------------------------------------
def get_masks(full_imsize, inner_imsize):
    half_delta = (full_imsize - inner_imsize) // 2
    idx = jnp.arange(full_imsize)
    in_range = (idx >= half_delta) & (idx < half_delta + inner_imsize)
    inner_mask = (in_range[:, None] & in_range[None, :]).astype(jnp.float32)
    outer_mask = 1.0 - inner_mask
    return inner_mask, outer_mask


# ----------------------------------------------------------------------------
# Weight preparation: fold column padding / stride / nearest-x2 upsample into
# column-Toeplitz matrices so the in-kernel conv is just 3 row-tap matmuls.
# ----------------------------------------------------------------------------
def _toeplitz_weights(w, w_src, w_out, stride, up):
    """w: (3, 3, cin, cout).  Returns (3, w_src*cin, w_out*cout):
    T[dy][(xi*cin+ci), (xo*cout+co)] = sum_dx w[dy,dx,ci,co]
    over taps dx whose (possibly x`up`-upsampled) input column
    x = stride*xo + dx - 1 is in range, with xi = x // up (nearest upsample)."""
    kh, kw, cin, cout = w.shape
    sel = np.zeros((w_src, kw, w_out), np.float32)
    for xo in range(w_out):
        for dx in range(kw):
            x = stride * xo + dx - 1                     # pad = 1
            if 0 <= x < w_src * up:
                sel[x // up, dx, xo] += 1.0
    t = jnp.einsum("xdo,ydck->yxcok", jnp.asarray(sel), w)
    return t.reshape(kh, w_src * cin, w_out * cout)


def prepare_net_consts(params, pred_from_seg_only=PRED_FROM_SEG_ONLY):
    bf16 = jnp.bfloat16
    cin = N_LABELS if pred_from_seg_only else N_LABELS + 3
    w0 = jnp.pad(params["enc0_w"], ((0, 0), (0, 0), (0, CIN_PAD - cin), (0, 0)))

    # even-output-row selector for the stride-2 conv (vertical stride)
    sev = np.zeros((HALF, FULL), np.float32)
    for yo in range(HALF):
        sev[yo, 2 * yo] = 1.0
    # row duplication (+ zero row padding) matrix for the nearest-x2 upsample
    rpad = np.zeros((FULL + 2, HALF), np.float32)
    for yy in range(1, FULL + 1):
        rpad[yy, (yy - 1) // 2] = 1.0

    return {
        "T0": _toeplitz_weights(w0, FULL, FULL, 1, 1).astype(bf16),                 # (3,128,256)
        "T1": _toeplitz_weights(params["enc1a_w"], FULL, HALF, 2, 1).astype(bf16),  # (3,256,256)
        "T2": _toeplitz_weights(params["enc1b_w"], HALF, HALF, 1, 1).astype(bf16),  # (3,256,256)
        "T3": _toeplitz_weights(params["dec1_w"], HALF, FULL, 1, 2).astype(bf16),   # (3,256,256)
        "T4": jnp.kron(jnp.eye(FULL, dtype=jnp.float32),
                       params["dec0_w"][0, 0]).astype(bf16),                        # (256,64)
        "b0": jnp.tile(params["enc0_b"], FULL)[None, :],     # (1,256)
        "b1": jnp.tile(params["enc1a_b"], HALF)[None, :],    # (1,256)
        "b2": jnp.tile(params["enc1b_b"], HALF)[None, :],    # (1,256)
        "b3": jnp.tile(params["dec1_b"], FULL)[None, :],     # (1,256)
        "b4": jnp.tile(params["dec0_b"], FULL)[None, :],     # (1,64)
        "sev": jnp.asarray(sev),                             # (8,16)   f32
        "rpad": jnp.asarray(rpad).astype(bf16),              # (18,8)   bf16
    }


# ----------------------------------------------------------------------------
# Fused Pallas kernel: whole network + combine, one batch element per grid step
# ----------------------------------------------------------------------------
def _fused_seg_kernel(x_ref, seg_ref, mask_ref,
                      w0_ref, b0_ref, w1_ref, b1_ref, sev_ref,
                      w2_ref, b2_ref, rpad_ref, w3_ref, b3_ref,
                      w4_ref, b4_ref,
                      o_ref,
                      pe0, pe1, pup):
    f32 = jnp.float32
    bf16 = jnp.bfloat16

    H = x_ref.shape[0] - 2          # 16 (full spatial)
    Hh = sev_ref.shape[0]           # 8  (after stride 2)

    def mish(v):
        # mish(x) = x * tanh(softplus(x));  tanh(softplus(x)) = 1 - 2/((1+e^x)^2 + 1)
        # -> one EUP exp + one approx reciprocal (clamp keeps exp finite; for
        #    v > 30 the exact factor is 1.0 within f32 anyway).
        e = jnp.exp(jnp.minimum(v, 30.0))
        t = 1.0 - 2.0 * pl.reciprocal((1.0 + e) * (1.0 + e) + 1.0, approx=True)
        return v * t

    zrow0 = jnp.zeros((1, pe0.shape[1]), f32)
    zrow1 = jnp.zeros((1, pe1.shape[1]), f32)

    # --- enc0: 3x3 conv (8 -> 16), stride 1, pad 1, mish ----------------------
    acc = jnp.zeros((H, w0_ref.shape[2]), f32)
    for dy in range(3):
        acc = acc + jnp.dot(x_ref[dy:dy + H, :].astype(bf16), w0_ref[dy],
                            preferred_element_type=f32)
    e0 = mish(acc + b0_ref[...])                       # (16, 256)
    pe0[0:1, :] = zrow0
    pe0[H + 1:H + 2, :] = zrow0
    pe0[1:H + 1, :] = e0

    # --- enc1a: 3x3 conv (16 -> 32), stride 2, pad 1, mish --------------------
    acc = jnp.zeros((H, w1_ref.shape[2]), f32)
    for dy in range(3):
        acc = acc + jnp.dot(pe0[dy:dy + H, :].astype(bf16), w1_ref[dy],
                            preferred_element_type=f32)
    # vertical stride 2: keep even "virtual" output rows via a tiny selector matmul
    e1a = mish(jnp.dot(sev_ref[...], acc, preferred_element_type=f32) + b1_ref[...])
    pe1[0:1, :] = zrow1
    pe1[Hh + 1:Hh + 2, :] = zrow1
    pe1[1:Hh + 1, :] = e1a                             # (8, 256)

    # --- enc1b: 3x3 conv (32 -> 32), stride 1, pad 1, mish --------------------
    acc = jnp.zeros((Hh, w2_ref.shape[2]), f32)
    for dy in range(3):
        acc = acc + jnp.dot(pe1[dy:dy + Hh, :].astype(bf16), w2_ref[dy],
                            preferred_element_type=f32)
    e1b = mish(acc + b2_ref[...])                      # (8, 256)

    # --- dec1: nearest x2 upsample + 3x3 conv (32 -> 16), pad 1, mish ---------
    # rows: duplicate + zero-pad via rpad matmul; columns: upsample + pad folded
    # into the Toeplitz weights w3.
    pup[...] = jnp.dot(rpad_ref[...], e1b.astype(bf16), preferred_element_type=f32)
    acc = jnp.zeros((H, w3_ref.shape[2]), f32)
    for dy in range(3):
        acc = acc + jnp.dot(pup[dy:dy + H, :].astype(bf16), w3_ref[dy],
                            preferred_element_type=f32)
    d1 = mish(acc + b3_ref[...])                       # (16, 256)

    # --- dec0: 1x1 conv (16 -> 4), no activation ------------------------------
    net = jnp.dot(d1.astype(bf16), w4_ref[...], preferred_element_type=f32) + b4_ref[...]

    # --- inner/outer combine (fp32 path, so the inner region is exact) --------
    im = mask_ref[...]
    o_ref[...] = seg_ref[...] * im + net * (1.0 - im)


# ----------------------------------------------------------------------------
# Forward (wrapper: input prep as one XLA fusion, single pallas_call)
# ----------------------------------------------------------------------------
def _const_spec(a):
    nd = a.ndim
    return pl.BlockSpec(a.shape, lambda b, _nd=nd: (0,) * _nd)


def _batched_spec(a):
    inner = a.shape[1:]
    nd = len(inner)
    return pl.BlockSpec((None,) + inner, lambda b, _nd=nd: (b,) + (0,) * _nd)


def outer_seg_predictor_forward(consts, masks, full_seg, full_img_nchw,
                                pred_from_seg_only=PRED_FROM_SEG_ONLY):
    inner_mask, _ = masks
    B = full_seg.shape[0]
    seg_oh = jax.nn.one_hot(full_seg, N_LABELS, dtype=jnp.float32)       # (B,16,16,4)

    if pred_from_seg_only:
        net_in = seg_oh
    else:
        img = jnp.transpose(full_img_nchw, (0, 2, 3, 1))                 # NCHW -> NHWC
        net_in = jnp.concatenate([seg_oh, img], axis=-1)                 # (B,16,16,7)

    # TODO(synk): resize(x, MODEL_IMSIZE) is a no-op here (FULL_IMSIZE is a power
    #             of two); the repo's `resize` op for non-pow2 sizes is not reproduced.
    cin = net_in.shape[-1]
    net_in = jnp.pad(net_in, ((0, 0), (0, 0), (0, 0), (0, CIN_PAD - cin)))
    net_in = net_in * inner_mask[None, :, :, None]                       # inner-mask the input
    x = net_in.reshape(B, FULL, FULL * CIN_PAD)                          # lane-dense (H, W*C)
    x = jnp.pad(x, ((0, 0), (1, 1), (0, 0)))                             # zero row padding (18,128)

    seg_flat = seg_oh.reshape(B, FULL, FULL * N_LABELS)                  # (B,16,64)
    mask_e = jnp.repeat(inner_mask[:, :, None], N_LABELS, axis=-1)
    mask_e = mask_e.reshape(FULL, FULL * N_LABELS)                       # (16,64)

    weight_args = (consts["T0"], consts["b0"], consts["T1"], consts["b1"],
                   consts["sev"], consts["T2"], consts["b2"], consts["rpad"],
                   consts["T3"], consts["b3"], consts["T4"], consts["b4"])

    grid_spec = pltpu.PrefetchScalarGridSpec(
        num_scalar_prefetch=0,
        grid=(B,),
        in_specs=[_batched_spec(x), _batched_spec(seg_flat), _const_spec(mask_e)]
                 + [_const_spec(a) for a in weight_args],
        out_specs=pl.BlockSpec((None, FULL, FULL * N_LABELS), lambda b: (b, 0, 0)),
        scratch_shapes=[
            pltpu.VMEM((FULL + 2, FULL * NC[0]), jnp.float32),   # padded enc0 activation (18,256)
            pltpu.VMEM((HALF + 2, HALF * NC[1]), jnp.float32),   # padded enc1a activation (10,256)
            pltpu.VMEM((FULL + 2, HALF * NC[1]), jnp.float32),   # row-dup padded upsample (18,256)
        ],
    )

    out = pl.pallas_call(
        _fused_seg_kernel,
        out_shape=jax.ShapeDtypeStruct((B, FULL, FULL * N_LABELS), jnp.float32),
        grid_spec=grid_spec,
        compiler_params=pltpu.CompilerParams(dimension_semantics=("parallel",)),
    )(x, seg_flat, mask_e, *weight_args)

    out = out.reshape(B, FULL, FULL, N_LABELS)
    return jnp.transpose(out, (0, 3, 1, 2))                              # back to NCHW


# ----------------------------------------------------------------------------
# Deterministic parameter init (PyTorch-layout conv weights: kh,kw,cin,cout)
# ----------------------------------------------------------------------------
def init_params(key):
    ks = jax.random.split(key, 5)

    def cw(k, kh, kw, ci, co):
        return jax.random.normal(k, (kh, kw, ci, co), jnp.float32) / math.sqrt(kh * kw * ci)

    return {
        "enc0_w": cw(ks[0], 3, 3, NC_IN, NC[0]),    "enc0_b": jnp.zeros((NC[0],), jnp.float32),
        "enc1a_w": cw(ks[1], 3, 3, NC[0], NC[1]),   "enc1a_b": jnp.zeros((NC[1],), jnp.float32),
        "enc1b_w": cw(ks[2], 3, 3, NC[1], NC[1]),   "enc1b_b": jnp.zeros((NC[1],), jnp.float32),
        "dec1_w": cw(ks[3], 3, 3, NC[1], NC[0]),    "dec1_b": jnp.zeros((NC[0],), jnp.float32),
        "dec0_w": cw(ks[4], 1, 1, NC[0], N_LABELS), "dec0_b": jnp.zeros((N_LABELS,), jnp.float32),
    }


# ----------------------------------------------------------------------------
# Main
# ----------------------------------------------------------------------------
if __name__ == "__main__":
    B = 2
    key = jax.random.PRNGKey(0)
    k_seg, k_img, k_par = jax.random.split(key, 3)

    full_seg = jax.random.randint(k_seg, (B, FULL_IMSIZE, FULL_IMSIZE), 0, N_LABELS, dtype=jnp.int32)
    full_img = jax.random.normal(k_img, (B, 3, FULL_IMSIZE, FULL_IMSIZE), jnp.float32)
    params = init_params(k_par)
    masks = get_masks(FULL_IMSIZE, INNER_IMSIZE)
    consts = prepare_net_consts(params)

    fwd = jax.jit(functools.partial(outer_seg_predictor_forward, consts, masks))
    out = jax.block_until_ready(fwd(full_seg, full_img))

    assert out.shape == (B, N_LABELS, FULL_IMSIZE, FULL_IMSIZE), out.shape
    assert bool(jnp.all(jnp.isfinite(out)))

    # Semantic check: inside the inner region the output must equal the one-hot seg
    # (inner_mask == 1, outer_mask == 0 there) — this goes through the fp32 path.
    hd = (FULL_IMSIZE - INNER_IMSIZE) // 2
    seg_oh_nchw = jnp.transpose(jax.nn.one_hot(full_seg, N_LABELS, dtype=jnp.float32), (0, 3, 1, 2))
    inner_out = out[:, :, hd:hd + INNER_IMSIZE, hd:hd + INNER_IMSIZE]
    inner_ref = seg_oh_nchw[:, :, hd:hd + INNER_IMSIZE, hd:hd + INNER_IMSIZE]
    assert bool(jnp.allclose(inner_out, inner_ref, atol=1e-6))

    print("KERNEL_OK")
</pallas_src>

<mosaic_0001>
module attributes {stable_mosaic.version = 11 : i64} {
  func.func @_fused_seg_kernel(%arg0: i32, %arg1: memref<1x18x128xf32, #tpu.memory_space<vmem>>, %arg2: memref<1x16x64xf32, #tpu.memory_space<vmem>>, %arg3: memref<16x64xf32, #tpu.memory_space<vmem>>, %arg4: memref<3x128x256xbf16, #tpu.memory_space<vmem>>, %arg5: memref<1x256xf32, #tpu.memory_space<vmem>>, %arg6: memref<3x256x256xbf16, #tpu.memory_space<vmem>>, %arg7: memref<1x256xf32, #tpu.memory_space<vmem>>, %arg8: memref<8x16xf32, #tpu.memory_space<vmem>>, %arg9: memref<3x256x256xbf16, #tpu.memory_space<vmem>>, %arg10: memref<1x256xf32, #tpu.memory_space<vmem>>, %arg11: memref<18x8xbf16, #tpu.memory_space<vmem>>, %arg12: memref<3x256x256xbf16, #tpu.memory_space<vmem>>, %arg13: memref<1x256xf32, #tpu.memory_space<vmem>>, %arg14: memref<256x64xbf16, #tpu.memory_space<vmem>>, %arg15: memref<1x64xf32, #tpu.memory_space<vmem>>, %arg16: memref<1x16x64xf32, #tpu.memory_space<vmem>>, %arg17: memref<18x256xf32, #tpu.memory_space<vmem>>, %arg18: memref<10x256xf32, #tpu.memory_space<vmem>>, %arg19: memref<18x256xf32, #tpu.memory_space<vmem>>) attributes {dimension_semantics = [#tpu.dimension_semantics<parallel>], iteration_bounds = array<i64: 2>, scalar_prefetch = 0 : i64, scratch_operands = 3 : i64, tpu.core_type = #tpu.core_type<tc>, window_params = [{transform_indices = @transform_0, window_bounds = array<i64: 1, 18, 128>}, {transform_indices = @transform_1, window_bounds = array<i64: 1, 16, 64>}, {pipeline_mode = #tpu.pipeline_mode<synchronous>, transform_indices = @transform_2, window_bounds = array<i64: 16, 64>}, {pipeline_mode = #tpu.pipeline_mode<synchronous>, transform_indices = @transform_3, window_bounds = array<i64: 3, 128, 256>}, {pipeline_mode = #tpu.pipeline_mode<synchronous>, transform_indices = @transform_4, window_bounds = array<i64: 1, 256>}, {pipeline_mode = #tpu.pipeline_mode<synchronous>, transform_indices = @transform_5, window_bounds = array<i64: 3, 256, 256>}, {pipeline_mode = #tpu.pipeline_mode<synchronous>, transform_indices = @transform_6, window_bounds = array<i64: 1, 256>}, {pipeline_mode = #tpu.pipeline_mode<synchronous>, transform_indices = @transform_7, window_bounds = array<i64: 8, 16>}, {pipeline_mode = #tpu.pipeline_mode<synchronous>, transform_indices = @transform_8, window_bounds = array<i64: 3, 256, 256>}, {pipeline_mode = #tpu.pipeline_mode<synchronous>, transform_indices = @transform_9, window_bounds = array<i64: 1, 256>}, {pipeline_mode = #tpu.pipeline_mode<synchronous>, transform_indices = @transform_10, window_bounds = array<i64: 18, 8>}, {pipeline_mode = #tpu.pipeline_mode<synchronous>, transform_indices = @transform_11, window_bounds = array<i64: 3, 256, 256>}, {pipeline_mode = #tpu.pipeline_mode<synchronous>, transform_indices = @transform_12, window_bounds = array<i64: 1, 256>}, {pipeline_mode = #tpu.pipeline_mode<synchronous>, transform_indices = @transform_13, window_bounds = array<i64: 256, 64>}, {pipeline_mode = #tpu.pipeline_mode<synchronous>, transform_indices = @transform_14, window_bounds = array<i64: 1, 64>}, {transform_indices = @transform_15, window_bounds = array<i64: 1, 16, 64>}]} {
    %cst = arith.constant 0.000000e+00 : f32
    %0 = vector.broadcast %cst : f32 to vector<1x256xf32>
    %cst_0 = arith.constant 0.000000e+00 : f32
    %1 = vector.broadcast %cst_0 : f32 to vector<1x256xf32>
    %cst_1 = arith.constant 0.000000e+00 : f32
    %2 = vector.broadcast %cst_1 : f32 to vector<16x256xf32>
    %c0 = arith.constant 0 : index
    %c0_2 = arith.constant 0 : index
    %c0_3 = arith.constant 0 : index
    %3 = vector.load %arg1[%c0, %c0_2, %c0_3] : memref<1x18x128xf32, #tpu.memory_space<vmem>>, vector<1x16x128xf32>
    %4 = vector.shape_cast %3 : vector<1x16x128xf32> to vector<16x128xf32>
    %5 = arith.truncf %4 : vector<16x128xf32> to vector<16x128xbf16>
    %c0_4 = arith.constant 0 : index
    %c0_5 = arith.constant 0 : index
    %c0_6 = arith.constant 0 : index
    %6 = vector.load %arg4[%c0_4, %c0_5, %c0_6] : memref<3x128x256xbf16, #tpu.memory_space<vmem>>, vector<1x128x256xbf16>
    %7 = vector.shape_cast %6 : vector<1x128x256xbf16> to vector<128x256xbf16>
    %cst_7 = arith.constant dense<0.000000e+00> : vector<16x256xf32>
    %8 = tpu.matmul %5, %7, %cst_7 {dimension_numbers = #tpu.dot_dimension_numbers<[1], [0], [0], [1], [0, 0, 1, 1], [], []>} : vector<16x128xbf16>, vector<128x256xbf16>, vector<16x256xf32> -> vector<16x256xf32>
    %9 = arith.addf %2, %8 : vector<16x256xf32>
    %c0_8 = arith.constant 0 : index
    %c1 = arith.constant 1 : index
    %c0_9 = arith.constant 0 : index
    %10 = vector.load %arg1[%c0_8, %c1, %c0_9] : memref<1x18x128xf32, #tpu.memory_space<vmem>>, vector<1x16x128xf32>
    %11 = vector.shape_cast %10 : vector<1x16x128xf32> to vector<16x128xf32>
    %12 = arith.truncf %11 : vector<16x128xf32> to vector<16x128xbf16>
    %c1_10 = arith.constant 1 : index
    %c0_11 = arith.constant 0 : index
    %c0_12 = arith.constant 0 : index
    %13 = vector.load %arg4[%c1_10, %c0_11, %c0_12] : memref<3x128x256xbf16, #tpu.memory_space<vmem>>, vector<1x128x256xbf16>
    %14 = vector.shape_cast %13 : vector<1x128x256xbf16> to vector<128x256xbf16>
    %cst_13 = arith.constant dense<0.000000e+00> : vector<16x256xf32>
    %15 = tpu.matmul %12, %14, %cst_13 {dimension_numbers = #tpu.dot_dimension_numbers<[1], [0], [0], [1], [0, 0, 1, 1], [], []>} : vector<16x128xbf16>, vector<128x256xbf16>, vector<16x256xf32> -> vector<16x256xf32>
    %16 = arith.addf %9, %15 : vector<16x256xf32>
    %c0_14 = arith.constant 0 : index
    %c2 = arith.constant 2 : index
    %c0_15 = arith.constant 0 : index
    %17 = vector.load %arg1[%c0_14, %c2, %c0_15] : memref<1x18x128xf32, #tpu.memory_space<vmem>>, vector<1x16x128xf32>
    %18 = vector.shape_cast %17 : vector<1x16x128xf32> to vector<16x128xf32>
    %19 = arith.truncf %18 : vector<16x128xf32> to vector<16x128xbf16>
    %c2_16 = arith.constant 2 : index
    %c0_17 = arith.constant 0 : index
    %c0_18 = arith.constant 0 : index
    %20 = vector.load %arg4[%c2_16, %c0_17, %c0_18] : memref<3x128x256xbf16, #tpu.memory_space<vmem>>, vector<1x128x256xbf16>
    %21 = vector.shape_cast %20 : vector<1x128x256xbf16> to vector<128x256xbf16>
    %cst_19 = arith.constant dense<0.000000e+00> : vector<16x256xf32>
    %22 = tpu.matmul %19, %21, %cst_19 {dimension_numbers = #tpu.dot_dimension_numbers<[1], [0], [0], [1], [0, 0, 1, 1], [], []>} : vector<16x128xbf16>, vector<128x256xbf16>, vector<16x256xf32> -> vector<16x256xf32>
    %23 = arith.addf %16, %22 : vector<16x256xf32>
    %c0_20 = arith.constant 0 : index
    %c0_21 = arith.constant 0 : index
    %24 = vector.load %arg5[%c0_20, %c0_21] : memref<1x256xf32, #tpu.memory_space<vmem>>, vector<1x256xf32>
    %25 = vector.broadcast %24 : vector<1x256xf32> to vector<16x256xf32>
    %26 = arith.addf %23, %25 : vector<16x256xf32>
    %cst_22 = arith.constant 3.000000e+01 : f32
    %27 = vector.broadcast %cst_22 : f32 to vector<16x256xf32>
    %28 = arith.minimumf %26, %27 : vector<16x256xf32>
    %29 = math.exp %28 : vector<16x256xf32>
    %cst_23 = arith.constant 1.000000e+00 : f32
    %30 = vector.broadcast %cst_23 : f32 to vector<16x256xf32>
    %31 = arith.addf %30, %29 : vector<16x256xf32>
    %cst_24 = arith.constant 1.000000e+00 : f32
    %32 = vector.broadcast %cst_24 : f32 to vector<16x256xf32>
    %33 = arith.addf %32, %29 : vector<16x256xf32>
    %34 = arith.mulf %31, %33 : vector<16x256xf32>
    %cst_25 = arith.constant 1.000000e+00 : f32
    %35 = vector.broadcast %cst_25 : f32 to vector<16x256xf32>
    %36 = arith.addf %34, %35 : vector<16x256xf32>
    %37 = tpu.reciprocal %36 {approx = true} : vector<16x256xf32> -> vector<16x256xf32>
    %cst_26 = arith.constant 2.000000e+00 : f32
    %38 = vector.broadcast %cst_26 : f32 to vector<16x256xf32>
    %39 = arith.mulf %38, %37 : vector<16x256xf32>
    %cst_27 = arith.constant 1.000000e+00 : f32
    %40 = vector.broadcast %cst_27 : f32 to vector<16x256xf32>
    %41 = arith.subf %40, %39 : vector<16x256xf32>
    %42 = arith.mulf %26, %41 : vector<16x256xf32>
    %c0_28 = arith.constant 0 : index
    %c0_29 = arith.constant 0 : index
    %43 = vector.load %arg17[%c0_28, %c0_29] : memref<18x256xf32, #tpu.memory_space<vmem>>, vector<1x256xf32>
    tpu.vector_store %arg17[%c0_28, %c0_29], %0 {strides = array<i32>} : memref<18x256xf32, #tpu.memory_space<vmem>>, vector<1x256xf32>,
    %c17 = arith.constant 17 : index
    %c0_30 = arith.constant 0 : index
    %44 = vector.load %arg17[%c17, %c0_30] : memref<18x256xf32, #tpu.memory_space<vmem>>, vector<1x256xf32>
    tpu.vector_store %arg17[%c17, %c0_30], %0 {strides = array<i32>} : memref<18x256xf32, #tpu.memory_space<vmem>>, vector<1x256xf32>,
    %c1_31 = arith.constant 1 : index
    %c0_32 = arith.constant 0 : index
    %45 = vector.load %arg17[%c1_31, %c0_32] : memref<18x256xf32, #tpu.memory_space<vmem>>, vector<16x256xf32>
    tpu.vector_store %arg17[%c1_31, %c0_32], %42 {strides = array<i32>} : memref<18x256xf32, #tpu.memory_space<vmem>>, vector<16x256xf32>,
    %cst_33 = arith.constant 0.000000e+00 : f32
    %46 = vector.broadcast %cst_33 : f32 to vector<16x256xf32>
    %c0_34 = arith.constant 0 : index
    %c0_35 = arith.constant 0 : index
    %47 = vector.load %arg17[%c0_34, %c0_35] : memref<18x256xf32, #tpu.memory_space<vmem>>, vector<16x256xf32>
    %48 = arith.truncf %47 : vector<16x256xf32> to vector<16x256xbf16>
    %c0_36 = arith.constant 0 : index
    %c0_37 = arith.constant 0 : index
    %c0_38 = arith.constant 0 : index
    %49 = vector.load %arg6[%c0_36, %c0_37, %c0_38] : memref<3x256x256xbf16, #tpu.memory_space<vmem>>, vector<1x256x256xbf16>
    %50 = vector.shape_cast %49 : vector<1x256x256xbf16> to vector<256x256xbf16>
    %cst_39 = arith.constant dense<0.000000e+00> : vector<16x256xf32>
    %51 = tpu.matmul %48, %50, %cst_39 {dimension_numbers = #tpu.dot_dimension_numbers<[1], [0], [0], [1], [0, 0, 1, 1], [], []>} : vector<16x256xbf16>, vector<256x256xbf16>, vector<16x256xf32> -> vector<16x256xf32>
    %52 = arith.addf %46, %51 : vector<16x256xf32>
    %c1_40 = arith.constant 1 : index
    %c0_41 = arith.constant 0 : index
    %53 = vector.load %arg17[%c1_40, %c0_41] : memref<18x256xf32, #tpu.memory_space<vmem>>, vector<16x256xf32>
    %54 = arith.truncf %53 : vector<16x256xf32> to vector<16x256xbf16>
    %c1_42 = arith.constant 1 : index
    %c0_43 = arith.constant 0 : index
    %c0_44 = arith.constant 0 : index
    %55 = vector.load %arg6[%c1_42, %c0_43, %c0_44] : memref<3x256x256xbf16, #tpu.memory_space<vmem>>, vector<1x256x256xbf16>
    %56 = vector.shape_cast %55 : vector<1x256x256xbf16> to vector<256x256xbf16>
    %cst_45 = arith.constant dense<0.000000e+00> : vector<16x256xf32>
    %57 = tpu.matmul %54, %56, %cst_45 {dimension_numbers = #tpu.dot_dimension_numbers<[1], [0], [0], [1], [0, 0, 1, 1], [], []>} : vector<16x256xbf16>, vector<256x256xbf16>, vector<16x256xf32> -> vector<16x256xf32>
    %58 = arith.addf %52, %57 : vector<16x256xf32>
    %c2_46 = arith.constant 2 : index
    %c0_47 = arith.constant 0 : index
    %59 = vector.load %arg17[%c2_46, %c0_47] : memref<18x256xf32, #tpu.memory_space<vmem>>, vector<16x256xf32>
    %60 = arith.truncf %59 : vector<16x256xf32> to vector<16x256xbf16>
    %c2_48 = arith.constant 2 : index
    %c0_49 = arith.constant 0 : index
    %c0_50 = arith.constant 0 : index
    %61 = vector.load %arg6[%c2_48, %c0_49, %c0_50] : memref<3x256x256xbf16, #tpu.memory_space<vmem>>, vector<1x256x256xbf16>
    %62 = vector.shape_cast %61 : vector<1x256x256xbf16> to vector<256x256xbf16>
    %cst_51 = arith.constant dense<0.000000e+00> : vector<16x256xf32>
    %63 = tpu.matmul %60, %62, %cst_51 {dimension_numbers = #tpu.dot_dimension_numbers<[1], [0], [0], [1], [0, 0, 1, 1], [], []>} : vector<16x256xbf16>, vector<256x256xbf16>, vector<16x256xf32> -> vector<16x256xf32>
    %64 = arith.addf %58, %63 : vector<16x256xf32>
    %c0_52 = arith.constant 0 : index
    %c0_53 = arith.constant 0 : index
    %65 = vector.load %arg8[%c0_52, %c0_53] : memref<8x16xf32, #tpu.memory_space<vmem>>, vector<8x16xf32>
    %cst_54 = arith.constant dense<0.000000e+00> : vector<8x256xf32>
    %66 = tpu.matmul %65, %64, %cst_54 {dimension_numbers = #tpu.dot_dimension_numbers<[1], [0], [0], [1], [0, 0, 1, 1], [], []>} : vector<8x16xf32>, vector<16x256xf32>, vector<8x256xf32> -> vector<8x256xf32>
    %c0_55 = arith.constant 0 : index
    %c0_56 = arith.constant 0 : index
    %67 = vector.load %arg7[%c0_55, %c0_56] : memref<1x256xf32, #tpu.memory_space<vmem>>, vector<1x256xf32>
    %68 = vector.broadcast %67 : vector<1x256xf32> to vector<8x256xf32>
    %69 = arith.addf %66, %68 : vector<8x256xf32>
    %cst_57 = arith.constant 3.000000e+01 : f32
    %70 = vector.broadcast %cst_57 : f32 to vector<8x256xf32>
    %71 = arith.minimumf %69, %70 : vector<8x256xf32>
    %72 = math.exp %71 : vector<8x256xf32>
    %cst_58 = arith.constant 1.000000e+00 : f32
    %73 = vector.broadcast %cst_58 : f32 to vector<8x256xf32>
    %74 = arith.addf %73, %72 : vector<8x256xf32>
    %cst_59 = arith.constant 1.000000e+00 : f32
    %75 = vector.broadcast %cst_59 : f32 to vector<8x256xf32>
    %76 = arith.addf %75, %72 : vector<8x256xf32>
    %77 = arith.mulf %74, %76 : vector<8x256xf32>
    %cst_60 = arith.constant 1.000000e+00 : f32
    %78 = vector.broadcast %cst_60 : f32 to vector<8x256xf32>
    %79 = arith.addf %77, %78 : vector<8x256xf32>
    %80 = tpu.reciprocal %79 {approx = true} : vector<8x256xf32> -> vector<8x256xf32>
    %cst_61 = arith.constant 2.000000e+00 : f32
    %81 = vector.broadcast %cst_61 : f32 to vector<8x256xf32>
    %82 = arith.mulf %81, %80 : vector<8x256xf32>
    %cst_62 = arith.constant 1.000000e+00 : f32
    %83 = vector.broadcast %cst_62 : f32 to vector<8x256xf32>
    %84 = arith.subf %83, %82 : vector<8x256xf32>
    %85 = arith.mulf %69, %84 : vector<8x256xf32>
    %c0_63 = arith.constant 0 : index
    %c0_64 = arith.constant 0 : index
    %86 = vector.load %arg18[%c0_63, %c0_64] : memref<10x256xf32, #tpu.memory_space<vmem>>, vector<1x256xf32>
    tpu.vector_store %arg18[%c0_63, %c0_64], %1 {strides = array<i32>} : memref<10x256xf32, #tpu.memory_space<vmem>>, vector<1x256xf32>,
    %c9 = arith.constant 9 : index
    %c0_65 = arith.constant 0 : index
    %87 = vector.load %arg18[%c9, %c0_65] : memref<10x256xf32, #tpu.memory_space<vmem>>, vector<1x256xf32>
    tpu.vector_store %arg18[%c9, %c0_65], %1 {strides = array<i32>} : memref<10x256xf32, #tpu.memory_space<vmem>>, vector<1x256xf32>,
    %c1_66 = arith.constant 1 : index
    %c0_67 = arith.constant 0 : index
    %88 = vector.load %arg18[%c1_66, %c0_67] : memref<10x256xf32, #tpu.memory_space<vmem>>, vector<8x256xf32>
    tpu.vector_store %arg18[%c1_66, %c0_67], %85 {strides = array<i32>} : memref<10x256xf32, #tpu.memory_space<vmem>>, vector<8x256xf32>,
    %cst_68 = arith.constant 0.000000e+00 : f32
    %89 = vector.broadcast %cst_68 : f32 to vector<8x256xf32>
    %c0_69 = arith.constant 0 : index
    %c0_70 = arith.constant 0 : index
    %90 = vector.load %arg18[%c0_69, %c0_70] : memref<10x256xf32, #tpu.memory_space<vmem>>, vector<8x256xf32>
    %91 = arith.truncf %90 : vector<8x256xf32> to vector<8x256xbf16>
    %c0_71 = arith.constant 0 : index
    %c0_72 = arith.constant 0 : index
    %c0_73 = arith.constant 0 : index
    %92 = vector.load %arg9[%c0_71, %c0_72, %c0_73] : memref<3x256x256xbf16, #tpu.memory_space<vmem>>, vector<1x256x256xbf16>
    %93 = vector.shape_cast %92 : vector<1x256x256xbf16> to vector<256x256xbf16>
    %cst_74 = arith.constant dense<0.000000e+00> : vector<8x256xf32>
    %94 = tpu.matmul %91, %93, %cst_74 {dimension_numbers = #tpu.dot_dimension_numbers<[1], [0], [0], [1], [0, 0, 1, 1], [], []>} : vector<8x256xbf16>, vector<256x256xbf16>, vector<8x256xf32> -> vector<8x256xf32>
    %95 = arith.addf %89, %94 : vector<8x256xf32>
    %c1_75 = arith.constant 1 : index
    %c0_76 = arith.constant 0 : index
    %96 = vector.load %arg18[%c1_75, %c0_76] : memref<10x256xf32, #tpu.memory_space<vmem>>, vector<8x256xf32>
    %97 = arith.truncf %96 : vector<8x256xf32> to vector<8x256xbf16>
    %c1_77 = arith.constant 1 : index
    %c0_78 = arith.constant 0 : index
    %c0_79 = arith.constant 0 : index
    %98 = vector.load %arg9[%c1_77, %c0_78, %c0_79] : memref<3x256x256xbf16, #tpu.memory_space<vmem>>, vector<1x256x256xbf16>
    %99 = vector.shape_cast %98 : vector<1x256x256xbf16> to vector<256x256xbf16>
    %cst_80 = arith.constant dense<0.000000e+00> : vector<8x256xf32>
    %100 = tpu.matmul %97, %99, %cst_80 {dimension_numbers = #tpu.dot_dimension_numbers<[1], [0], [0], [1], [0, 0, 1, 1], [], []>} : vector<8x256xbf16>, vector<256x256xbf16>, vector<8x256xf32> -> vector<8x256xf32>
    %101 = arith.addf %95, %100 : vector<8x256xf32>
    %c2_81 = arith.constant 2 : index
    %c0_82 = arith.constant 0 : index
    %102 = vector.load %arg18[%c2_81, %c0_82] : memref<10x256xf32, #tpu.memory_space<vmem>>, vector<8x256xf32>
    %103 = arith.truncf %102 : vector<8x256xf32> to vector<8x256xbf16>
    %c2_83 = arith.constant 2 : index
    %c0_84 = arith.constant 0 : index
    %c0_85 = arith.constant 0 : index
    %104 = vector.load %arg9[%c2_83, %c0_84, %c0_85] : memref<3x256x256xbf16, #tpu.memory_space<vmem>>, vector<1x256x256xbf16>
    %105 = vector.shape_cast %104 : vector<1x256x256xbf16> to vector<256x256xbf16>
    %cst_86 = arith.constant dense<0.000000e+00> : vector<8x256xf32>
    %106 = tpu.matmul %103, %105, %cst_86 {dimension_numbers = #tpu.dot_dimension_numbers<[1], [0], [0], [1], [0, 0, 1, 1], [], []>} : vector<8x256xbf16>, vector<256x256xbf16>, vector<8x256xf32> -> vector<8x256xf32>
    %107 = arith.addf %101, %106 : vector<8x256xf32>
    %c0_87 = arith.constant 0 : index
    %c0_88 = arith.constant 0 : index
    %108 = vector.load %arg10[%c0_87, %c0_88] : memref<1x256xf32, #tpu.memory_space<vmem>>, vector<1x256xf32>
    %109 = vector.broadcast %108 : vector<1x256xf32> to vector<8x256xf32>
    %110 = arith.addf %107, %109 : vector<8x256xf32>
    %cst_89 = arith.constant 3.000000e+01 : f32
    %111 = vector.broadcast %cst_89 : f32 to vector<8x256xf32>
    %112 = arith.minimumf %110, %111 : vector<8x256xf32>
    %113 = math.exp %112 : vector<8x256xf32>
    %cst_90 = arith.constant 1.000000e+00 : f32
    %114 = vector.broadcast %cst_90 : f32 to vector<8x256xf32>
    %115 = arith.addf %114, %113 : vector<8x256xf32>
    %cst_91 = arith.constant 1.000000e+00 : f32
    %116 = vector.broadcast %cst_91 : f32 to vector<8x256xf32>
    %117 = arith.addf %116, %113 : vector<8x256xf32>
    %118 = arith.mulf %115, %117 : vector<8x256xf32>
    %cst_92 = arith.constant 1.000000e+00 : f32
    %119 = vector.broadcast %cst_92 : f32 to vector<8x256xf32>
    %120 = arith.addf %118, %119 : vector<8x256xf32>
    %121 = tpu.reciprocal %120 {approx = true} : vector<8x256xf32> -> vector<8x256xf32>
    %cst_93 = arith.constant 2.000000e+00 : f32
    %122 = vector.broadcast %cst_93 : f32 to vector<8x256xf32>
    %123 = arith.mulf %122, %121 : vector<8x256xf32>
    %cst_94 = arith.constant 1.000000e+00 : f32
    %124 = vector.broadcast %cst_94 : f32 to vector<8x256xf32>
    %125 = arith.subf %124, %123 : vector<8x256xf32>
    %126 = arith.mulf %110, %125 : vector<8x256xf32>
    %c0_95 = arith.constant 0 : index
    %c0_96 = arith.constant 0 : index
    %127 = vector.load %arg11[%c0_95, %c0_96] : memref<18x8xbf16, #tpu.memory_space<vmem>>, vector<18x8xbf16>
    %128 = arith.truncf %126 : vector<8x256xf32> to vector<8x256xbf16>
    %cst_97 = arith.constant dense<0.000000e+00> : vector<18x256xf32>
    %129 = tpu.matmul %127, %128, %cst_97 {dimension_numbers = #tpu.dot_dimension_numbers<[1], [0], [0], [1], [0, 0, 1, 1], [], []>} : vector<18x8xbf16>, vector<8x256xbf16>, vector<18x256xf32> -> vector<18x256xf32>
    %c0_98 = arith.constant 0 : index
    %c0_99 = arith.constant 0 : index
    %130 = vector.load %arg19[%c0_98, %c0_99] : memref<18x256xf32, #tpu.memory_space<vmem>>, vector<18x256xf32>
    tpu.vector_store %arg19[%c0_98, %c0_99], %129 {strides = array<i32>} : memref<18x256xf32, #tpu.memory_space<vmem>>, vector<18x256xf32>,
    %cst_100 = arith.constant 0.000000e+00 : f32
    %131 = vector.broadcast %cst_100 : f32 to vector<16x256xf32>
    %c0_101 = arith.constant 0 : index
    %c0_102 = arith.constant 0 : index
    %132 = vector.load %arg19[%c0_101, %c0_102] : memref<18x256xf32, #tpu.memory_space<vmem>>, vector<16x256xf32>
    %133 = arith.truncf %132 : vector<16x256xf32> to vector<16x256xbf16>
    %c0_103 = arith.constant 0 : index
    %c0_104 = arith.constant 0 : index
    %c0_105 = arith.constant 0 : index
    %134 = vector.load %arg12[%c0_103, %c0_104, %c0_105] : memref<3x256x256xbf16, #tpu.memory_space<vmem>>, vector<1x256x256xbf16>
    %135 = vector.shape_cast %134 : vector<1x256x256xbf16> to vector<256x256xbf16>
    %cst_106 = arith.constant dense<0.000000e+00> : vector<16x256xf32>
    %136 = tpu.matmul %133, %135, %cst_106 {dimension_numbers = #tpu.dot_dimension_numbers<[1], [0], [0], [1], [0, 0, 1, 1], [], []>} : vector<16x256xbf16>, vector<256x256xbf16>, vector<16x256xf32> -> vector<16x256xf32>
    %137 = arith.addf %131, %136 : vector<16x256xf32>
    %c1_107 = arith.constant 1 : index
    %c0_108 = arith.constant 0 : index
    %138 = vector.load %arg19[%c1_107, %c0_108] : memref<18x256xf32, #tpu.memory_space<vmem>>, vector<16x256xf32>
    %139 = arith.truncf %138 : vector<16x256xf32> to vector<16x256xbf16>
    %c1_109 = arith.constant 1 : index
    %c0_110 = arith.constant 0 : index
    %c0_111 = arith.constant 0 : index
    %140 = vector.load %arg12[%c1_109, %c0_110, %c0_111] : memref<3x256x256xbf16, #tpu.memory_space<vmem>>, vector<1x256x256xbf16>
    %141 = vector.shape_cast %140 : vector<1x256x256xbf16> to vector<256x256xbf16>
    %cst_112 = arith.constant dense<0.000000e+00> : vector<16x256xf32>
    %142 = tpu.matmul %139, %141, %cst_112 {dimension_numbers = #tpu.dot_dimension_numbers<[1], [0], [0], [1], [0, 0, 1, 1], [], []>} : vector<16x256xbf16>, vector<256x256xbf16>, vector<16x256xf32> -> vector<16x256xf32>
    %143 = arith.addf %137, %142 : vector<16x256xf32>
    %c2_113 = arith.constant 2 : index
    %c0_114 = arith.constant 0 : index
    %144 = vector.load %arg19[%c2_113, %c0_114] : memref<18x256xf32, #tpu.memory_space<vmem>>, vector<16x256xf32>
    %145 = arith.truncf %144 : vector<16x256xf32> to vector<16x256xbf16>
    %c2_115 = arith.constant 2 : index
    %c0_116 = arith.constant 0 : index
    %c0_117 = arith.constant 0 : index
    %146 = vector.load %arg12[%c2_115, %c0_116, %c0_117] : memref<3x256x256xbf16, #tpu.memory_space<vmem>>, vector<1x256x256xbf16>
    %147 = vector.shape_cast %146 : vector<1x256x256xbf16> to vector<256x256xbf16>
    %cst_118 = arith.constant dense<0.000000e+00> : vector<16x256xf32>
    %148 = tpu.matmul %145, %147, %cst_118 {dimension_numbers = #tpu.dot_dimension_numbers<[1], [0], [0], [1], [0, 0, 1, 1], [], []>} : vector<16x256xbf16>, vector<256x256xbf16>, vector<16x256xf32> -> vector<16x256xf32>
    %149 = arith.addf %143, %148 : vector<16x256xf32>
    %c0_119 = arith.constant 0 : index
    %c0_120 = arith.constant 0 : index
    %150 = vector.load %arg13[%c0_119, %c0_120] : memref<1x256xf32, #tpu.memory_space<vmem>>, vector<1x256xf32>
    %151 = vector.broadcast %150 : vector<1x256xf32> to vector<16x256xf32>
    %152 = arith.addf %149, %151 : vector<16x256xf32>
    %cst_121 = arith.constant 3.000000e+01 : f32
    %153 = vector.broadcast %cst_121 : f32 to vector<16x256xf32>
    %154 = arith.minimumf %152, %153 : vector<16x256xf32>
    %155 = math.exp %154 : vector<16x256xf32>
    %cst_122 = arith.constant 1.000000e+00 : f32
    %156 = vector.broadcast %cst_122 : f32 to vector<16x256xf32>
    %157 = arith.addf %156, %155 : vector<16x256xf32>
    %cst_123 = arith.constant 1.000000e+00 : f32
    %158 = vector.broadcast %cst_123 : f32 to vector<16x256xf32>
    %159 = arith.addf %158, %155 : vector<16x256xf32>
    %160 = arith.mulf %157, %159 : vector<16x256xf32>
    %cst_124 = arith.constant 1.000000e+00 : f32
    %161 = vector.broadcast %cst_124 : f32 to vector<16x256xf32>
    %162 = arith.addf %160, %161 : vector<16x256xf32>
    %163 = tpu.reciprocal %162 {approx = true} : vector<16x256xf32> -> vector<16x256xf32>
    %cst_125 = arith.constant 2.000000e+00 : f32
    %164 = vector.broadcast %cst_125 : f32 to vector<16x256xf32>
    %165 = arith.mulf %164, %163 : vector<16x256xf32>
    %cst_126 = arith.constant 1.000000e+00 : f32
    %166 = vector.broadcast %cst_126 : f32 to vector<16x256xf32>
    %167 = arith.subf %166, %165 : vector<16x256xf32>
    %168 = arith.mulf %152, %167 : vector<16x256xf32>
    %169 = arith.truncf %168 : vector<16x256xf32> to vector<16x256xbf16>
    %c0_127 = arith.constant 0 : index
    %c0_128 = arith.constant 0 : index
    %170 = vector.load %arg14[%c0_127, %c0_128] : memref<256x64xbf16, #tpu.memory_space<vmem>>, vector<256x64xbf16>
    %cst_129 = arith.constant dense<0.000000e+00> : vector<16x64xf32>
    %171 = tpu.matmul %169, %170, %cst_129 {dimension_numbers = #tpu.dot_dimension_numbers<[1], [0], [0], [1], [0, 0, 1, 1], [], []>} : vector<16x256xbf16>, vector<256x64xbf16>, vector<16x64xf32> -> vector<16x64xf32>
    %c0_130 = arith.constant 0 : index
    %c0_131 = arith.constant 0 : index
    %172 = vector.load %arg15[%c0_130, %c0_131] : memref<1x64xf32, #tpu.memory_space<vmem>>, vector<1x64xf32>
    %173 = vector.broadcast %172 : vector<1x64xf32> to vector<16x64xf32>
    %174 = arith.addf %171, %173 : vector<16x64xf32>
    %c0_132 = arith.constant 0 : index
    %c0_133 = arith.constant 0 : index
    %175 = vector.load %arg3[%c0_132, %c0_133] : memref<16x64xf32, #tpu.memory_space<vmem>>, vector<16x64xf32>
    %c0_134 = arith.constant 0 : index
    %c0_135 = arith.constant 0 : index
    %c0_136 = arith.constant 0 : index
    %176 = vector.load %arg2[%c0_134, %c0_135, %c0_136] : memref<1x16x64xf32, #tpu.memory_space<vmem>>, vector<1x16x64xf32>
    %177 = vector.shape_cast %176 : vector<1x16x64xf32> to vector<16x64xf32>
    %178 = arith.mulf %177, %175 : vector<16x64xf32>
    %cst_137 = arith.constant 1.000000e+00 : f32
    %179 = vector.broadcast %cst_137 : f32 to vector<16x64xf32>
    %180 = arith.subf %179, %175 : vector<16x64xf32>
    %181 = arith.mulf %174, %180 : vector<16x64xf32>
    %182 = arith.addf %178, %181 : vector<16x64xf32>
    %c0_138 = arith.constant 0 : index
    %c0_139 = arith.constant 0 : index
    %c0_140 = arith.constant 0 : index
    %183 = vector.load %arg16[%c0_138, %c0_139, %c0_140] : memref<1x16x64xf32, #tpu.memory_space<vmem>>, vector<1x16x64xf32>
    %184 = vector.shape_cast %183 : vector<1x16x64xf32> to vector<16x64xf32>
    %185 = vector.shape_cast %182 : vector<16x64xf32> to vector<1x16x64xf32>
    tpu.vector_store %arg16[%c0_138, %c0_139, %c0_140], %185 {strides = array<i32>} : memref<1x16x64xf32, #tpu.memory_space<vmem>>, vector<1x16x64xf32>,
    return
  }
  func.func @transform_0(%arg0: i32) -> (i32, i32, i32) {
    %c0_i32 = arith.constant 0 : i32
    %c0_i32_0 = arith.constant 0 : i32
    %c0_i32_1 = arith.constant 0 : i32
    return %arg0, %c0_i32, %c0_i32_0 : i32, i32, i32
  }
  func.func @transform_1(%arg0: i32) -> (i32, i32, i32) {
    %c0_i32 = arith.constant 0 : i32
    %c0_i32_0 = arith.constant 0 : i32
    %c0_i32_1 = arith.constant 0 : i32
    return %arg0, %c0_i32, %c0_i32_0 : i32, i32, i32
  }
  func.func @transform_2(%arg0: i32) -> (i32, i32) {
    %c0_i32 = arith.constant 0 : i32
    %c0_i32_0 = arith.constant 0 : i32
    %c0_i32_1 = arith.constant 0 : i32
    return %c0_i32, %c0_i32_0 : i32, i32
  }
  func.func @transform_3(%arg0: i32) -> (i32, i32, i32) {
    %c0_i32 = arith.constant 0 : i32
    %c0_i32_0 = arith.constant 0 : i32
    %c0_i32_1 = arith.constant 0 : i32
    %c0_i32_2 = arith.constant 0 : i32
    return %c0_i32, %c0_i32_0, %c0_i32_1 : i32, i32, i32
  }
  func.func @transform_4(%arg0: i32) -> (i32, i32) {
    %c0_i32 = arith.constant 0 : i32
    %c0_i32_0 = arith.constant 0 : i32
    %c0_i32_1 = arith.constant 0 : i32
    return %c0_i32, %c0_i32_0 : i32, i32
  }
  func.func @transform_5(%arg0: i32) -> (i32, i32, i32) {
    %c0_i32 = arith.constant 0 : i32
    %c0_i32_0 = arith.constant 0 : i32
    %c0_i32_1 = arith.constant 0 : i32
    %c0_i32_2 = arith.constant 0 : i32
    return %c0_i32, %c0_i32_0, %c0_i32_1 : i32, i32, i32
  }
  func.func @transform_6(%arg0: i32) -> (i32, i32) {
    %c0_i32 = arith.constant 0 : i32
    %c0_i32_0 = arith.constant 0 : i32
    %c0_i32_1 = arith.constant 0 : i32
    return %c0_i32, %c0_i32_0 : i32, i32
  }
  func.func @transform_7(%arg0: i32) -> (i32, i32) {
    %c0_i32 = arith.constant 0 : i32
    %c0_i32_0 = arith.constant 0 : i32
    %c0_i32_1 = arith.constant 0 : i32
    return %c0_i32, %c0_i32_0 : i32, i32
  }
  func.func @transform_8(%arg0: i32) -> (i32, i32, i32) {
    %c0_i32 = arith.constant 0 : i32
    %c0_i32_0 = arith.constant 0 : i32
    %c0_i32_1 = arith.constant 0 : i32
    %c0_i32_2 = arith.constant 0 : i32
    return %c0_i32, %c0_i32_0, %c0_i32_1 : i32, i32, i32
  }
  func.func @transform_9(%arg0: i32) -> (i32, i32) {
    %c0_i32 = arith.constant 0 : i32
    %c0_i32_0 = arith.constant 0 : i32
    %c0_i32_1 = arith.constant 0 : i32
    return %c0_i32, %c0_i32_0 : i32, i32
  }
  func.func @transform_10(%arg0: i32) -> (i32, i32) {
    %c0_i32 = arith.constant 0 : i32
    %c0_i32_0 = arith.constant 0 : i32
    %c0_i32_1 = arith.constant 0 : i32
    return %c0_i32, %c0_i32_0 : i32, i32
  }
  func.func @transform_11(%arg0: i32) -> (i32, i32, i32) {
    %c0_i32 = arith.constant 0 : i32
    %c0_i32_0 = arith.constant 0 : i32
    %c0_i32_1 = arith.constant 0 : i32
    %c0_i32_2 = arith.constant 0 : i32
    return %c0_i32, %c0_i32_0, %c0_i32_1 : i32, i32, i32
  }
  func.func @transform_12(%arg0: i32) -> (i32, i32) {
    %c0_i32 = arith.constant 0 : i32
    %c0_i32_0 = arith.constant 0 : i32
    %c0_i32_1 = arith.constant 0 : i32
    return %c0_i32, %c0_i32_0 : i32, i32
  }
  func.func @transform_13(%arg0: i32) -> (i32, i32) {
    %c0_i32 = arith.constant 0 : i32
    %c0_i32_0 = arith.constant 0 : i32
    %c0_i32_1 = arith.constant 0 : i32
    return %c0_i32, %c0_i32_0 : i32, i32
  }
  func.func @transform_14(%arg0: i32) -> (i32, i32) {
    %c0_i32 = arith.constant 0 : i32
    %c0_i32_0 = arith.constant 0 : i32
    %c0_i32_1 = arith.constant 0 : i32
    return %c0_i32, %c0_i32_0 : i32, i32
  }
  func.func @transform_15(%arg0: i32) -> (i32, i32, i32) {
    %c0_i32 = arith.constant 0 : i32
    %c0_i32_0 = arith.constant 0 : i32
    %c0_i32_1 = arith.constant 0 : i32
    return %arg0, %c0_i32, %c0_i32_0 : i32, i32, i32
  }
}

</mosaic_0001>

<llo_original>
// kernel: eq.2
$region0: #{eq.2}
  #allocation0 [shape = 's32[1]{0}', space=sflag, size = 0x4, scoped, tag = 'scoped memory for eq.2']
  %s0 = inlined_call_operand.vmem [shape: s32[2,16,16], index: 0, kind: input, shape index: {}]
  %s1 = inlined_call_operand.vmem [shape: s32[2,16,16,4], index: 1, kind: output, shape index: {}]
  // Predicated region
  $region2: #{eq.2} parent=0 // pred_check
    _
  $region3: #{eq.2} parent=0 // pred_check_branch
    %3 = sbr.rel (0) target = $region5
  $region4: #{eq.2} parent=0 // pred_region
    _
  $region5: #{eq.2} parent=0 // pred_fallthru
    _
  %v4 = vld [vmem:[%s0] ss:$0 sm:$0xff]
  %5 = vst [vmem:[%s1] sm:$0xf] %v4
  %s6 = scalar_lea.vmem %s0, 16
  %v7 = vld [vmem:[%s6] ss:$0 sm:$0xff]
  %s8 = scalar_lea.vmem %s1, 64
  %9 = vst [vmem:[%s8] sm:$0xf] %v7
  %s10 = scalar_lea.vmem %s0, 1
  %v11 = vld [vmem:[%s10] ss:$0 sm:$0xff]
  %s12 = scalar_lea.vmem %s1, 4
  %13 = vst [vmem:[%s12] sm:$0xf] %v11
  %s14 = scalar_lea.vmem %s0, 16
  %s15 = scalar_lea.vmem %s14, 1
  %v16 = vld [vmem:[%s15] ss:$0 sm:$0xff]
  %s17 = scalar_lea.vmem %s1, 68
  %18 = vst [vmem:[%s17] sm:$0xf] %v16
  %s19 = scalar_lea.vmem %s0, 2
  %v20 = vld [vmem:[%s19] ss:$0 sm:$0xff]
  %s21 = scalar_lea.vmem %s1, 8
  %22 = vst [vmem:[%s21] sm:$0xf] %v20
  %s23 = scalar_lea.vmem %s0, 16
  %s24 = scalar_lea.vmem %s23, 2
  %v25 = vld [vmem:[%s24] ss:$0 sm:$0xff]
  %s26 = scalar_lea.vmem %s1, 72
  %27 = vst [vmem:[%s26] sm:$0xf] %v25
  %s28 = scalar_lea.vmem %s0, 3
  %v29 = vld [vmem:[%s28] ss:$0 sm:$0xff]
  %s30 = scalar_lea.vmem %s1, 12
  %31 = vst [vmem:[%s30] sm:$0xf] %v29
  %s32 = scalar_lea.vmem %s0, 16
  %s33 = scalar_lea.vmem %s32, 3
  %v34 = vld [vmem:[%s33] ss:$0 sm:$0xff]
  %s35 = scalar_lea.vmem %s1, 76
  %36 = vst [vmem:[%s35] sm:$0xf] %v34
  %s37 = scalar_lea.vmem %s0, 4
  %v38 = vld [vmem:[%s37] ss:$0 sm:$0xff]
  %s39 = scalar_lea.vmem %s1, 16
  %40 = vst [vmem:[%s39] sm:$0xf] %v38
  %s41 = scalar_lea.vmem %s0, 16
  %s42 = scalar_lea.vmem %s41, 4
  %v43 = vld [vmem:[%s42] ss:$0 sm:$0xff]
  %s44 = scalar_lea.vmem %s1, 80
  %45 = vst [vmem:[%s44] sm:$0xf] %v43
  %s46 = scalar_lea.vmem %s0, 5
  %v47 = vld [vmem:[%s46] ss:$0 sm:$0xff]
  %s48 = scalar_lea.vmem %s1, 20
  %49 = vst [vmem:[%s48] sm:$0xf] %v47
  %s50 = scalar_lea.vmem %s0, 16
  %s51 = scalar_lea.vmem %s50, 5
  %v52 = vld [vmem:[%s51] ss:$0 sm:$0xff]
  %s53 = scalar_lea.vmem %s1, 84
  %54 = vst [vmem:[%s53] sm:$0xf] %v52
  %s55 = scalar_lea.vmem %s0, 6
  %v56 = vld [vmem:[%s55] ss:$0 sm:$0xff]
  %s57 = scalar_lea.vmem %s1, 24
  %58 = vst [vmem:[%s57] sm:$0xf] %v56
  %s59 = scalar_lea.vmem %s0, 16
  %s60 = scalar_lea.vmem %s59, 6
  %v61 = vld [vmem:[%s60] ss:$0 sm:$0xff]
  %s62 = scalar_lea.vmem %s1, 88
  %63 = vst [vmem:[%s62] sm:$0xf] %v61
  %s64 = scalar_lea.vmem %s0, 7
  %v65 = vld [vmem:[%s64] ss:$0 sm:$0xff]
  %s66 = scalar_lea.vmem %s1, 28
  %67 = vst [vmem:[%s66] sm:$0xf] %v65
  %s68 = scalar_lea.vmem %s0, 16
  %s69 = scalar_lea.vmem %s68, 7
  %v70 = vld [vmem:[%s69] ss:$0 sm:$0xff]
  %s71 = scalar_lea.vmem %s1, 92
  %72 = vst [vmem:[%s71] sm:$0xf] %v70
  %s73 = scalar_lea.vmem %s0, 8
  %v74 = vld [vmem:[%s73] ss:$0 sm:$0xff]
  %s75 = scalar_lea.vmem %s1, 32
  %76 = vst [vmem:[%s75] sm:$0xf] %v74
  %s77 = scalar_lea.vmem %s0, 24
  %v78 = vld [vmem:[%s77] ss:$0 sm:$0xff]
  %s79 = scalar_lea.vmem %s1, 96
  %80 = vst [vmem:[%s79] sm:$0xf] %v78
  %s81 = scalar_lea.vmem %s0, 8
  %s82 = scalar_lea.vmem %s81, 1
  %v83 = vld [vmem:[%s82] ss:$0 sm:$0xff]
  %s84 = scalar_lea.vmem %s1, 36
  %85 = vst [vmem:[%s84] sm:$0xf] %v83
  %s86 = scalar_lea.vmem %s0, 24
  %s87 = scalar_lea.vmem %s86, 1
  %v88 = vld [vmem:[%s87] ss:$0 sm:$0xff]
  %s89 = scalar_lea.vmem %s1, 100
  %90 = vst [vmem:[%s89] sm:$0xf] %v88
  %s91 = scalar_lea.vmem %s0, 8
  %s92 = scalar_lea.vmem %s91, 2
  %v93 = vld [vmem:[%s92] ss:$0 sm:$0xff]
  %s94 = scalar_lea.vmem %s1, 40
  %95 = vst [vmem:[%s94] sm:$0xf] %v93
  %s96 = scalar_lea.vmem %s0, 24
  %s97 = scalar_lea.vmem %s96, 2
  %v98 = vld [vmem:[%s97] ss:$0 sm:$0xff]
  %s99 = scalar_lea.vmem %s1, 104
  %100 = vst [vmem:[%s99] sm:$0xf] %v98
  %s101 = scalar_lea.vmem %s0, 8
  %s102 = scalar_lea.vmem %s101, 3
  %v103 = vld [vmem:[%s102] ss:$0 sm:$0xff]
  %s104 = scalar_lea.vmem %s1, 44
  %105 = vst [vmem:[%s104] sm:$0xf] %v103
  %s106 = scalar_lea.vmem %s0, 24
  %s107 = scalar_lea.vmem %s106, 3
  %v108 = vld [vmem:[%s107] ss:$0 sm:$0xff]
  %s109 = scalar_lea.vmem %s1, 108
  %110 = vst [vmem:[%s109] sm:$0xf] %v108
  %s111 = scalar_lea.vmem %s0, 8
  %s112 = scalar_lea.vmem %s111, 4
  %v113 = vld [vmem:[%s112] ss:$0 sm:$0xff]
  %s114 = scalar_lea.vmem %s1, 48
  %115 = vst [vmem:[%s114] sm:$0xf] %v113
  %s116 = scalar_lea.vmem %s0, 24
  %s117 = scalar_lea.vmem %s116, 4
  %v118 = vld [vmem:[%s117] ss:$0 sm:$0xff]
  %s119 = scalar_lea.vmem %s1, 112
  %120 = vst [vmem:[%s119] sm:$0xf] %v118
  %s121 = scalar_lea.vmem %s0, 8
  %s122 = scalar_lea.vmem %s121, 5
  %v123 = vld [vmem:[%s122] ss:$0 sm:$0xff]
  %s124 = scalar_lea.vmem %s1, 52
  %125 = vst [vmem:[%s124] sm:$0xf] %v123
  %s126 = scalar_lea.vmem %s0, 24
  %s127 = scalar_lea.vmem %s126, 5
  %v128 = vld [vmem:[%s127] ss:$0 sm:$0xff]
  %s129 = scalar_lea.vmem %s1, 116
  %130 = vst [vmem:[%s129] sm:$0xf] %v128
  %s131 = scalar_lea.vmem %s0, 8
  %s132 = scalar_lea.vmem %s131, 6
  %v133 = vld [vmem:[%s132] ss:$0 sm:$0xff]
  %s134 = scalar_lea.vmem %s1, 56
  %135 = vst [vmem:[%s134] sm:$0xf] %v133
  %s136 = scalar_lea.vmem %s0, 24
  %s137 = scalar_lea.vmem %s136, 6
  %v138 = vld [vmem:[%s137] ss:$0 sm:$0xff]
  %s139 = scalar_lea.vmem %s1, 120
  %140 = vst [vmem:[%s139] sm:$0xf] %v138
  %s141 = scalar_lea.vmem %s0, 8
  %s142 = scalar_lea.vmem %s141, 7
  %v143 = vld [vmem:[%s142] ss:$0 sm:$0xff]
  %s144 = scalar_lea.vmem %s1, 60
  %145 = vst [vmem:[%s144] sm:$0xf] %v143
  %s146 = scalar_lea.vmem %s0, 24
  %s147 = scalar_lea.vmem %s146, 7
  %v148 = vld [vmem:[%s147] ss:$0 sm:$0xff]
  %s149 = scalar_lea.vmem %s1, 124
  %150 = vst [vmem:[%s149] sm:$0xf] %v148

// kernel: outer_seg_predictor_forward.1
$region0: #{outer_seg_predictor_forward.1}
  #allocation0 [shape = 'u32[]', space=smem, size = 0x4, offset = 0x4, fixed_abs, tag = 'smem constant byte address 0x4 - core index']
  #allocation1 [shape = 'u32[144,128]{1,0:T(1,128)}', space=vmem, size = 0x12000, scoped, tag = 'internal scratch']
  #allocation2 [shape = 'f32[18,256]{1,0:T(8,128)}', space=vmem, size = 0x6000, scoped, tag = 'scratch operand']
  #allocation3 [shape = 'f32[10,256]{1,0:T(8,128)}', space=vmem, size = 0x4000, scoped, tag = 'scratch operand']
  #allocation4 [shape = 'f32[18,256]{1,0:T(8,128)}', space=vmem, size = 0x6000, scoped, tag = 'scratch operand']
  %s0 = inlined_call_operand.vmem [shape: f32[2,18,128], index: 0, kind: input, shape index: {}]
  %s1 = inlined_call_operand.vmem [shape: f32[2,16,64], index: 1, kind: input, shape index: {}]
  %s2 = inlined_call_operand.vmem [shape: f32[16,64], index: 2, kind: input, shape index: {}]
  %s3 = inlined_call_operand.vmem [shape: bf16[3,128,256], index: 3, kind: input, shape index: {}]
  %s4 = inlined_call_operand.vmem [shape: f32[1,256], index: 4, kind: input, shape index: {}, may-alias: {4,6,9,12}]
  %s5 = inlined_call_operand.vmem [shape: bf16[3,256,256], index: 5, kind: input, shape index: {}]
  %s6 = inlined_call_operand.vmem [shape: f32[1,256], index: 6, kind: input, shape index: {}, may-alias: {4,6,9,12}]
  %s7 = inlined_call_operand.vmem [shape: f32[8,16], index: 7, kind: input, shape index: {}]
  %s8 = inlined_call_operand.vmem [shape: bf16[3,256,256], index: 8, kind: input, shape index: {}]
  %s9 = inlined_call_operand.vmem [shape: f32[1,256], index: 9, kind: input, shape index: {}, may-alias: {4,6,9,12}]
  %s10 = inlined_call_operand.vmem [shape: bf16[18,8], index: 10, kind: input, shape index: {}]
  %s11 = inlined_call_operand.vmem [shape: bf16[3,256,256], index: 11, kind: input, shape index: {}]
  %s12 = inlined_call_operand.vmem [shape: f32[1,256], index: 12, kind: input, shape index: {}, may-alias: {4,6,9,12}]
  %s13 = inlined_call_operand.vmem [shape: bf16[256,64], index: 13, kind: input, shape index: {}]
  %s14 = inlined_call_operand.vmem [shape: f32[1,64], index: 14, kind: input, shape index: {}]
  %s15 = inlined_call_operand.vmem [shape: f32[2,16,64], index: 15, kind: output, shape index: {}]
  %s16 = sld [smem:[#allocation0]]
  $region93: #{outer_seg_predictor_forward.1} parent=0
    _
  %s18 = ssub.s32 1, %s16
  %s19 = scalar_select 0, %s18, %s16
  loop: start=0, step=1, limit=4
  $region2: #{outer_seg_predictor_forward.1} parent=0 // loop_pre_header
    _
  $region3: #{outer_seg_predictor_forward.1} parent=0 // loop_header
    %s21 = sphi 0, %s25
    %p22 = scmp.ge.s32.totalorder %s21, 4
    %s31 = sphi 0, %s33
    %s34 = sphi 0, %s31
    %s35 = sphi 0, %s34
    %s51 = sphi 0, %s35
    %s57 = sphi 0, %s59
    %s60 = sphi 0, %s57
    %s61 = sphi 0, %s60
    %s77 = sphi 0, %s61
    %s81 = sphi 0, %s81
    %s83 = sphi 0, %s81
    %s84 = sphi 0, %s83
    %s98 = sphi 0, %s84
    %s102 = sphi 0, %s102
    %s104 = sphi 0, %s102
    %s105 = sphi 0, %s104
    %s119 = sphi 0, %s105
    %s123 = sphi 0, %s123
    %s125 = sphi 0, %s123
    %s126 = sphi 0, %s125
    %s140 = sphi 0, %s126
    %s144 = sphi 0, %s144
    %s146 = sphi 0, %s144
    %s147 = sphi 0, %s146
    %s161 = sphi 0, %s147
    %s165 = sphi 0, %s165
    %s167 = sphi 0, %s165
    %s168 = sphi 0, %s167
    %s182 = sphi 0, %s168
    %s186 = sphi 0, %s186
    %s188 = sphi 0, %s186
    %s189 = sphi 0, %s188
    %s203 = sphi 0, %s189
    %s207 = sphi 0, %s207
    %s209 = sphi 0, %s207
    %s210 = sphi 0, %s209
    %s224 = sphi 0, %s210
    %s228 = sphi 0, %s228
    %s230 = sphi 0, %s228
    %s231 = sphi 0, %s230
    %s245 = sphi 0, %s231
    %s249 = sphi 0, %s249
    %s251 = sphi 0, %s249
    %s252 = sphi 0, %s251
    %s266 = sphi 0, %s252
    %s270 = sphi 0, %s270
    %s272 = sphi 0, %s270
    %s273 = sphi 0, %s272
    %s287 = sphi 0, %s273
    %s291 = sphi 0, %s291
    %s293 = sphi 0, %s291
    %s294 = sphi 0, %s293
    %s308 = sphi 0, %s294
    %s312 = sphi 0, %s312
    %s314 = sphi 0, %s312
    %s315 = sphi 0, %s314
    %s329 = sphi 0, %s315
    %s333 = sphi 0, %s333
    %s335 = sphi 0, %s333
    %s336 = sphi 0, %s335
    %s350 = sphi 0, %s336
    %s356 = sphi 0, %s358
    %s359 = sphi 0, %s356
    %s360 = sphi 0, %s359
    %s376 = sphi 0, %s360
  $region4: #{outer_seg_predictor_forward.1} parent=0 // loop_header_branch
    %24 = sbr.rel (%p22) target = $region8
  $region5: #{outer_seg_predictor_forward.1} parent=0 // loop_body
    %s26 = ssub.s32 %s21, 1
    %s27 = ssub.s32 %s21, 2
    %s28 = sadd.s32 %s21, 1
    %s29 = ssub.s32 %s21, %s28
    %p30 = scmp.eq.s32.totalorder %s29, 0
    %s32 = sadd.s32 %s31, 1
    %s33 = scalar_select %p30, %s31, %s32
    %p36 = pneg %p30
    %p37 = scmp.eq.s32.totalorder %s21, 1
    %p38 = por %p36, %p37
    %p39 = scmp.ne.s32.totalorder %s31, %s34
    %p40 = scmp.eq.s32.totalorder %s21, 0
    %p41 = por %p39, %p40
    %p42 = scmp.ne.s32.totalorder %s31, %s34
    %p43 = scmp.eq.s32.totalorder %s26, 1
    %p44 = por %p42, %p43
    %p45 = scmp.ne.s32.totalorder %s34, %s35
    %p46 = scmp.eq.s32.totalorder %s26, 0
    %p47 = por %p45, %p46
    %p48 = scmp.ne.s32.totalorder %s34, %s35
    %p49 = scmp.eq.s32.totalorder %s27, 1
    %p50 = por %p48, %p49
    %p52 = scmp.ne.s32.totalorder %s35, %s51
    %p53 = scmp.eq.s32.totalorder %s27, 0
    %p54 = por %p52, %p53
    %s55 = ssub.s32 %s21, %s28
    %p56 = scmp.eq.s32.totalorder %s55, 0
    %s58 = sadd.s32 %s57, 1
    %s59 = scalar_select %p56, %s57, %s58
    %p62 = pneg %p56
    %p63 = scmp.eq.s32.totalorder %s21, 1
    %p64 = por %p62, %p63
    %p65 = scmp.ne.s32.totalorder %s57, %s60
    %p66 = scmp.eq.s32.totalorder %s21, 0
    %p67 = por %p65, %p66
    %p68 = scmp.ne.s32.totalorder %s57, %s60
    %p69 = scmp.eq.s32.totalorder %s26, 1
    %p70 = por %p68, %p69
    %p71 = scmp.ne.s32.totalorder %s60, %s61
    %p72 = scmp.eq.s32.totalorder %s26, 0
    %p73 = por %p71, %p72
    %p74 = scmp.ne.s32.totalorder %s60, %s61
    %p75 = scmp.eq.s32.totalorder %s27, 1
    %p76 = por %p74, %p75
    %p78 = scmp.ne.s32.totalorder %s61, %s77
    %p79 = scmp.eq.s32.totalorder %s27, 0
    %p80 = por %p78, %p79
    %s82 = sadd.s32 %s81, 1
    %p85 = scmp.eq.s32.totalorder %s21, 1
    %p86 = scmp.ne.s32.totalorder %s81, %s83
    %p87 = scmp.eq.s32.totalorder %s21, 0
    %p88 = por %p86, %p87
    %p89 = scmp.ne.s32.totalorder %s81, %s83
    %p90 = scmp.eq.s32.totalorder %s26, 1
    %p91 = por %p89, %p90
    %p92 = scmp.ne.s32.totalorder %s83, %s84
    %p93 = scmp.eq.s32.totalorder %s26, 0
    %p94 = por %p92, %p93
    %p95 = scmp.ne.s32.totalorder %s83, %s84
    %p96 = scmp.eq.s32.totalorder %s27, 1
    %p97 = por %p95, %p96
    %p99 = scmp.ne.s32.totalorder %s84, %s98
    %p100 = scmp.eq.s32.totalorder %s27, 0
    %p101 = por %p99, %p100
    %s103 = sadd.s32 %s102, 1
    %p106 = scmp.eq.s32.totalorder %s21, 1
    %p107 = scmp.ne.s32.totalorder %s102, %s104
    %p108 = scmp.eq.s32.totalorder %s21, 0
    %p109 = por %p107, %p108
    %p110 = scmp.ne.s32.totalorder %s102, %s104
    %p111 = scmp.eq.s32.totalorder %s26, 1
    %p112 = por %p110, %p111
    %p113 = scmp.ne.s32.totalorder %s104, %s105
    %p114 = scmp.eq.s32.totalorder %s26, 0
    %p115 = por %p113, %p114
    %p116 = scmp.ne.s32.totalorder %s104, %s105
    %p117 = scmp.eq.s32.totalorder %s27, 1
    %p118 = por %p116, %p117
    %p120 = scmp.ne.s32.totalorder %s105, %s119
    %p121 = scmp.eq.s32.totalorder %s27, 0
    %p122 = por %p120, %p121
    %s124 = sadd.s32 %s123, 1
    %p127 = scmp.eq.s32.totalorder %s21, 1
    %p128 = scmp.ne.s32.totalorder %s123, %s125
    %p129 = scmp.eq.s32.totalorder %s21, 0
    %p130 = por %p128, %p129
    %p131 = scmp.ne.s32.totalorder %s123, %s125
    %p132 = scmp.eq.s32.totalorder %s26, 1
    %p133 = por %p131, %p132
    %p134 = scmp.ne.s32.totalorder %s125, %s126
    %p135 = scmp.eq.s32.totalorder %s26, 0
    %p136 = por %p134, %p135
    %p137 = scmp.ne.s32.totalorder %s125, %s126
    %p138 = scmp.eq.s32.totalorder %s27, 1
    %p139 = por %p137, %p138
    %p141 = scmp.ne.s32.totalorder %s126, %s140
    %p142 = scmp.eq.s32.totalorder %s27, 0
    %p143 = por %p141, %p142
    %s145 = sadd.s32 %s144, 1
    %p148 = scmp.eq.s32.totalorder %s21, 1
    %p149 = scmp.ne.s32.totalorder %s144, %s146
    %p150 = scmp.eq.s32.totalorder %s21, 0
    %p151 = por %p149, %p150
    %p152 = scmp.ne.s32.totalorder %s144, %s146
    %p153 = scmp.eq.s32.totalorder %s26, 1
    %p154 = por %p152, %p153
    %p155 = scmp.ne.s32.totalorder %s146, %s147
    %p156 = scmp.eq.s32.totalorder %s26, 0
    %p157 = por %p155, %p156
    %p158 = scmp.ne.s32.totalorder %s146, %s147
    %p159 = scmp.eq.s32.totalorder %s27, 1
    %p160 = por %p158, %p159
    %p162 = scmp.ne.s32.totalorder %s147, %s161
    %p163 = scmp.eq.s32.totalorder %s27, 0
    %p164 = por %p162, %p163
    %s166 = sadd.s32 %s165, 1
    %p169 = scmp.eq.s32.totalorder %s21, 1
    %p170 = scmp.ne.s32.totalorder %s165, %s167
    %p171 = scmp.eq.s32.totalorder %s21, 0
    %p172 = por %p170, %p171
    %p173 = scmp.ne.s32.totalorder %s165, %s167
    %p174 = scmp.eq.s32.totalorder %s26, 1
    %p175 = por %p173, %p174
    %p176 = scmp.ne.s32.totalorder %s167, %s168
    %p177 = scmp.eq.s32.totalorder %s26, 0
    %p178 = por %p176, %p177
    %p179 = scmp.ne.s32.totalorder %s167, %s168
    %p180 = scmp.eq.s32.totalorder %s27, 1
    %p181 = por %p179, %p180
    %p183 = scmp.ne.s32.totalorder %s168, %s182
    %p184 = scmp.eq.s32.totalorder %s27, 0
    %p185 = por %p183, %p184
    %s187 = sadd.s32 %s186, 1
    %p190 = scmp.eq.s32.totalorder %s21, 1
    %p191 = scmp.ne.s32.totalorder %s186, %s188
    %p192 = scmp.eq.s32.totalorder %s21, 0
    %p193 = por %p191, %p192
    %p194 = scmp.ne.s32.totalorder %s186, %s188
    %p195 = scmp.eq.s32.totalorder %s26, 1
    %p196 = por %p194, %p195
    %p197 = scmp.ne.s32.totalorder %s188, %s189
    %p198 = scmp.eq.s32.totalorder %s26, 0
    %p199 = por %p197, %p198
    %p200 = scmp.ne.s32.totalorder %s188, %s189
    %p201 = scmp.eq.s32.totalorder %s27, 1
    %p202 = por %p200, %p201
    %p204 = scmp.ne.s32.totalorder %s189, %s203
    %p205 = scmp.eq.s32.totalorder %s27, 0
    %p206 = por %p204, %p205
    %s208 = sadd.s32 %s207, 1
    %p211 = scmp.eq.s32.totalorder %s21, 1
    %p212 = scmp.ne.s32.totalorder %s207, %s209
    %p213 = scmp.eq.s32.totalorder %s21, 0
    %p214 = por %p212, %p213
    %p215 = scmp.ne.s32.totalorder %s207, %s209
    %p216 = scmp.eq.s32.totalorder %s26, 1
    %p217 = por %p215, %p216
    %p218 = scmp.ne.s32.totalorder %s209, %s210
    %p219 = scmp.eq.s32.totalorder %s26, 0
    %p220 = por %p218, %p219
    %p221 = scmp.ne.s32.totalorder %s209, %s210
    %p222 = scmp.eq.s32.totalorder %s27, 1
    %p223 = por %p221, %p222
    %p225 = scmp.ne.s32.totalorder %s210, %s224
    %p226 = scmp.eq.s32.totalorder %s27, 0
    %p227 = por %p225, %p226
    %s229 = sadd.s32 %s228, 1
    %p232 = scmp.eq.s32.totalorder %s21, 1
    %p233 = scmp.ne.s32.totalorder %s228, %s230
    %p234 = scmp.eq.s32.totalorder %s21, 0
    %p235 = por %p233, %p234
    %p236 = scmp.ne.s32.totalorder %s228, %s230
    %p237 = scmp.eq.s32.totalorder %s26, 1
    %p238 = por %p236, %p237
    %p239 = scmp.ne.s32.totalorder %s230, %s231
    %p240 = scmp.eq.s32.totalorder %s26, 0
    %p241 = por %p239, %p240
    %p242 = scmp.ne.s32.totalorder %s230, %s231
    %p243 = scmp.eq.s32.totalorder %s27, 1
    %p244 = por %p242, %p243
    %p246 = scmp.ne.s32.totalorder %s231, %s245
    %p247 = scmp.eq.s32.totalorder %s27, 0
    %p248 = por %p246, %p247
    %s250 = sadd.s32 %s249, 1
    %p253 = scmp.eq.s32.totalorder %s21, 1
    %p254 = scmp.ne.s32.totalorder %s249, %s251
    %p255 = scmp.eq.s32.totalorder %s21, 0
    %p256 = por %p254, %p255
    %p257 = scmp.ne.s32.totalorder %s249, %s251
    %p258 = scmp.eq.s32.totalorder %s26, 1
    %p259 = por %p257, %p258
    %p260 = scmp.ne.s32.totalorder %s251, %s252
    %p261 = scmp.eq.s32.totalorder %s26, 0
    %p262 = por %p260, %p261
    %p263 = scmp.ne.s32.totalorder %s251, %s252
    %p264 = scmp.eq.s32.totalorder %s27, 1
    %p265 = por %p263, %p264
    %p267 = scmp.ne.s32.totalorder %s252, %s266
    %p268 = scmp.eq.s32.totalorder %s27, 0
    %p269 = por %p267, %p268
    %s271 = sadd.s32 %s270, 1
    %p274 = scmp.eq.s32.totalorder %s21, 1
    %p275 = scmp.ne.s32.totalorder %s270, %s272
    %p276 = scmp.eq.s32.totalorder %s21, 0
    %p277 = por %p275, %p276
    %p278 = scmp.ne.s32.totalorder %s270, %s272
    %p279 = scmp.eq.s32.totalorder %s26, 1
    %p280 = por %p278, %p279
    %p281 = scmp.ne.s32.totalorder %s272, %s273
    %p282 = scmp.eq.s32.totalorder %s26, 0
    %p283 = por %p281, %p282
    %p284 = scmp.ne.s32.totalorder %s272, %s273
    %p285 = scmp.eq.s32.totalorder %s27, 1
    %p286 = por %p284, %p285
    %p288 = scmp.ne.s32.totalorder %s273, %s287
    %p289 = scmp.eq.s32.totalorder %s27, 0
    %p290 = por %p288, %p289
    %s292 = sadd.s32 %s291, 1
    %p295 = scmp.eq.s32.totalorder %s21, 1
    %p296 = scmp.ne.s32.totalorder %s291, %s293
    %p297 = scmp.eq.s32.totalorder %s21, 0
    %p298 = por %p296, %p297
    %p299 = scmp.ne.s32.totalorder %s291, %s293
    %p300 = scmp.eq.s32.totalorder %s26, 1
    %p301 = por %p299, %p300
    %p302 = scmp.ne.s32.totalorder %s293, %s294
    %p303 = scmp.eq.s32.totalorder %s26, 0
    %p304 = por %p302, %p303
    %p305 = scmp.ne.s32.totalorder %s293, %s294
    %p306 = scmp.eq.s32.totalorder %s27, 1
    %p307 = por %p305, %p306
    %p309 = scmp.ne.s32.totalorder %s294, %s308
    %p310 = scmp.eq.s32.totalorder %s27, 0
    %p311 = por %p309, %p310
    %s313 = sadd.s32 %s312, 1
    %p316 = scmp.eq.s32.totalorder %s21, 1
    %p317 = scmp.ne.s32.totalorder %s312, %s314
    %p318 = scmp.eq.s32.totalorder %s21, 0
    %p319 = por %p317, %p318
    %p320 = scmp.ne.s32.totalorder %s312, %s314
    %p321 = scmp.eq.s32.totalorder %s26, 1
    %p322 = por %p320, %p321
    %p323 = scmp.ne.s32.totalorder %s314, %s315
    %p324 = scmp.eq.s32.totalorder %s26, 0
    %p325 = por %p323, %p324
    %p326 = scmp.ne.s32.totalorder %s314, %s315
    %p327 = scmp.eq.s32.totalorder %s27, 1
    %p328 = por %p326, %p327
    %p330 = scmp.ne.s32.totalorder %s315, %s329
    %p331 = scmp.eq.s32.totalorder %s27, 0
    %p332 = por %p330, %p331
    %s334 = sadd.s32 %s333, 1
    %p337 = scmp.eq.s32.totalorder %s21, 1
    %p338 = scmp.ne.s32.totalorder %s333, %s335
    %p339 = scmp.eq.s32.totalorder %s21, 0
    %p340 = por %p338, %p339
    %p341 = scmp.ne.s32.totalorder %s333, %s335
    %p342 = scmp.eq.s32.totalorder %s26, 1
    %p343 = por %p341, %p342
    %p344 = scmp.ne.s32.totalorder %s335, %s336
    %p345 = scmp.eq.s32.totalorder %s26, 0
    %p346 = por %p344, %p345
    %p347 = scmp.ne.s32.totalorder %s335, %s336
    %p348 = scmp.eq.s32.totalorder %s27, 1
    %p349 = por %p347, %p348
    %p351 = scmp.ne.s32.totalorder %s336, %s350
    %p352 = scmp.eq.s32.totalorder %s27, 0
    %p353 = por %p351, %p352
    %s354 = ssub.s32 %s21, %s28
    %p355 = scmp.eq.s32.totalorder %s354, 0
    %s357 = sadd.s32 %s356, 1
    %s358 = scalar_select %p355, %s356, %s357
    %p361 = pneg %p355
    %p362 = scmp.eq.s32.totalorder %s21, 1
    %p363 = por %p361, %p362
    %p364 = scmp.ne.s32.totalorder %s356, %s359
    %p365 = scmp.eq.s32.totalorder %s21, 0
    %p366 = por %p364, %p365
    %p367 = scmp.ne.s32.totalorder %s356, %s359
    %p368 = scmp.eq.s32.totalorder %s26, 1
    %p369 = por %p367, %p368
    %p370 = scmp.ne.s32.totalorder %s359, %s360
    %p371 = scmp.eq.s32.totalorder %s26, 0
    %p372 = por %p370, %p371
    %p373 = scmp.ne.s32.totalorder %s359, %s360
    %p374 = scmp.eq.s32.totalorder %s27, 1
    %p375 = por %p373, %p374
    %p377 = scmp.ne.s32.totalorder %s360, %s376
    %p378 = scmp.eq.s32.totalorder %s27, 0
    %p379 = por %p377, %p378
    %p380 = scmp.le.s32.totalorder 1, %s21
    %p381 = scmp.lt.s32.totalorder %s21, 3
    %p382 = pnand %p380, %p381
    %p383 = pneg %p382
    // Predicated region
    $region9: #{outer_seg_predictor_forward.1} parent=5 // pred_check
      _
    $region10: #{outer_seg_predictor_forward.1} parent=5 // pred_check_branch
      %385 = sbr.rel (%p382) target = $region12
    $region11: #{outer_seg_predictor_forward.1} parent=5 // pred_region
      %s386 = ssub.s32 %s21, 1
      // Predicated region
      $region13: #{outer_seg_predictor_forward.1} parent=11 // pred_check
        %p387 = pneg %p94
      $region14: #{outer_seg_predictor_forward.1} parent=11 // pred_check_branch
        %389 = sbr.rel (%p387) target = $region16
      $region15: #{outer_seg_predictor_forward.1} parent=11 // pred_region
        _
      $region16: #{outer_seg_predictor_forward.1} parent=11 // pred_fallthru
        _
      // Predicated region
      $region17: #{outer_seg_predictor_forward.1} parent=11 // pred_check
        %p390 = pneg %p115
      $region18: #{outer_seg_predictor_forward.1} parent=11 // pred_check_branch
        %392 = sbr.rel (%p390) target = $region20
      $region19: #{outer_seg_predictor_forward.1} parent=11 // pred_region
        _
      $region20: #{outer_seg_predictor_forward.1} parent=11 // pred_fallthru
        _
      // Predicated region
      $region21: #{outer_seg_predictor_forward.1} parent=11 // pred_check
        %p393 = pneg %p136
      $region22: #{outer_seg_predictor_forward.1} parent=11 // pred_check_branch
        %395 = sbr.rel (%p393) target = $region24
      $region23: #{outer_seg_predictor_forward.1} parent=11 // pred_region
        _
      $region24: #{outer_seg_predictor_forward.1} parent=11 // pred_fallthru
        _
      // Predicated region
      $region25: #{outer_seg_predictor_forward.1} parent=11 // pred_check
        %p396 = pneg %p157
      $region26: #{outer_seg_predictor_forward.1} parent=11 // pred_check_branch
        %398 = sbr.rel (%p396) target = $region28
      $region27: #{outer_seg_predictor_forward.1} parent=11 // pred_region
        _
      $region28: #{outer_seg_predictor_forward.1} parent=11 // pred_fallthru
        _
      // Predicated region
      $region29: #{outer_seg_predictor_forward.1} parent=11 // pred_check
        %p399 = pneg %p178
      $region30: #{outer_seg_predictor_forward.1} parent=11 // pred_check_branch
        %401 = sbr.rel (%p399) target = $region32
      $region31: #{outer_seg_predictor_forward.1} parent=11 // pred_region
        _
      $region32: #{outer_seg_predictor_forward.1} parent=11 // pred_fallthru
        _
      // Predicated region
      $region33: #{outer_seg_predictor_forward.1} parent=11 // pred_check
        %p402 = pneg %p199
      $region34: #{outer_seg_predictor_forward.1} parent=11 // pred_check_branch
        %404 = sbr.rel (%p402) target = $region36
      $region35: #{outer_seg_predictor_forward.1} parent=11 // pred_region
        _
      $region36: #{outer_seg_predictor_forward.1} parent=11 // pred_fallthru
        _
      // Predicated region
      $region37: #{outer_seg_predictor_forward.1} parent=11 // pred_check
        %p405 = pneg %p220
      $region38: #{outer_seg_predictor_forward.1} parent=11 // pred_check_branch
        %407 = sbr.rel (%p405) target = $region40
      $region39: #{outer_seg_predictor_forward.1} parent=11 // pred_region
        _
      $region40: #{outer_seg_predictor_forward.1} parent=11 // pred_fallthru
        _
      // Predicated region
      $region41: #{outer_seg_predictor_forward.1} parent=11 // pred_check
        %p408 = pneg %p241
      $region42: #{outer_seg_predictor_forward.1} parent=11 // pred_check_branch
        %410 = sbr.rel (%p408) target = $region44
      $region43: #{outer_seg_predictor_forward.1} parent=11 // pred_region
        _
      $region44: #{outer_seg_predictor_forward.1} parent=11 // pred_fallthru
        _
      // Predicated region
      $region45: #{outer_seg_predictor_forward.1} parent=11 // pred_check
        %p411 = pneg %p262
      $region46: #{outer_seg_predictor_forward.1} parent=11 // pred_check_branch
        %413 = sbr.rel (%p411) target = $region48
      $region47: #{outer_seg_predictor_forward.1} parent=11 // pred_region
        _
      $region48: #{outer_seg_predictor_forward.1} parent=11 // pred_fallthru
        _
      // Predicated region
      $region49: #{outer_seg_predictor_forward.1} parent=11 // pred_check
        %p414 = pneg %p283
      $region50: #{outer_seg_predictor_forward.1} parent=11 // pred_check_branch
        %416 = sbr.rel (%p414) target = $region52
      $region51: #{outer_seg_predictor_forward.1} parent=11 // pred_region
        _
      $region52: #{outer_seg_predictor_forward.1} parent=11 // pred_fallthru
        _
      // Predicated region
      $region53: #{outer_seg_predictor_forward.1} parent=11 // pred_check
        %p417 = pneg %p304
      $region54: #{outer_seg_predictor_forward.1} parent=11 // pred_check_branch
        %419 = sbr.rel (%p417) target = $region56
      $region55: #{outer_seg_predictor_forward.1} parent=11 // pred_region
        _
      $region56: #{outer_seg_predictor_forward.1} parent=11 // pred_fallthru
        _
      // Predicated region
      $region57: #{outer_seg_predictor_forward.1} parent=11 // pred_check
        %p420 = pneg %p325
      $region58: #{outer_seg_predictor_forward.1} parent=11 // pred_check_branch
        %422 = sbr.rel (%p420) target = $region60
      $region59: #{outer_seg_predictor_forward.1} parent=11 // pred_region
        _
      $region60: #{outer_seg_predictor_forward.1} parent=11 // pred_fallthru
        _
      // Predicated region
      $region61: #{outer_seg_predictor_forward.1} parent=11 // pred_check
        %p423 = pneg %p346
      $region62: #{outer_seg_predictor_forward.1} parent=11 // pred_check_branch
        %425 = sbr.rel (%p423) target = $region64
      $region63: #{outer_seg_predictor_forward.1} parent=11 // pred_region
        _
      $region64: #{outer_seg_predictor_forward.1} parent=11 // pred_fallthru
        _
    $region12: #{outer_seg_predictor_forward.1} parent=5 // pred_fallthru
      _
    %p426 = scmp.lt.s32.totalorder %s21, 2
    // Predicated region
    $region65: #{outer_seg_predictor_forward.1} parent=5 // pred_check
      %p427 = pneg %p426
    $region66: #{outer_seg_predictor_forward.1} parent=5 // pred_check_branch
      %429 = sbr.rel (%p427) target = $region68
    $region67: #{outer_seg_predictor_forward.1} parent=5 // pred_region
      // Predicated region
      $region69: #{outer_seg_predictor_forward.1} parent=67 // pred_check
        %p430 = pneg %p41
      $region70: #{outer_seg_predictor_forward.1} parent=67 // pred_check_branch
        %432 = sbr.rel (%p430) target = $region72
      $region71: #{outer_seg_predictor_forward.1} parent=67 // pred_region
        %p433 = scmp.lt.s32.totalorder %s21, 1
        %s434 = scalar_select %p433, %s21, 1
        %s435 = smul.addr %s434, 3
        %s436 = smul.addr %s435, 8
        %s437 = scalar_lea.vmem %s0, %s436
      $region72: #{outer_seg_predictor_forward.1} parent=67 // pred_fallthru
        _
      // Predicated region
      $region73: #{outer_seg_predictor_forward.1} parent=67 // pred_check
        %p438 = pneg %p67
      $region74: #{outer_seg_predictor_forward.1} parent=67 // pred_check_branch
        %440 = sbr.rel (%p438) target = $region76
      $region75: #{outer_seg_predictor_forward.1} parent=67 // pred_region
        %p441 = scmp.lt.s32.totalorder %s21, 1
        %s442 = scalar_select %p441, %s21, 1
        %s443 = smul.addr %s442, 2
        %s444 = smul.addr %s443, 8
        %s445 = scalar_lea.vmem %s1, %s444
      $region76: #{outer_seg_predictor_forward.1} parent=67 // pred_fallthru
        _
    $region68: #{outer_seg_predictor_forward.1} parent=5 // pred_fallthru
      _
    %p446 = scmp.le.s32.totalorder 1, %s21
    %p447 = scmp.lt.s32.totalorder %s21, 3
    %p448 = pnand %p446, %p447
    %p449 = pneg %p448
    // Predicated region
    $region77: #{outer_seg_predictor_forward.1} parent=5 // pred_check
      _
    $region78: #{outer_seg_predictor_forward.1} parent=5 // pred_check_branch
      %451 = sbr.rel (%p448) target = $region80
    $region79: #{outer_seg_predictor_forward.1} parent=5 // pred_region
      %s452 = ssub.s32 %s21, 1
      %p453 = scmp.lt.s32.totalorder %s26, 1
      %s454 = scalar_select %p453, %s26, 1
      %s455 = smul.addr %s454, 3
      %s456 = smul.addr %s455, 8
      %s457 = scalar_lea.vmem %s0, %s456
      %p458 = pneg %p47
      %p459 = pneg %p44
      %p460 = scmp.lt.s32.totalorder %s26, 1
      %s461 = scalar_select %p460, %s26, 1
      %s462 = smul.addr %s461, 2
      %s463 = smul.addr %s462, 8
      %s464 = scalar_lea.vmem %s1, %s463
      %p465 = pneg %p73
      %p466 = pneg %p70
      %p467 = pneg %p94
      %p468 = pneg %p91
      %p469 = pneg %p115
      %p470 = pneg %p112
      %p471 = pneg %p136
      %p472 = pneg %p133
      %p473 = pneg %p157
      %p474 = pneg %p154
      %p475 = pneg %p178
      %p476 = pneg %p175
      %p477 = pneg %p199
      %p478 = pneg %p196
      %p479 = pneg %p220
      %p480 = pneg %p217
      %p481 = pneg %p241
      %p482 = pneg %p238
      %p483 = pneg %p262
      %p484 = pneg %p259
      %p485 = pneg %p283
      %p486 = pneg %p280
      %p487 = pneg %p304
      %p488 = pneg %p301
      %p489 = pneg %p325
      %p490 = pneg %p322
      %p491 = pneg %p346
      %p492 = pneg %p343
      %p493 = pneg %p372
      %p494 = pneg %p369
      %p495 = scmp.lt.s32.totalorder %s26, 1
      %s496 = scalar_select %p495, %s26, 1
      %s497 = smul.addr %s496, 2
      %s498 = smul.addr %s497, 8
      %s499 = scalar_lea.vmem %s15, %s498
      %p500 = scmp.lt.s32.totalorder %s26, 1
      %s501 = scalar_select %p500, %s26, 1
      %s502 = smul.addr %s501, 3
      %s503 = smul.addr %s502, 8
      %s504 = scalar_lea.vmem %s0, %s503
      %p505 = scmp.lt.s32.totalorder %s26, 1
      %s506 = scalar_select %p505, %s26, 1
      %s507 = smul.addr %s506, 2
      %s508 = smul.addr %s507, 8
      %s509 = scalar_lea.vmem %s1, %s508
      %p510 = scmp.lt.s32.totalorder %s26, 1
      %s511 = scalar_select %p510, %s26, 1
      %s512 = smul.addr %s511, 2
      %s513 = smul.addr %s512, 8
      %s514 = scalar_lea.vmem %s15, %s513
      %v516 = vld [vmem:[%s504] sm:$0xff]
      %v517 = vld [vmem:[%s504 + $0x8] sm:$0xff]
      %v518 = vpack.c.bf16 %v517, %v516
      %v519 = vld [vmem:[%s3] sm:$0xff]
      %v520 = vld [vmem:[%s3 + $0x8] sm:$0xff]
      %v521 = vld [vmem:[%s3 + $0x10] sm:$0xff]
      %v522 = vld [vmem:[%s3 + $0x18] sm:$0xff]
      %v523 = vld [vmem:[%s3 + $0x20] sm:$0xff]
      %v524 = vld [vmem:[%s3 + $0x28] sm:$0xff]
      %v525 = vld [vmem:[%s3 + $0x30] sm:$0xff]
      %v526 = vld [vmem:[%s3 + $0x38] sm:$0xff]
      %v527 = vld [vmem:[%s3 + $0x40] sm:$0xff]
      %v528 = vld [vmem:[%s3 + $0x48] sm:$0xff]
      %v529 = vld [vmem:[%s3 + $0x50] sm:$0xff]
      %v530 = vld [vmem:[%s3 + $0x58] sm:$0xff]
      %v531 = vld [vmem:[%s3 + $0x60] sm:$0xff]
      %v532 = vld [vmem:[%s3 + $0x68] sm:$0xff]
      %v533 = vld [vmem:[%s3 + $0x70] sm:$0xff]
      %v534 = vld [vmem:[%s3 + $0x78] sm:$0xff]
      %v535 = vld [vmem:[%s504 + $0x1] sm:$0xff]
      %v536 = vld [vmem:[%s504 + $0x9] sm:$0xff]
      %v537 = vpack.c.bf16 %v536, %v535
      %s538 = scalar_lea.vmem %s3, 128
      %v539 = vld [vmem:[%s538] sm:$0xff]
      %v540 = vld [vmem:[%s538 + $0x8] sm:$0xff]
      %v541 = vld [vmem:[%s538 + $0x10] sm:$0xff]
      %v542 = vld [vmem:[%s538 + $0x18] sm:$0xff]
      %v543 = vld [vmem:[%s538 + $0x20] sm:$0xff]
      %v544 = vld [vmem:[%s538 + $0x28] sm:$0xff]
      %v545 = vld [vmem:[%s538 + $0x30] sm:$0xff]
      %v546 = vld [vmem:[%s538 + $0x38] sm:$0xff]
      %v547 = vld [vmem:[%s538 + $0x40] sm:$0xff]
      %v548 = vld [vmem:[%s538 + $0x48] sm:$0xff]
      %v549 = vld [vmem:[%s538 + $0x50] sm:$0xff]
      %v550 = vld [vmem:[%s538 + $0x58] sm:$0xff]
      %v551 = vld [vmem:[%s538 + $0x60] sm:$0xff]
      %v552 = vld [vmem:[%s538 + $0x68] sm:$0xff]
      %v553 = vld [vmem:[%s538 + $0x70] sm:$0xff]
      %v554 = vld [vmem:[%s538 + $0x78] sm:$0xff]
      %v571 = vunpack.c.l.b16 %v539
      %v572 = vunpack.c.h.b16 %v539
      %v573 = vunpack.c.l.b16 %v540
      %v574 = vunpack.c.h.b16 %v540
      %v575 = vunpack.c.l.b16 %v541
      %v576 = vunpack.c.h.b16 %v541
      %v577 = vunpack.c.l.b16 %v542
      %v578 = vunpack.c.h.b16 %v542
      %v579 = vunpack.c.l.b16 %v543
      %v580 = vunpack.c.h.b16 %v543
      %v581 = vunpack.c.l.b16 %v544
      %v582 = vunpack.c.h.b16 %v544
      %v583 = vunpack.c.l.b16 %v545
      %v584 = vunpack.c.h.b16 %v545
      %v585 = vunpack.c.l.b16 %v546
      %v586 = vunpack.c.h.b16 %v546
      %v587 = vunpack.c.l.b16 %v547
      %v588 = vunpack.c.h.b16 %v547
      %v589 = vunpack.c.l.b16 %v548
      %v590 = vunpack.c.h.b16 %v548
      %v591 = vunpack.c.l.b16 %v549
      %v592 = vunpack.c.h.b16 %v549
      %v593 = vunpack.c.l.b16 %v550
      %v594 = vunpack.c.h.b16 %v550
      %v595 = vunpack.c.l.b16 %v551
      %v596 = vunpack.c.h.b16 %v551
      %v597 = vunpack.c.l.b16 %v552
      %v598 = vunpack.c.h.b16 %v552
      %v599 = vunpack.c.l.b16 %v553
      %v600 = vunpack.c.h.b16 %v553
      %v601 = vunpack.c.l.b16 %v554
      %v602 = vunpack.c.h.b16 %v554
      %v603 = vpack.c.b16 %v573, %v571
      %v604 = vpack.c.b16 %v574, %v572
      %v605 = vpack.c.b16 %v577, %v575
      %v606 = vpack.c.b16 %v578, %v576
      %v607 = vpack.c.b16 %v581, %v579
      %v608 = vpack.c.b16 %v582, %v580
      %v609 = vpack.c.b16 %v585, %v583
      %v610 = vpack.c.b16 %v586, %v584
      %v611 = vpack.c.b16 %v589, %v587
      %v612 = vpack.c.b16 %v590, %v588
      %v613 = vpack.c.b16 %v593, %v591
      %v614 = vpack.c.b16 %v594, %v592
      %v615 = vpack.c.b16 %v597, %v595
      %v616 = vpack.c.b16 %v598, %v596
      %v617 = vpack.c.b16 %v601, %v599
      %v618 = vpack.c.b16 %v602, %v600
      %635 = vmatprep.subr.bf16.mxu0 %v604
      %636 = vmatpush1.bf16.msra.mxu0 %v603
      %637 = vmatprep.subr.bf16.mxu0 %v606
      %638 = vmatpush1.bf16.msra.mxu0 %v605
      %639 = vmatprep.subr.bf16.mxu0 %v608
      %640 = vmatpush1.bf16.msra.mxu0 %v607
      %641 = vmatprep.subr.bf16.mxu0 %v610
      %642 = vmatpush1.bf16.msra.mxu0 %v609
      %643 = vmatprep.subr.bf16.mxu0 %v612
      %644 = vmatpush1.bf16.msra.mxu0 %v611
      %645 = vmatprep.subr.bf16.mxu0 %v614
      %646 = vmatpush1.bf16.msra.mxu0 %v613
      %647 = vmatprep.subr.bf16.mxu0 %v616
      %648 = vmatpush1.bf16.msra.mxu0 %v615
      %649 = vmatprep.subr.bf16.mxu0 %v618
      %650 = vmatpush1.bf16.msra.mxu0 %v617
      %651 = vmatprep.subr.bf16.mxu0 0
      %652 = vmatpush1.bf16.msra.mxu0 0
      %653 = vmatprep.subr.bf16.mxu0 0
      %654 = vmatpush1.bf16.msra.mxu0 0
      %655 = vmatprep.subr.bf16.mxu0 0
      %656 = vmatpush1.bf16.msra.mxu0 0
      %657 = vmatprep.subr.bf16.mxu0 0
      %658 = vmatpush1.bf16.msra.mxu0 0
      %659 = vmatprep.subr.bf16.mxu0 0
      %660 = vmatpush1.bf16.msra.mxu0 0
      %661 = vmatprep.subr.bf16.mxu0 0
      %662 = vmatpush1.bf16.msra.mxu0 0
      %663 = vmatprep.subr.bf16.mxu0 0
      %664 = vmatpush1.bf16.msra.mxu0 0
      %665 = vmatprep.subr.bf16.mxu0 0
      %666 = vmatpush1.bf16.msra.mxu0 0
      %667 = vmatprep.mubr.bf16.mxu0 0
      %668 = vmatmul.mubr.bf16.gmra.mrb[0].mxu0 %v537
      %v669 = vpop.f32.mrb[0].mxu0
      %v670 = vadd.f32 0.0, %v669
      %v671 = vpop.f32.mrb[0].mxu0
      %v672 = vadd.f32 0.0, %v671
      %v673 = vpop.f32.mrb[0].mxu0
      %v674 = vadd.f32 0.0, %v673
      %v675 = vpop.f32.mrb[0].mxu0
      %v676 = vadd.f32 0.0, %v675
      %677 = vdwg.mxu0
      %v694 = vunpack.c.l.b16 %v519
      %v695 = vunpack.c.h.b16 %v519
      %v696 = vunpack.c.l.b16 %v520
      %v697 = vunpack.c.h.b16 %v520
      %v698 = vunpack.c.l.b16 %v521
      %v699 = vunpack.c.h.b16 %v521
      %v700 = vunpack.c.l.b16 %v522
      %v701 = vunpack.c.h.b16 %v522
      %v702 = vunpack.c.l.b16 %v523
      %v703 = vunpack.c.h.b16 %v523
      %v704 = vunpack.c.l.b16 %v524
      %v705 = vunpack.c.h.b16 %v524
      %v706 = vunpack.c.l.b16 %v525
      %v707 = vunpack.c.h.b16 %v525
      %v708 = vunpack.c.l.b16 %v526
      %v709 = vunpack.c.h.b16 %v526
      %v710 = vunpack.c.l.b16 %v527
      %v711 = vunpack.c.h.b16 %v527
      %v712 = vunpack.c.l.b16 %v528
      %v713 = vunpack.c.h.b16 %v528
      %v714 = vunpack.c.l.b16 %v529
      %v715 = vunpack.c.h.b16 %v529
      %v716 = vunpack.c.l.b16 %v530
      %v717 = vunpack.c.h.b16 %v530
      %v718 = vunpack.c.l.b16 %v531
      %v719 = vunpack.c.h.b16 %v531
      %v720 = vunpack.c.l.b16 %v532
      %v721 = vunpack.c.h.b16 %v532
      %v722 = vunpack.c.l.b16 %v533
      %v723 = vunpack.c.h.b16 %v533
      %v724 = vunpack.c.l.b16 %v534
      %v725 = vunpack.c.h.b16 %v534
      %v726 = vpack.c.b16 %v696, %v694
      %v727 = vpack.c.b16 %v697, %v695
      %v728 = vpack.c.b16 %v700, %v698
      %v729 = vpack.c.b16 %v701, %v699
      %v730 = vpack.c.b16 %v704, %v702
      %v731 = vpack.c.b16 %v705, %v703
      %v732 = vpack.c.b16 %v708, %v706
      %v733 = vpack.c.b16 %v709, %v707
      %v734 = vpack.c.b16 %v712, %v710
      %v735 = vpack.c.b16 %v713, %v711
      %v736 = vpack.c.b16 %v716, %v714
      %v737 = vpack.c.b16 %v717, %v715
      %v738 = vpack.c.b16 %v720, %v718
      %v739 = vpack.c.b16 %v721, %v719
      %v740 = vpack.c.b16 %v724, %v722
      %v741 = vpack.c.b16 %v725, %v723
      %758 = vmatprep.subr.bf16.mxu0 %v727
      %759 = vmatpush1.bf16.msra.mxu0 %v726
      %760 = vmatprep.subr.bf16.mxu0 %v729
      %761 = vmatpush1.bf16.msra.mxu0 %v728
      %762 = vmatprep.subr.bf16.mxu0 %v731
      %763 = vmatpush1.bf16.msra.mxu0 %v730
      %764 = vmatprep.subr.bf16.mxu0 %v733
      %765 = vmatpush1.bf16.msra.mxu0 %v732
      %766 = vmatprep.subr.bf16.mxu0 %v735
      %767 = vmatpush1.bf16.msra.mxu0 %v734
      %768 = vmatprep.subr.bf16.mxu0 %v737
      %769 = vmatpush1.bf16.msra.mxu0 %v736
      %770 = vmatprep.subr.bf16.mxu0 %v739
      %771 = vmatpush1.bf16.msra.mxu0 %v738
      %772 = vmatprep.subr.bf16.mxu0 %v741
      %773 = vmatpush1.bf16.msra.mxu0 %v740
      %774 = vmatprep.subr.bf16.mxu0 0
      %775 = vmatpush1.bf16.msra.mxu0 0
      %776 = vmatprep.subr.bf16.mxu0 0
      %777 = vmatpush1.bf16.msra.mxu0 0
      %778 = vmatprep.subr.bf16.mxu0 0
      %779 = vmatpush1.bf16.msra.mxu0 0
      %780 = vmatprep.subr.bf16.mxu0 0
      %781 = vmatpush1.bf16.msra.mxu0 0
      %782 = vmatprep.subr.bf16.mxu0 0
      %783 = vmatpush1.bf16.msra.mxu0 0
      %784 = vmatprep.subr.bf16.mxu0 0
      %785 = vmatpush1.bf16.msra.mxu0 0
      %786 = vmatprep.subr.bf16.mxu0 0
      %787 = vmatpush1.bf16.msra.mxu0 0
      %788 = vmatprep.subr.bf16.mxu0 0
      %789 = vmatpush1.bf16.msra.mxu0 0
      %790 = vmatprep.mubr.bf16.mxu0 0
      %791 = vmatmul.mubr.bf16.gmra.mrb[0].mxu0 %v518
      %v792 = vpop.f32.mrb[0].mxu0
      %v793 = vadd.f32 %v670, %v792
      %v794 = vpop.f32.mrb[0].mxu0
      %v795 = vadd.f32 %v672, %v794
      %v796 = vpop.f32.mrb[0].mxu0
      %v797 = vadd.f32 %v674, %v796
      %v798 = vpop.f32.mrb[0].mxu0
      %v799 = vadd.f32 %v676, %v798
      %800 = vdwg.mxu0
      %v801 = vld [vmem:[%s504 + $0x2] sm:$0xff]
      %v802 = vld [vmem:[%s504 + $0xa] sm:$0xff]
      %v803 = vpack.c.bf16 %v802, %v801
      %s804 = scalar_lea.vmem %s3, 256
      %v805 = vld [vmem:[%s804] sm:$0xff]
      %v806 = vld [vmem:[%s804 + $0x8] sm:$0xff]
      %v807 = vld [vmem:[%s804 + $0x10] sm:$0xff]
      %v808 = vld [vmem:[%s804 + $0x18] sm:$0xff]
      %v809 = vld [vmem:[%s804 + $0x20] sm:$0xff]
      %v810 = vld [vmem:[%s804 + $0x28] sm:$0xff]
      %v811 = vld [vmem:[%s804 + $0x30] sm:$0xff]
      %v812 = vld [vmem:[%s804 + $0x38] sm:$0xff]
      %v813 = vld [vmem:[%s804 + $0x40] sm:$0xff]
      %v814 = vld [vmem:[%s804 + $0x48] sm:$0xff]
      %v815 = vld [vmem:[%s804 + $0x50] sm:$0xff]
      %v816 = vld [vmem:[%s804 + $0x58] sm:$0xff]
      %v817 = vld [vmem:[%s804 + $0x60] sm:$0xff]
      %v818 = vld [vmem:[%s804 + $0x68] sm:$0xff]
      %v819 = vld [vmem:[%s804 + $0x70] sm:$0xff]
      %v820 = vld [vmem:[%s804 + $0x78] sm:$0xff]
      %v837 = vunpack.c.l.b16 %v805
      %v838 = vunpack.c.h.b16 %v805
      %v839 = vunpack.c.l.b16 %v806
      %v840 = vunpack.c.h.b16 %v806
      %v841 = vunpack.c.l.b16 %v807
      %v842 = vunpack.c.h.b16 %v807
      %v843 = vunpack.c.l.b16 %v808
      %v844 = vunpack.c.h.b16 %v808
      %v845 = vunpack.c.l.b16 %v809
      %v846 = vunpack.c.h.b16 %v809
      %v847 = vunpack.c.l.b16 %v810
      %v848 = vunpack.c.h.b16 %v810
      %v849 = vunpack.c.l.b16 %v811
      %v850 = vunpack.c.h.b16 %v811
      %v851 = vunpack.c.l.b16 %v812
      %v852 = vunpack.c.h.b16 %v812
      %v853 = vunpack.c.l.b16 %v813
      %v854 = vunpack.c.h.b16 %v813
      %v855 = vunpack.c.l.b16 %v814
      %v856 = vunpack.c.h.b16 %v814
      %v857 = vunpack.c.l.b16 %v815
      %v858 = vunpack.c.h.b16 %v815
      %v859 = vunpack.c.l.b16 %v816
      %v860 = vunpack.c.h.b16 %v816
      %v861 = vunpack.c.l.b16 %v817
      %v862 = vunpack.c.h.b16 %v817
      %v863 = vunpack.c.l.b16 %v818
      %v864 = vunpack.c.h.b16 %v818
      %v865 = vunpack.c.l.b16 %v819
      %v866 = vunpack.c.h.b16 %v819
      %v867 = vunpack.c.l.b16 %v820
      %v868 = vunpack.c.h.b16 %v820
      %v869 = vpack.c.b16 %v839, %v837
      %v870 = vpack.c.b16 %v840, %v838
      %v871 = vpack.c.b16 %v843, %v841
      %v872 = vpack.c.b16 %v844, %v842
      %v873 = vpack.c.b16 %v847, %v845
      %v874 = vpack.c.b16 %v848, %v846
      %v875 = vpack.c.b16 %v851, %v849
      %v876 = vpack.c.b16 %v852, %v850
      %v877 = vpack.c.b16 %v855, %v853
      %v878 = vpack.c.b16 %v856, %v854
      %v879 = vpack.c.b16 %v859, %v857
      %v880 = vpack.c.b16 %v860, %v858
      %v881 = vpack.c.b16 %v863, %v861
      %v882 = vpack.c.b16 %v864, %v862
      %v883 = vpack.c.b16 %v867, %v865
      %v884 = vpack.c.b16 %v868, %v866
      %901 = vmatprep.subr.bf16.mxu0 %v870
      %902 = vmatpush1.bf16.msra.mxu0 %v869
      %903 = vmatprep.subr.bf16.mxu0 %v872
      %904 = vmatpush1.bf16.msra.mxu0 %v871
      %905 = vmatprep.subr.bf16.mxu0 %v874
      %906 = vmatpush1.bf16.msra.mxu0 %v873
      %907 = vmatprep.subr.bf16.mxu0 %v876
      %908 = vmatpush1.bf16.msra.mxu0 %v875
      %909 = vmatprep.subr.bf16.mxu0 %v878
      %910 = vmatpush1.bf16.msra.mxu0 %v877
      %911 = vmatprep.subr.bf16.mxu0 %v880
      %912 = vmatpush1.bf16.msra.mxu0 %v879
      %913 = vmatprep.subr.bf16.mxu0 %v882
      %914 = vmatpush1.bf16.msra.mxu0 %v881
      %915 = vmatprep.subr.bf16.mxu0 %v884
      %916 = vmatpush1.bf16.msra.mxu0 %v883
      %917 = vmatprep.subr.bf16.mxu0 0
      %918 = vmatpush1.bf16.msra.mxu0 0
      %919 = vmatprep.subr.bf16.mxu0 0
      %920 = vmatpush1.bf16.msra.mxu0 0
      %921 = vmatprep.subr.bf16.mxu0 0
      %922 = vmatpush1.bf16.msra.mxu0 0
      %923 = vmatprep.subr.bf16.mxu0 0
      %924 = vmatpush1.bf16.msra.mxu0 0
      %925 = vmatprep.subr.bf16.mxu0 0
      %926 = vmatpush1.bf16.msra.mxu0 0
      %927 = vmatprep.subr.bf16.mxu0 0
      %928 = vmatpush1.bf16.msra.mxu0 0
      %929 = vmatprep.subr.bf16.mxu0 0
      %930 = vmatpush1.bf16.msra.mxu0 0
      %931 = vmatprep.subr.bf16.mxu0 0
      %932 = vmatpush1.bf16.msra.mxu0 0
      %933 = vmatprep.mubr.bf16.mxu0 0
      %934 = vmatmul.mubr.bf16.gmra.mrb[0].mxu0 %v803
      %v935 = vpop.f32.mrb[0].mxu0
      %v936 = vadd.f32 0.0, %v935
      %v937 = vpop.f32.mrb[0].mxu0
      %v938 = vadd.f32 0.0, %v937
      %v939 = vpop.f32.mrb[0].mxu0
      %v940 = vadd.f32 0.0, %v939
      %v941 = vpop.f32.mrb[0].mxu0
      %v942 = vadd.f32 0.0, %v941
      %943 = vdwg.mxu0
      %v944 = vadd.f32 %v793, %v936
      %v945 = vadd.f32 %v795, %v938
      %v946 = vadd.f32 %v797, %v940
      %v947 = vadd.f32 %v799, %v942
      %v948 = vld [vmem:[%s4] sm:$0x3]
      %v950 = vlaneseq
      %v951 = vshrl.u32 %v950, 7
      %v952 = vsub.s32 0, %v951
      %v953 = vrot.slane %v948, %v952
      %v954 = vlaneseq
      %v955 = vshrl.u32 %v954, 7
      %v956 = vsub.s32 1, %v955
      %v957 = vrot.slane %v948, %v956
      %v960 = vadd.f32 %v944, %v953
      %v961 = vadd.f32 %v945, %v957
      %v962 = vadd.f32 %v946, %v953
      %v963 = vadd.f32 %v947, %v957
      %v964 = vmin.f32 %v960, 30.0
      %v965 = vmin.f32 %v961, 30.0
      %v966 = vmin.f32 %v962, 30.0
      %v967 = vmin.f32 %v963, 30.0
      %v968 = vmul.f32 %v964, 1.442695
      %v969 = vpow.pop %v968
      %v970 = vmul.f32 %v965, 1.442695
      %v971 = vpow.pop %v970
      %v972 = vmul.f32 %v966, 1.442695
      %v973 = vpow.pop %v972
      %v974 = vmul.f32 %v967, 1.442695
      %v975 = vpow.pop %v974
      %v976 = vadd.f32 %v969, 1.0
      %v977 = vadd.f32 %v971, 1.0
      %v978 = vadd.f32 %v973, 1.0
      %v979 = vadd.f32 %v975, 1.0
      %v980 = vmul.f32 %v976, %v976
      %v981 = vmul.f32 %v977, %v977
      %v982 = vmul.f32 %v978, %v978
      %v983 = vmul.f32 %v979, %v979
      %v984 = vadd.f32 %v980, 1.0
      %v985 = vadd.f32 %v981, 1.0
      %v986 = vadd.f32 %v982, 1.0
      %v987 = vadd.f32 %v983, 1.0
      %v988 = vrcp.pop %v984
      %v989 = vrcp.pop %v985
      %v990 = vrcp.pop %v986
      %v991 = vrcp.pop %v987
      %v992 = vmul.f32 %v988, 2.0
      %v993 = vmul.f32 %v989, 2.0
      %v994 = vmul.f32 %v990, 2.0
      %v995 = vmul.f32 %v991, 2.0
      %v996 = vsub.f32 1.0, %v992
      %v997 = vsub.f32 1.0, %v993
      %v998 = vsub.f32 1.0, %v994
      %v999 = vsub.f32 1.0, %v995
      %v1000 = vmul.f32 %v960, %v996
      %v1001 = vmul.f32 %v961, %v997
      %v1002 = vmul.f32 %v962, %v998
      %v1003 = vmul.f32 %v963, %v999
      %v1004 = vlaneseq
      %vm1005 = vcmp.ge.s32.totalorder %v1004, 0
      %vm1006 = vcmp.lt.s32.totalorder %v1004, 256
      %vm1007 = vmand %vm1005, %vm1006
      %1008 = vst.msk [vmem:[#allocation2] ss:$8 sm:$0x3] %vm1007, 0.0
      %1009 = vst.msk [vmem:[#allocation2] ss:$8 sm:$0x0] %vm1007, 0.0
      %s1010 = scalar_lea.vmem [#allocation2], 33
      %1011 = vst.msk [vmem:[%s1010] ss:$8 sm:$0x3] %vm1007, 0.0
      %1012 = vst.msk [vmem:[%s1010] ss:$8 sm:$0x0] %vm1007, 0.0
      %vm1017 = vcmask 1040384
      %v1018 = vrot.slane %v1000, 7
      %v1019 = vrot.slane %v1001, 7
      %v1020 = vrot.slane %v1002, 7
      %v1021 = vsel %vm1017, %v1018, %v1020
      %v1022 = vrot.slane %v1003, 7
      %v1023 = vsel %vm1017, %v1019, %v1022
      %1030 = vst [vmem:[#allocation2] sm:$0xfe] %v1018
      %1031 = vst [vmem:[#allocation2 + $0x8] sm:$0xfe] %v1019
      %1032 = vst [vmem:[#allocation2 + $0x10] sm:$0xff] %v1021
      %1033 = vst [vmem:[#allocation2 + $0x18] sm:$0xff] %v1023
      %1034 = vst [vmem:[#allocation2 + $0x20] sm:$0x1] %v1020
      %1035 = vst [vmem:[#allocation2 + $0x28] sm:$0x1] %v1022
      %v1036 = vld [vmem:[#allocation2] sm:$0xff]
      %v1037 = vld [vmem:[#allocation2 + $0x8] sm:$0xff]
      %v1038 = vld [vmem:[#allocation2 + $0x10] sm:$0xff]
      %v1039 = vld [vmem:[#allocation2 + $0x18] sm:$0xff]
      %v1040 = vpack.c.bf16 %v1038, %v1036
      %v1041 = vpack.c.bf16 %v1039, %v1037
      %v1042 = vld [vmem:[%s5] sm:$0xff]
      %v1043 = vld [vmem:[%s5 + $0x8] sm:$0xff]
      %v1044 = vld [vmem:[%s5 + $0x10] sm:$0xff]
      %v1045 = vld [vmem:[%s5 + $0x18] sm:$0xff]
      %v1046 = vld [vmem:[%s5 + $0x20] sm:$0xff]
      %v1047 = vld [vmem:[%s5 + $0x28] sm:$0xff]
      %v1048 = vld [vmem:[%s5 + $0x30] sm:$0xff]
      %v1049 = vld [vmem:[%s5 + $0x38] sm:$0xff]
      %v1050 = vld [vmem:[%s5 + $0x40] sm:$0xff]
      %v1051 = vld [vmem:[%s5 + $0x48] sm:$0xff]
      %v1052 = vld [vmem:[%s5 + $0x50] sm:$0xff]
      %v1053 = vld [vmem:[%s5 + $0x58] sm:$0xff]
      %v1054 = vld [vmem:[%s5 + $0x60] sm:$0xff]
      %v1055 = vld [vmem:[%s5 + $0x68] sm:$0xff]
      %v1056 = vld [vmem:[%s5 + $0x70] sm:$0xff]
      %v1057 = vld [vmem:[%s5 + $0x78] sm:$0xff]
      %v1058 = vld [vmem:[%s5 + $0x80] sm:$0xff]
      %v1059 = vld [vmem:[%s5 + $0x88] sm:$0xff]
      %v1060 = vld [vmem:[%s5 + $0x90] sm:$0xff]
      %v1061 = vld [vmem:[%s5 + $0x98] sm:$0xff]
      %v1062 = vld [vmem:[%s5 + $0xa0] sm:$0xff]
      %v1063 = vld [vmem:[%s5 + $0xa8] sm:$0xff]
      %v1064 = vld [vmem:[%s5 + $0xb0] sm:$0xff]
      %v1065 = vld [vmem:[%s5 + $0xb8] sm:$0xff]
      %v1066 = vld [vmem:[%s5 + $0xc0] sm:$0xff]
      %v1067 = vld [vmem:[%s5 + $0xc8] sm:$0xff]
      %v1068 = vld [vmem:[%s5 + $0xd0] sm:$0xff]
      %v1069 = vld [vmem:[%s5 + $0xd8] sm:$0xff]
      %v1070 = vld [vmem:[%s5 + $0xe0] sm:$0xff]
      %v1071 = vld [vmem:[%s5 + $0xe8] sm:$0xff]
      %v1072 = vld [vmem:[%s5 + $0xf0] sm:$0xff]
      %v1073 = vld [vmem:[%s5 + $0xf8] sm:$0xff]
      %v1074 = vld [vmem:[#allocation2] sm:$0xfe]
      %v1075 = vld [vmem:[#allocation2 + $0x8] sm:$0xfe]
      %v1076 = vld [vmem:[#allocation2 + $0x20] sm:$0x1]
      %v1077 = vld [vmem:[#allocation2 + $0x28] sm:$0x1]
      %v1078 = vpack.c.bf16 %v1038, %v1074
      %v1079 = vpack.c.bf16 %v1039, %v1075
      %v1080 = vpack.c.bf16 %v1076, %v1076
      %v1081 = vpack.c.bf16 %v1077, %v1077
      %s1082 = scalar_lea.vmem %s5, 256
      %v1083 = vld [vmem:[%s1082] sm:$0xff]
      %v1084 = vld [vmem:[%s1082 + $0x8] sm:$0xff]
      %v1085 = vld [vmem:[%s1082 + $0x10] sm:$0xff]
      %v1086 = vld [vmem:[%s1082 + $0x18] sm:$0xff]
      %v1087 = vld [vmem:[%s1082 + $0x20] sm:$0xff]
      %v1088 = vld [vmem:[%s1082 + $0x28] sm:$0xff]
      %v1089 = vld [vmem:[%s1082 + $0x30] sm:$0xff]
      %v1090 = vld [vmem:[%s1082 + $0x38] sm:$0xff]
      %v1091 = vld [vmem:[%s1082 + $0x40] sm:$0xff]
      %v1092 = vld [vmem:[%s1082 + $0x48] sm:$0xff]
      %v1093 = vld [vmem:[%s1082 + $0x50] sm:$0xff]
      %v1094 = vld [vmem:[%s1082 + $0x58] sm:$0xff]
      %v1095 = vld [vmem:[%s1082 + $0x60] sm:$0xff]
      %v1096 = vld [vmem:[%s1082 + $0x68] sm:$0xff]
      %v1097 = vld [vmem:[%s1082 + $0x70] sm:$0xff]
      %v1098 = vld [vmem:[%s1082 + $0x78] sm:$0xff]
      %v1099 = vld [vmem:[%s1082 + $0x80] sm:$0xff]
      %v1100 = vld [vmem:[%s1082 + $0x88] sm:$0xff]
      %v1101 = vld [vmem:[%s1082 + $0x90] sm:$0xff]
      %v1102 = vld [vmem:[%s1082 + $0x98] sm:$0xff]
      %v1103 = vld [vmem:[%s1082 + $0xa0] sm:$0xff]
      %v1104 = vld [vmem:[%s1082 + $0xa8] sm:$0xff]
      %v1105 = vld [vmem:[%s1082 + $0xb0] sm:$0xff]
      %v1106 = vld [vmem:[%s1082 + $0xb8] sm:$0xff]
      %v1107 = vld [vmem:[%s1082 + $0xc0] sm:$0xff]
      %v1108 = vld [vmem:[%s1082 + $0xc8] sm:$0xff]
      %v1109 = vld [vmem:[%s1082 + $0xd0] sm:$0xff]
      %v1110 = vld [vmem:[%s1082 + $0xd8] sm:$0xff]
      %v1111 = vld [vmem:[%s1082 + $0xe0] sm:$0xff]
      %v1112 = vld [vmem:[%s1082 + $0xe8] sm:$0xff]
      %v1113 = vld [vmem:[%s1082 + $0xf0] sm:$0xff]
      %v1114 = vld [vmem:[%s1082 + $0xf8] sm:$0xff]
      %vm1115 = vsmask.f32 7424
      %v1117 = vshrl.u32 %v1078, 16
      %v1119 = vshll.u32 %v1078, 16
      %v1121 = vrot.slane %v1119, 1
      %v1122 = vor.u32 %v1117, %v1121
      %v1124 = vshll.u32 %v1080, 16
      %v1126 = vrot.slane %v1124, 1
      %v1127 = vsel %vm1115, %v1122, %v1126
      %v1129 = vshrl.u32 %v1079, 16
      %v1131 = vshll.u32 %v1079, 16
      %v1133 = vrot.slane %v1131, 1
      %v1134 = vor.u32 %v1129, %v1133
      %v1136 = vshll.u32 %v1081, 16
      %v1138 = vrot.slane %v1136, 1
      %v1139 = vsel %vm1115, %v1134, %v1138
      %v1174 = vunpack.c.l.b16 %v1083
      %v1175 = vunpack.c.h.b16 %v1083
      %v1176 = vunpack.c.l.b16 %v1084
      %v1177 = vunpack.c.h.b16 %v1084
      %v1178 = vunpack.c.l.b16 %v1085
      %v1179 = vunpack.c.h.b16 %v1085
      %v1180 = vunpack.c.l.b16 %v1086
      %v1181 = vunpack.c.h.b16 %v1086
      %v1182 = vunpack.c.l.b16 %v1087
      %v1183 = vunpack.c.h.b16 %v1087
      %v1184 = vunpack.c.l.b16 %v1088
      %v1185 = vunpack.c.h.b16 %v1088
      %v1186 = vunpack.c.l.b16 %v1089
      %v1187 = vunpack.c.h.b16 %v1089
      %v1188 = vunpack.c.l.b16 %v1090
      %v1189 = vunpack.c.h.b16 %v1090
      %v1190 = vunpack.c.l.b16 %v1091
      %v1191 = vunpack.c.h.b16 %v1091
      %v1192 = vunpack.c.l.b16 %v1092
      %v1193 = vunpack.c.h.b16 %v1092
      %v1194 = vunpack.c.l.b16 %v1093
      %v1195 = vunpack.c.h.b16 %v1093
      %v1196 = vunpack.c.l.b16 %v1094
      %v1197 = vunpack.c.h.b16 %v1094
      %v1198 = vunpack.c.l.b16 %v1095
      %v1199 = vunpack.c.h.b16 %v1095
      %v1200 = vunpack.c.l.b16 %v1096
      %v1201 = vunpack.c.h.b16 %v1096
      %v1202 = vunpack.c.l.b16 %v1097
      %v1203 = vunpack.c.h.b16 %v1097
      %v1204 = vunpack.c.l.b16 %v1098
      %v1205 = vunpack.c.h.b16 %v1098
      %v1206 = vunpack.c.l.b16 %v1099
      %v1207 = vunpack.c.h.b16 %v1099
      %v1208 = vunpack.c.l.b16 %v1100
      %v1209 = vunpack.c.h.b16 %v1100
      %v1210 = vunpack.c.l.b16 %v1101
      %v1211 = vunpack.c.h.b16 %v1101
      %v1212 = vunpack.c.l.b16 %v1102
      %v1213 = vunpack.c.h.b16 %v1102
      %v1214 = vunpack.c.l.b16 %v1103
      %v1215 = vunpack.c.h.b16 %v1103
      %v1216 = vunpack.c.l.b16 %v1104
      %v1217 = vunpack.c.h.b16 %v1104
      %v1218 = vunpack.c.l.b16 %v1105
      %v1219 = vunpack.c.h.b16 %v1105
      %v1220 = vunpack.c.l.b16 %v1106
      %v1221 = vunpack.c.h.b16 %v1106
      %v1222 = vunpack.c.l.b16 %v1107
      %v1223 = vunpack.c.h.b16 %v1107
      %v1224 = vunpack.c.l.b16 %v1108
      %v1225 = vunpack.c.h.b16 %v1108
      %v1226 = vunpack.c.l.b16 %v1109
      %v1227 = vunpack.c.h.b16 %v1109
      %v1228 = vunpack.c.l.b16 %v1110
      %v1229 = vunpack.c.h.b16 %v1110
      %v1230 = vunpack.c.l.b16 %v1111
      %v1231 = vunpack.c.h.b16 %v1111
      %v1232 = vunpack.c.l.b16 %v1112
      %v1233 = vunpack.c.h.b16 %v1112
      %v1234 = vunpack.c.l.b16 %v1113
      %v1235 = vunpack.c.h.b16 %v1113
      %v1236 = vunpack.c.l.b16 %v1114
      %v1237 = vunpack.c.h.b16 %v1114
      %v1238 = vpack.c.b16 %v1176, %v1174
      %v1239 = vpack.c.b16 %v1177, %v1175
      %v1240 = vpack.c.b16 %v1180, %v1178
      %v1241 = vpack.c.b16 %v1181, %v1179
      %v1242 = vpack.c.b16 %v1184, %v1182
      %v1243 = vpack.c.b16 %v1185, %v1183
      %v1244 = vpack.c.b16 %v1188, %v1186
      %v1245 = vpack.c.b16 %v1189, %v1187
      %v1246 = vpack.c.b16 %v1192, %v1190
      %v1247 = vpack.c.b16 %v1193, %v1191
      %v1248 = vpack.c.b16 %v1196, %v1194
      %v1249 = vpack.c.b16 %v1197, %v1195
      %v1250 = vpack.c.b16 %v1200, %v1198
      %v1251 = vpack.c.b16 %v1201, %v1199
      %v1252 = vpack.c.b16 %v1204, %v1202
      %v1253 = vpack.c.b16 %v1205, %v1203
      %v1254 = vpack.c.b16 %v1208, %v1206
      %v1255 = vpack.c.b16 %v1209, %v1207
      %v1256 = vpack.c.b16 %v1212, %v1210
      %v1257 = vpack.c.b16 %v1213, %v1211
      %v1258 = vpack.c.b16 %v1216, %v1214
      %v1259 = vpack.c.b16 %v1217, %v1215
      %v1260 = vpack.c.b16 %v1220, %v1218
      %v1261 = vpack.c.b16 %v1221, %v1219
      %v1262 = vpack.c.b16 %v1224, %v1222
      %v1263 = vpack.c.b16 %v1225, %v1223
      %v1264 = vpack.c.b16 %v1228, %v1226
      %v1265 = vpack.c.b16 %v1229, %v1227
      %v1266 = vpack.c.b16 %v1232, %v1230
      %v1267 = vpack.c.b16 %v1233, %v1231
      %v1268 = vpack.c.b16 %v1236, %v1234
      %v1269 = vpack.c.b16 %v1237, %v1235
      %1302 = vmatprep.subr.bf16.mxu0 %v1239
      %1303 = vmatpush1.bf16.msra.mxu0 %v1238
      %1304 = vmatprep.subr.bf16.mxu0 %v1241
      %1305 = vmatpush1.bf16.msra.mxu0 %v1240
      %1306 = vmatprep.subr.bf16.mxu0 %v1243
      %1307 = vmatpush1.bf16.msra.mxu0 %v1242
      %1308 = vmatprep.subr.bf16.mxu0 %v1245
      %1309 = vmatpush1.bf16.msra.mxu0 %v1244
      %1310 = vmatprep.subr.bf16.mxu0 %v1247
      %1311 = vmatpush1.bf16.msra.mxu0 %v1246
      %1312 = vmatprep.subr.bf16.mxu0 %v1249
      %1313 = vmatpush1.bf16.msra.mxu0 %v1248
      %1314 = vmatprep.subr.bf16.mxu0 %v1251
      %1315 = vmatpush1.bf16.msra.mxu0 %v1250
      %1316 = vmatprep.subr.bf16.mxu0 %v1253
      %1317 = vmatpush1.bf16.msra.mxu0 %v1252
      %1318 = vmatprep.subr.bf16.mxu0 %v1255
      %1319 = vmatpush1.bf16.msra.mxu0 %v1254
      %1320 = vmatprep.subr.bf16.mxu0 %v1257
      %1321 = vmatpush1.bf16.msra.mxu0 %v1256
      %1322 = vmatprep.subr.bf16.mxu0 %v1259
      %1323 = vmatpush1.bf16.msra.mxu0 %v1258
      %1324 = vmatprep.subr.bf16.mxu0 %v1261
      %1325 = vmatpush1.bf16.msra.mxu0 %v1260
      %1326 = vmatprep.subr.bf16.mxu0 %v1263
      %1327 = vmatpush1.bf16.msra.mxu0 %v1262
      %1328 = vmatprep.subr.bf16.mxu0 %v1265
      %1329 = vmatpush1.bf16.msra.mxu0 %v1264
      %1330 = vmatprep.subr.bf16.mxu0 %v1267
      %1331 = vmatpush1.bf16.msra.mxu0 %v1266
      %1332 = vmatprep.subr.bf16.mxu0 %v1269
      %1333 = vmatpush1.bf16.msra.mxu0 %v1268
      %1334 = vmatprep.mubr.bf16.mxu0 %v1139
      %1335 = vmatmul.mubr.bf16.gmra.mrb[0].mxu0 %v1127
      %v1336 = vpop.f32.mrb[0].mxu0
      %v1337 = vadd.f32 0.0, %v1336
      %v1338 = vpop.f32.mrb[0].mxu0
      %v1339 = vadd.f32 0.0, %v1338
      %v1340 = vpop.f32.mrb[0].mxu0
      %v1341 = vadd.f32 0.0, %v1340
      %v1342 = vpop.f32.mrb[0].mxu0
      %v1343 = vadd.f32 0.0, %v1342
      %1344 = vdwg.mxu0
      %v1377 = vunpack.c.l.b16 %v1042
      %v1378 = vunpack.c.h.b16 %v1042
      %v1379 = vunpack.c.l.b16 %v1043
      %v1380 = vunpack.c.h.b16 %v1043
      %v1381 = vunpack.c.l.b16 %v1044
      %v1382 = vunpack.c.h.b16 %v1044
      %v1383 = vunpack.c.l.b16 %v1045
      %v1384 = vunpack.c.h.b16 %v1045
      %v1385 = vunpack.c.l.b16 %v1046
      %v1386 = vunpack.c.h.b16 %v1046
      %v1387 = vunpack.c.l.b16 %v1047
      %v1388 = vunpack.c.h.b16 %v1047
      %v1389 = vunpack.c.l.b16 %v1048
      %v1390 = vunpack.c.h.b16 %v1048
      %v1391 = vunpack.c.l.b16 %v1049
      %v1392 = vunpack.c.h.b16 %v1049
      %v1393 = vunpack.c.l.b16 %v1050
      %v1394 = vunpack.c.h.b16 %v1050
      %v1395 = vunpack.c.l.b16 %v1051
      %v1396 = vunpack.c.h.b16 %v1051
      %v1397 = vunpack.c.l.b16 %v1052
      %v1398 = vunpack.c.h.b16 %v1052
      %v1399 = vunpack.c.l.b16 %v1053
      %v1400 = vunpack.c.h.b16 %v1053
      %v1401 = vunpack.c.l.b16 %v1054
      %v1402 = vunpack.c.h.b16 %v1054
      %v1403 = vunpack.c.l.b16 %v1055
      %v1404 = vunpack.c.h.b16 %v1055
      %v1405 = vunpack.c.l.b16 %v1056
      %v1406 = vunpack.c.h.b16 %v1056
      %v1407 = vunpack.c.l.b16 %v1057
      %v1408 = vunpack.c.h.b16 %v1057
      %v1409 = vunpack.c.l.b16 %v1058
      %v1410 = vunpack.c.h.b16 %v1058
      %v1411 = vunpack.c.l.b16 %v1059
      %v1412 = vunpack.c.h.b16 %v1059
      %v1413 = vunpack.c.l.b16 %v1060
      %v1414 = vunpack.c.h.b16 %v1060
      %v1415 = vunpack.c.l.b16 %v1061
      %v1416 = vunpack.c.h.b16 %v1061
      %v1417 = vunpack.c.l.b16 %v1062
      %v1418 = vunpack.c.h.b16 %v1062
      %v1419 = vunpack.c.l.b16 %v1063
      %v1420 = vunpack.c.h.b16 %v1063
      %v1421 = vunpack.c.l.b16 %v1064
      %v1422 = vunpack.c.h.b16 %v1064
      %v1423 = vunpack.c.l.b16 %v1065
      %v1424 = vunpack.c.h.b16 %v1065
      %v1425 = vunpack.c.l.b16 %v1066
      %v1426 = vunpack.c.h.b16 %v1066
      %v1427 = vunpack.c.l.b16 %v1067
      %v1428 = vunpack.c.h.b16 %v1067
      %v1429 = vunpack.c.l.b16 %v1068
      %v1430 = vunpack.c.h.b16 %v1068
      %v1431 = vunpack.c.l.b16 %v1069
      %v1432 = vunpack.c.h.b16 %v1069
      %v1433 = vunpack.c.l.b16 %v1070
      %v1434 = vunpack.c.h.b16 %v1070
      %v1435 = vunpack.c.l.b16 %v1071
      %v1436 = vunpack.c.h.b16 %v1071
      %v1437 = vunpack.c.l.b16 %v1072
      %v1438 = vunpack.c.h.b16 %v1072
      %v1439 = vunpack.c.l.b16 %v1073
      %v1440 = vunpack.c.h.b16 %v1073
      %v1441 = vpack.c.b16 %v1379, %v1377
      %v1442 = vpack.c.b16 %v1380, %v1378
      %v1443 = vpack.c.b16 %v1383, %v1381
      %v1444 = vpack.c.b16 %v1384, %v1382
      %v1445 = vpack.c.b16 %v1387, %v1385
      %v1446 = vpack.c.b16 %v1388, %v1386
      %v1447 = vpack.c.b16 %v1391, %v1389
      %v1448 = vpack.c.b16 %v1392, %v1390
      %v1449 = vpack.c.b16 %v1395, %v1393
      %v1450 = vpack.c.b16 %v1396, %v1394
      %v1451 = vpack.c.b16 %v1399, %v1397
      %v1452 = vpack.c.b16 %v1400, %v1398
      %v1453 = vpack.c.b16 %v1403, %v1401
      %v1454 = vpack.c.b16 %v1404, %v1402
      %v1455 = vpack.c.b16 %v1407, %v1405
      %v1456 = vpack.c.b16 %v1408, %v1406
      %v1457 = vpack.c.b16 %v1411, %v1409
      %v1458 = vpack.c.b16 %v1412, %v1410
      %v1459 = vpack.c.b16 %v1415, %v1413
      %v1460 = vpack.c.b16 %v1416, %v1414
      %v1461 = vpack.c.b16 %v1419, %v1417
      %v1462 = vpack.c.b16 %v1420, %v1418
      %v1463 = vpack.c.b16 %v1423, %v1421
      %v1464 = vpack.c.b16 %v1424, %v1422
      %v1465 = vpack.c.b16 %v1427, %v1425
      %v1466 = vpack.c.b16 %v1428, %v1426
      %v1467 = vpack.c.b16 %v1431, %v1429
      %v1468 = vpack.c.b16 %v1432, %v1430
      %v1469 = vpack.c.b16 %v1435, %v1433
      %v1470 = vpack.c.b16 %v1436, %v1434
      %v1471 = vpack.c.b16 %v1439, %v1437
      %v1472 = vpack.c.b16 %v1440, %v1438
      %1505 = vmatprep.subr.bf16.mxu0 %v1442
      %1506 = vmatpush1.bf16.msra.mxu0 %v1441
      %1507 = vmatprep.subr.bf16.mxu0 %v1444
      %1508 = vmatpush1.bf16.msra.mxu0 %v1443
      %1509 = vmatprep.subr.bf16.mxu0 %v1446
      %1510 = vmatpush1.bf16.msra.mxu0 %v1445
      %1511 = vmatprep.subr.bf16.mxu0 %v1448
      %1512 = vmatpush1.bf16.msra.mxu0 %v1447
      %1513 = vmatprep.subr.bf16.mxu0 %v1450
      %1514 = vmatpush1.bf16.msra.mxu0 %v1449
      %1515 = vmatprep.subr.bf16.mxu0 %v1452
      %1516 = vmatpush1.bf16.msra.mxu0 %v1451
      %1517 = vmatprep.subr.bf16.mxu0 %v1454
      %1518 = vmatpush1.bf16.msra.mxu0 %v1453
      %1519 = vmatprep.subr.bf16.mxu0 %v1456
      %1520 = vmatpush1.bf16.msra.mxu0 %v1455
      %1521 = vmatprep.subr.bf16.mxu0 %v1458
      %1522 = vmatpush1.bf16.msra.mxu0 %v1457
      %1523 = vmatprep.subr.bf16.mxu0 %v1460
      %1524 = vmatpush1.bf16.msra.mxu0 %v1459
      %1525 = vmatprep.subr.bf16.mxu0 %v1462
      %1526 = vmatpush1.bf16.msra.mxu0 %v1461
      %1527 = vmatprep.subr.bf16.mxu0 %v1464
      %1528 = vmatpush1.bf16.msra.mxu0 %v1463
      %1529 = vmatprep.subr.bf16.mxu0 %v1466
      %1530 = vmatpush1.bf16.msra.mxu0 %v1465
      %1531 = vmatprep.subr.bf16.mxu0 %v1468
      %1532 = vmatpush1.bf16.msra.mxu0 %v1467
      %1533 = vmatprep.subr.bf16.mxu0 %v1470
      %1534 = vmatpush1.bf16.msra.mxu0 %v1469
      %1535 = vmatprep.subr.bf16.mxu0 %v1472
      %1536 = vmatpush1.bf16.msra.mxu0 %v1471
      %1537 = vmatprep.mubr.bf16.mxu0 %v1041
      %1538 = vmatmul.mubr.bf16.gmra.mrb[0].mxu0 %v1040
      %v1539 = vpop.f32.mrb[0].mxu0
      %v1540 = vadd.f32 %v1337, %v1539
      %v1541 = vpop.f32.mrb[0].mxu0
      %v1542 = vadd.f32 %v1339, %v1541
      %v1543 = vpop.f32.mrb[0].mxu0
      %v1544 = vadd.f32 %v1341, %v1543
      %v1545 = vpop.f32.mrb[0].mxu0
      %v1546 = vadd.f32 %v1343, %v1545
      %1547 = vdwg.mxu0
      %v1548 = vld [vmem:[#allocation2] sm:$0xfc]
      %v1549 = vld [vmem:[#allocation2 + $0x8] sm:$0xfc]
      %v1550 = vld [vmem:[#allocation2 + $0x20] sm:$0x3]
      %v1551 = vld [vmem:[#allocation2 + $0x28] sm:$0x3]
      %v1552 = vpack.c.bf16 %v1038, %v1548
      %v1553 = vpack.c.bf16 %v1039, %v1549
      %v1554 = vpack.c.bf16 %v1550, %v1550
      %v1555 = vpack.c.bf16 %v1551, %v1551
      %s1556 = scalar_lea.vmem %s5, 512
      %v1557 = vld [vmem:[%s1556] sm:$0xff]
      %v1558 = vld [vmem:[%s1556 + $0x8] sm:$0xff]
      %v1559 = vld [vmem:[%s1556 + $0x10] sm:$0xff]
      %v1560 = vld [vmem:[%s1556 + $0x18] sm:$0xff]
      %v1561 = vld [vmem:[%s1556 + $0x20] sm:$0xff]
      %v1562 = vld [vmem:[%s1556 + $0x28] sm:$0xff]
      %v1563 = vld [vmem:[%s1556 + $0x30] sm:$0xff]
      %v1564 = vld [vmem:[%s1556 + $0x38] sm:$0xff]
      %v1565 = vld [vmem:[%s1556 + $0x40] sm:$0xff]
      %v1566 = vld [vmem:[%s1556 + $0x48] sm:$0xff]
      %v1567 = vld [vmem:[%s1556 + $0x50] sm:$0xff]
      %v1568 = vld [vmem:[%s1556 + $0x58] sm:$0xff]
      %v1569 = vld [vmem:[%s1556 + $0x60] sm:$0xff]
      %v1570 = vld [vmem:[%s1556 + $0x68] sm:$0xff]
      %v1571 = vld [vmem:[%s1556 + $0x70] sm:$0xff]
      %v1572 = vld [vmem:[%s1556 + $0x78] sm:$0xff]
      %v1573 = vld [vmem:[%s1556 + $0x80] sm:$0xff]
      %v1574 = vld [vmem:[%s1556 + $0x88] sm:$0xff]
      %v1575 = vld [vmem:[%s1556 + $0x90] sm:$0xff]
      %v1576 = vld [vmem:[%s1556 + $0x98] sm:$0xff]
      %v1577 = vld [vmem:[%s1556 + $0xa0] sm:$0xff]
      %v1578 = vld [vmem:[%s1556 + $0xa8] sm:$0xff]
      %v1579 = vld [vmem:[%s1556 + $0xb0] sm:$0xff]
      %v1580 = vld [vmem:[%s1556 + $0xb8] sm:$0xff]
      %v1581 = vld [vmem:[%s1556 + $0xc0] sm:$0xff]
      %v1582 = vld [vmem:[%s1556 + $0xc8] sm:$0xff]
      %v1583 = vld [vmem:[%s1556 + $0xd0] sm:$0xff]
      %v1584 = vld [vmem:[%s1556 + $0xd8] sm:$0xff]
      %v1585 = vld [vmem:[%s1556 + $0xe0] sm:$0xff]
      %v1586 = vld [vmem:[%s1556 + $0xe8] sm:$0xff]
      %v1587 = vld [vmem:[%s1556 + $0xf0] sm:$0xff]
      %v1588 = vld [vmem:[%s1556 + $0xf8] sm:$0xff]
      %vm1593 = vcmask 1046528
      %v1594 = vrot.slane %v1552, 1
      %v1595 = vrot.slane %v1554, 1
      %v1596 = vsel %vm1593, %v1594, %v1595
      %v1597 = vrot.slane %v1553, 1
      %v1598 = vrot.slane %v1555, 1
      %v1599 = vsel %vm1593, %v1597, %v1598
      %v1634 = vunpack.c.l.b16 %v1557
      %v1635 = vunpack.c.h.b16 %v1557
      %v1636 = vunpack.c.l.b16 %v1558
      %v1637 = vunpack.c.h.b16 %v1558
      %v1638 = vunpack.c.l.b16 %v1559
      %v1639 = vunpack.c.h.b16 %v1559
      %v1640 = vunpack.c.l.b16 %v1560
      %v1641 = vunpack.c.h.b16 %v1560
      %v1642 = vunpack.c.l.b16 %v1561
      %v1643 = vunpack.c.h.b16 %v1561
      %v1644 = vunpack.c.l.b16 %v1562
      %v1645 = vunpack.c.h.b16 %v1562
      %v1646 = vunpack.c.l.b16 %v1563
      %v1647 = vunpack.c.h.b16 %v1563
      %v1648 = vunpack.c.l.b16 %v1564
      %v1649 = vunpack.c.h.b16 %v1564
      %v1650 = vunpack.c.l.b16 %v1565
      %v1651 = vunpack.c.h.b16 %v1565
      %v1652 = vunpack.c.l.b16 %v1566
      %v1653 = vunpack.c.h.b16 %v1566
      %v1654 = vunpack.c.l.b16 %v1567
      %v1655 = vunpack.c.h.b16 %v1567
      %v1656 = vunpack.c.l.b16 %v1568
      %v1657 = vunpack.c.h.b16 %v1568
      %v1658 = vunpack.c.l.b16 %v1569
      %v1659 = vunpack.c.h.b16 %v1569
      %v1660 = vunpack.c.l.b16 %v1570
      %v1661 = vunpack.c.h.b16 %v1570
      %v1662 = vunpack.c.l.b16 %v1571
      %v1663 = vunpack.c.h.b16 %v1571
      %v1664 = vunpack.c.l.b16 %v1572
      %v1665 = vunpack.c.h.b16 %v1572
      %v1666 = vunpack.c.l.b16 %v1573
      %v1667 = vunpack.c.h.b16 %v1573
      %v1668 = vunpack.c.l.b16 %v1574
      %v1669 = vunpack.c.h.b16 %v1574
      %v1670 = vunpack.c.l.b16 %v1575
      %v1671 = vunpack.c.h.b16 %v1575
      %v1672 = vunpack.c.l.b16 %v1576
      %v1673 = vunpack.c.h.b16 %v1576
      %v1674 = vunpack.c.l.b16 %v1577
      %v1675 = vunpack.c.h.b16 %v1577
      %v1676 = vunpack.c.l.b16 %v1578
      %v1677 = vunpack.c.h.b16 %v1578
      %v1678 = vunpack.c.l.b16 %v1579
      %v1679 = vunpack.c.h.b16 %v1579
      %v1680 = vunpack.c.l.b16 %v1580
      %v1681 = vunpack.c.h.b16 %v1580
      %v1682 = vunpack.c.l.b16 %v1581
      %v1683 = vunpack.c.h.b16 %v1581
      %v1684 = vunpack.c.l.b16 %v1582
      %v1685 = vunpack.c.h.b16 %v1582
      %v1686 = vunpack.c.l.b16 %v1583
      %v1687 = vunpack.c.h.b16 %v1583
      %v1688 = vunpack.c.l.b16 %v1584
      %v1689 = vunpack.c.h.b16 %v1584
      %v1690 = vunpack.c.l.b16 %v1585
      %v1691 = vunpack.c.h.b16 %v1585
      %v1692 = vunpack.c.l.b16 %v1586
      %v1693 = vunpack.c.h.b16 %v1586
      %v1694 = vunpack.c.l.b16 %v1587
      %v1695 = vunpack.c.h.b16 %v1587
      %v1696 = vunpack.c.l.b16 %v1588
      %v1697 = vunpack.c.h.b16 %v1588
      %v1698 = vpack.c.b16 %v1636, %v1634
      %v1699 = vpack.c.b16 %v1637, %v1635
      %v1700 = vpack.c.b16 %v1640, %v1638
      %v1701 = vpack.c.b16 %v1641, %v1639
      %v1702 = vpack.c.b16 %v1644, %v1642
      %v1703 = vpack.c.b16 %v1645, %v1643
      %v1704 = vpack.c.b16 %v1648, %v1646
      %v1705 = vpack.c.b16 %v1649, %v1647
      %v1706 = vpack.c.b16 %v1652, %v1650
      %v1707 = vpack.c.b16 %v1653, %v1651
      %v1708 = vpack.c.b16 %v1656, %v1654
      %v1709 = vpack.c.b16 %v1657, %v1655
      %v1710 = vpack.c.b16 %v1660, %v1658
      %v1711 = vpack.c.b16 %v1661, %v1659
      %v1712 = vpack.c.b16 %v1664, %v1662
      %v1713 = vpack.c.b16 %v1665, %v1663
      %v1714 = vpack.c.b16 %v1668, %v1666
      %v1715 = vpack.c.b16 %v1669, %v1667
      %v1716 = vpack.c.b16 %v1672, %v1670
      %v1717 = vpack.c.b16 %v1673, %v1671
      %v1718 = vpack.c.b16 %v1676, %v1674
      %v1719 = vpack.c.b16 %v1677, %v1675
      %v1720 = vpack.c.b16 %v1680, %v1678
      %v1721 = vpack.c.b16 %v1681, %v1679
      %v1722 = vpack.c.b16 %v1684, %v1682
      %v1723 = vpack.c.b16 %v1685, %v1683
      %v1724 = vpack.c.b16 %v1688, %v1686
      %v1725 = vpack.c.b16 %v1689, %v1687
      %v1726 = vpack.c.b16 %v1692, %v1690
      %v1727 = vpack.c.b16 %v1693, %v1691
      %v1728 = vpack.c.b16 %v1696, %v1694
      %v1729 = vpack.c.b16 %v1697, %v1695
      %1762 = vmatprep.subr.bf16.mxu0 %v1699
      %1763 = vmatpush1.bf16.msra.mxu0 %v1698
      %1764 = vmatprep.subr.bf16.mxu0 %v1701
      %1765 = vmatpush1.bf16.msra.mxu0 %v1700
      %1766 = vmatprep.subr.bf16.mxu0 %v1703
      %1767 = vmatpush1.bf16.msra.mxu0 %v1702
      %1768 = vmatprep.subr.bf16.mxu0 %v1705
      %1769 = vmatpush1.bf16.msra.mxu0 %v1704
      %1770 = vmatprep.subr.bf16.mxu0 %v1707
      %1771 = vmatpush1.bf16.msra.mxu0 %v1706
      %1772 = vmatprep.subr.bf16.mxu0 %v1709
      %1773 = vmatpush1.bf16.msra.mxu0 %v1708
      %1774 = vmatprep.subr.bf16.mxu0 %v1711
      %1775 = vmatpush1.bf16.msra.mxu0 %v1710
      %1776 = vmatprep.subr.bf16.mxu0 %v1713
      %1777 = vmatpush1.bf16.msra.mxu0 %v1712
      %1778 = vmatprep.subr.bf16.mxu0 %v1715
      %1779 = vmatpush1.bf16.msra.mxu0 %v1714
      %1780 = vmatprep.subr.bf16.mxu0 %v1717
      %1781 = vmatpush1.bf16.msra.mxu0 %v1716
      %1782 = vmatprep.subr.bf16.mxu0 %v1719
      %1783 = vmatpush1.bf16.msra.mxu0 %v1718
      %1784 = vmatprep.subr.bf16.mxu0 %v1721
      %1785 = vmatpush1.bf16.msra.mxu0 %v1720
      %1786 = vmatprep.subr.bf16.mxu0 %v1723
      %1787 = vmatpush1.bf16.msra.mxu0 %v1722
      %1788 = vmatprep.subr.bf16.mxu0 %v1725
      %1789 = vmatpush1.bf16.msra.mxu0 %v1724
      %1790 = vmatprep.subr.bf16.mxu0 %v1727
      %1791 = vmatpush1.bf16.msra.mxu0 %v1726
      %1792 = vmatprep.subr.bf16.mxu0 %v1729
      %1793 = vmatpush1.bf16.msra.mxu0 %v1728
      %1794 = vmatprep.mubr.bf16.mxu0 %v1599
      %1795 = vmatmul.mubr.bf16.gmra.mrb[0].mxu0 %v1596
      %v1796 = vpop.f32.mrb[0].mxu0
      %v1797 = vadd.f32 0.0, %v1796
      %v1798 = vpop.f32.mrb[0].mxu0
      %v1799 = vadd.f32 0.0, %v1798
      %v1800 = vpop.f32.mrb[0].mxu0
      %v1801 = vadd.f32 0.0, %v1800
      %v1802 = vpop.f32.mrb[0].mxu0
      %v1803 = vadd.f32 0.0, %v1802
      %1804 = vdwg.mxu0
      %v1805 = vadd.f32 %v1540, %v1797
      %v1806 = vadd.f32 %v1542, %v1799
      %v1807 = vadd.f32 %v1544, %v1801
      %v1808 = vadd.f32 %v1546, %v1803
      %v1809 = vld [vmem:[%s7] sm:$0xff]
      %v1810 = vld [vmem:[%s6] sm:$0x3]
      %v1812 = vlaneseq
      %v1813 = vshrl.u32 %v1812, 7
      %v1814 = vsub.s32 0, %v1813
      %v1815 = vrot.slane %v1810, %v1814
      %v1816 = vlaneseq
      %v1817 = vshrl.u32 %v1816, 7
      %v1818 = vsub.s32 1, %v1817
      %v1819 = vrot.slane %v1810, %v1818
      %vm1822 = vcmask 130048
      %v1824 = vsel %vm1822, %v1809, 0
      %1826 = vmatprep.subr.mxu0 %v1806
      %1827 = vmatpush1.msra.mxu0 %v1805
      %1828 = vmatprep.subr.mxu0 %v1808
      %1829 = vmatpush1.msra.mxu0 %v1807
      %1830 = vmatprep.subr.mxu0 0.0
      %1831 = vmatpush1.msra.mxu0 0.0
      %1832 = vmatprep.subr.mxu0 0.0
      %1833 = vmatpush1.msra.mxu0 0.0
      %1834 = vmatprep.subr.mxu0 0.0
      %1835 = vmatpush1.msra.mxu0 0.0
      %1836 = vmatprep.subr.mxu0 0.0
      %1837 = vmatpush1.msra.mxu0 0.0
      %1838 = vmatprep.subr.mxu0 0.0
      %1839 = vmatpush1.msra.mxu0 0.0
      %1840 = vmatprep.subr.mxu0 0.0
      %1841 = vmatpush1.msra.mxu0 0.0
      %1842 = vmatprep.subr.mxu0 0.0
      %1843 = vmatpush1.msra.mxu0 0.0
      %1844 = vmatprep.subr.mxu0 0.0
      %1845 = vmatpush1.msra.mxu0 0.0
      %1846 = vmatprep.subr.mxu0 0.0
      %1847 = vmatpush1.msra.mxu0 0.0
      %1848 = vmatprep.subr.mxu0 0.0
      %1849 = vmatpush1.msra.mxu0 0.0
      %1850 = vmatprep.subr.mxu0 0.0
      %1851 = vmatpush1.msra.mxu0 0.0
      %1852 = vmatprep.subr.mxu0 0.0
      %1853 = vmatpush1.msra.mxu0 0.0
      %1854 = vmatprep.subr.mxu0 0.0
      %1855 = vmatpush1.msra.mxu0 0.0
      %1856 = vmatprep.subr.mxu0 0.0
      %1857 = vmatpush1.msra.mxu0 0.0
      %1858 = vmatprep.subr.mxu0 0.0
      %1859 = vmatpush1.msra.mxu0 0.0
      %1860 = vmatprep.subr.mxu0 0.0
      %1861 = vmatpush1.msra.mxu0 0.0
      %1862 = vmatprep.subr.mxu0 0.0
      %1863 = vmatpush1.msra.mxu0 0.0
      %1864 = vmatprep.subr.mxu0 0.0
      %1865 = vmatpush1.msra.mxu0 0.0
      %1866 = vmatprep.subr.mxu0 0.0
      %1867 = vmatpush1.msra.mxu0 0.0
      %1868 = vmatprep.subr.mxu0 0.0
      %1869 = vmatpush1.msra.mxu0 0.0
      %1870 = vmatprep.subr.mxu0 0.0
      %1871 = vmatpush1.msra.mxu0 0.0
      %1872 = vmatprep.subr.mxu0 0.0
      %1873 = vmatpush1.msra.mxu0 0.0
      %1874 = vmatprep.subr.mxu0 0.0
      %1875 = vmatpush1.msra.mxu0 0.0
      %1876 = vmatprep.subr.mxu0 0.0
      %1877 = vmatpush1.msra.mxu0 0.0
      %1878 = vmatprep.subr.mxu0 0.0
      %1879 = vmatpush1.msra.mxu0 0.0
      %1880 = vmatprep.subr.mxu0 0.0
      %1881 = vmatpush1.msra.mxu0 0.0
      %1882 = vmatprep.subr.mxu0 0.0
      %1883 = vmatpush1.msra.mxu0 0.0
      %1884 = vmatprep.subr.mxu0 0.0
      %1885 = vmatpush1.msra.mxu0 0.0
      %1886 = vmatprep.subr.mxu0 0.0
      %1887 = vmatpush1.msra.mxu0 0.0
      %1888 = vmatprep.subr.mxu0 0.0
      %1889 = vmatpush1.msra.mxu0 0.0
      %1890 = vmatprep.mubr.f32.mxu0 0.0
      %1891 = vmatmul.mubr.f32.gmra.mrb[0].mxu0 %v1824
      %v1892 = vpop.f32.mrb[0].mxu0
      %v1893 = vadd.f32 %v1815, %v1892
      %v1894 = vpop.f32.mrb[0].mxu0
      %v1895 = vadd.f32 %v1819, %v1894
      %1896 = vdwg.mxu0
      %v1897 = vmin.f32 %v1893, 30.0
      %v1898 = vmin.f32 %v1895, 30.0
      %v1899 = vmul.f32 %v1897, 1.442695
      %v1900 = vpow.pop %v1899
      %v1901 = vmul.f32 %v1898, 1.442695
      %v1902 = vpow.pop %v1901
      %v1903 = vadd.f32 %v1900, 1.0
      %v1904 = vadd.f32 %v1902, 1.0
      %v1905 = vmul.f32 %v1903, %v1903
      %v1906 = vmul.f32 %v1904, %v1904
      %v1907 = vadd.f32 %v1905, 1.0
      %v1908 = vadd.f32 %v1906, 1.0
      %v1909 = vrcp.pop %v1907
      %v1910 = vrcp.pop %v1908
      %v1911 = vmul.f32 %v1909, 2.0
      %v1912 = vmul.f32 %v1910, 2.0
      %v1913 = vsub.f32 1.0, %v1911
      %v1914 = vsub.f32 1.0, %v1912
      %v1915 = vmul.f32 %v1893, %v1913
      %v1916 = vmul.f32 %v1895, %v1914
      %1917 = vst.msk [vmem:[#allocation3] ss:$8 sm:$0x3] %vm1007, 0.0
      %1918 = vst.msk [vmem:[#allocation3] ss:$8 sm:$0x0] %vm1007, 0.0
      %s1919 = scalar_lea.vmem [#allocation3], 17
      %1920 = vst.msk [vmem:[%s1919] ss:$8 sm:$0x3] %vm1007, 0.0
      %1921 = vst.msk [vmem:[%s1919] ss:$8 sm:$0x0] %vm1007, 0.0
      %v1924 = vrot.slane %v1915, 7
      %v1925 = vrot.slane %v1916, 7
      %1928 = vst [vmem:[#allocation3] sm:$0xfe] %v1924
      %1929 = vst [vmem:[#allocation3 + $0x8] sm:$0xfe] %v1925
      %1930 = vst [vmem:[#allocation3 + $0x10] sm:$0x1] %v1924
      %1931 = vst [vmem:[#allocation3 + $0x18] sm:$0x1] %v1925
      %v1932 = vld [vmem:[#allocation3] sm:$0xff]
      %v1933 = vld [vmem:[#allocation3 + $0x8] sm:$0xff]
      %v1934 = vpack.c.bf16 %v1932, %v1932
      %v1935 = vpack.c.bf16 %v1933, %v1933
      %v1936 = vld [vmem:[%s8] sm:$0xff]
      %v1937 = vld [vmem:[%s8 + $0x8] sm:$0xff]
      %v1938 = vld [vmem:[%s8 + $0x10] sm:$0xff]
      %v1939 = vld [vmem:[%s8 + $0x18] sm:$0xff]
      %v1940 = vld [vmem:[%s8 + $0x20] sm:$0xff]
      %v1941 = vld [vmem:[%s8 + $0x28] sm:$0xff]
      %v1942 = vld [vmem:[%s8 + $0x30] sm:$0xff]
      %v1943 = vld [vmem:[%s8 + $0x38] sm:$0xff]
      %v1944 = vld [vmem:[%s8 + $0x40] sm:$0xff]
      %v1945 = vld [vmem:[%s8 + $0x48] sm:$0xff]
      %v1946 = vld [vmem:[%s8 + $0x50] sm:$0xff]
      %v1947 = vld [vmem:[%s8 + $0x58] sm:$0xff]
      %v1948 = vld [vmem:[%s8 + $0x60] sm:$0xff]
      %v1949 = vld [vmem:[%s8 + $0x68] sm:$0xff]
      %v1950 = vld [vmem:[%s8 + $0x70] sm:$0xff]
      %v1951 = vld [vmem:[%s8 + $0x78] sm:$0xff]
      %v1952 = vld [vmem:[%s8 + $0x80] sm:$0xff]
      %v1953 = vld [vmem:[%s8 + $0x88] sm:$0xff]
      %v1954 = vld [vmem:[%s8 + $0x90] sm:$0xff]
      %v1955 = vld [vmem:[%s8 + $0x98] sm:$0xff]
      %v1956 = vld [vmem:[%s8 + $0xa0] sm:$0xff]
      %v1957 = vld [vmem:[%s8 + $0xa8] sm:$0xff]
      %v1958 = vld [vmem:[%s8 + $0xb0] sm:$0xff]
      %v1959 = vld [vmem:[%s8 + $0xb8] sm:$0xff]
      %v1960 = vld [vmem:[%s8 + $0xc0] sm:$0xff]
      %v1961 = vld [vmem:[%s8 + $0xc8] sm:$0xff]
      %v1962 = vld [vmem:[%s8 + $0xd0] sm:$0xff]
      %v1963 = vld [vmem:[%s8 + $0xd8] sm:$0xff]
      %v1964 = vld [vmem:[%s8 + $0xe0] sm:$0xff]
      %v1965 = vld [vmem:[%s8 + $0xe8] sm:$0xff]
      %v1966 = vld [vmem:[%s8 + $0xf0] sm:$0xff]
      %v1967 = vld [vmem:[%s8 + $0xf8] sm:$0xff]
      %v1968 = vld [vmem:[#allocation3] sm:$0xfe]
      %v1969 = vld [vmem:[#allocation3 + $0x8] sm:$0xfe]
      %v1970 = vld [vmem:[#allocation3 + $0x10] sm:$0x1]
      %v1971 = vld [vmem:[#allocation3 + $0x18] sm:$0x1]
      %v1972 = vpack.c.bf16 %v1970, %v1968
      %v1973 = vpack.c.bf16 %v1971, %v1969
      %s1974 = scalar_lea.vmem %s8, 256
      %v1975 = vld [vmem:[%s1974] sm:$0xff]
      %v1976 = vld [vmem:[%s1974 + $0x8] sm:$0xff]
      %v1977 = vld [vmem:[%s1974 + $0x10] sm:$0xff]
      %v1978 = vld [vmem:[%s1974 + $0x18] sm:$0xff]
      %v1979 = vld [vmem:[%s1974 + $0x20] sm:$0xff]
      %v1980 = vld [vmem:[%s1974 + $0x28] sm:$0xff]
      %v1981 = vld [vmem:[%s1974 + $0x30] sm:$0xff]
      %v1982 = vld [vmem:[%s1974 + $0x38] sm:$0xff]
      %v1983 = vld [vmem:[%s1974 + $0x40] sm:$0xff]
      %v1984 = vld [vmem:[%s1974 + $0x48] sm:$0xff]
      %v1985 = vld [vmem:[%s1974 + $0x50] sm:$0xff]
      %v1986 = vld [vmem:[%s1974 + $0x58] sm:$0xff]
      %v1987 = vld [vmem:[%s1974 + $0x60] sm:$0xff]
      %v1988 = vld [vmem:[%s1974 + $0x68] sm:$0xff]
      %v1989 = vld [vmem:[%s1974 + $0x70] sm:$0xff]
      %v1990 = vld [vmem:[%s1974 + $0x78] sm:$0xff]
      %v1991 = vld [vmem:[%s1974 + $0x80] sm:$0xff]
      %v1992 = vld [vmem:[%s1974 + $0x88] sm:$0xff]
      %v1993 = vld [vmem:[%s1974 + $0x90] sm:$0xff]
      %v1994 = vld [vmem:[%s1974 + $0x98] sm:$0xff]
      %v1995 = vld [vmem:[%s1974 + $0xa0] sm:$0xff]
      %v1996 = vld [vmem:[%s1974 + $0xa8] sm:$0xff]
      %v1997 = vld [vmem:[%s1974 + $0xb0] sm:$0xff]
      %v1998 = vld [vmem:[%s1974 + $0xb8] sm:$0xff]
      %v1999 = vld [vmem:[%s1974 + $0xc0] sm:$0xff]
      %v2000 = vld [vmem:[%s1974 + $0xc8] sm:$0xff]
      %v2001 = vld [vmem:[%s1974 + $0xd0] sm:$0xff]
      %v2002 = vld [vmem:[%s1974 + $0xd8] sm:$0xff]
      %v2003 = vld [vmem:[%s1974 + $0xe0] sm:$0xff]
      %v2004 = vld [vmem:[%s1974 + $0xe8] sm:$0xff]
      %v2005 = vld [vmem:[%s1974 + $0xf0] sm:$0xff]
      %v2006 = vld [vmem:[%s1974 + $0xf8] sm:$0xff]
      %v2008 = vshrl.u32 %v1972, 16
      %v2010 = vshll.u32 %v1972, 16
      %v2012 = vrot.slane %v2010, 1
      %v2013 = vor.u32 %v2008, %v2012
      %v2015 = vshrl.u32 %v1973, 16
      %v2017 = vshll.u32 %v1973, 16
      %v2019 = vrot.slane %v2017, 1
      %v2020 = vor.u32 %v2015, %v2019
      %v2055 = vunpack.c.l.b16 %v1975
      %v2056 = vunpack.c.h.b16 %v1975
      %v2057 = vunpack.c.l.b16 %v1976
      %v2058 = vunpack.c.h.b16 %v1976
      %v2059 = vunpack.c.l.b16 %v1977
      %v2060 = vunpack.c.h.b16 %v1977
      %v2061 = vunpack.c.l.b16 %v1978
      %v2062 = vunpack.c.h.b16 %v1978
      %v2063 = vunpack.c.l.b16 %v1979
      %v2064 = vunpack.c.h.b16 %v1979
      %v2065 = vunpack.c.l.b16 %v1980
      %v2066 = vunpack.c.h.b16 %v1980
      %v2067 = vunpack.c.l.b16 %v1981
      %v2068 = vunpack.c.h.b16 %v1981
      %v2069 = vunpack.c.l.b16 %v1982
      %v2070 = vunpack.c.h.b16 %v1982
      %v2071 = vunpack.c.l.b16 %v1983
      %v2072 = vunpack.c.h.b16 %v1983
      %v2073 = vunpack.c.l.b16 %v1984
      %v2074 = vunpack.c.h.b16 %v1984
      %v2075 = vunpack.c.l.b16 %v1985
      %v2076 = vunpack.c.h.b16 %v1985
      %v2077 = vunpack.c.l.b16 %v1986
      %v2078 = vunpack.c.h.b16 %v1986
      %v2079 = vunpack.c.l.b16 %v1987
      %v2080 = vunpack.c.h.b16 %v1987
      %v2081 = vunpack.c.l.b16 %v1988
      %v2082 = vunpack.c.h.b16 %v1988
      %v2083 = vunpack.c.l.b16 %v1989
      %v2084 = vunpack.c.h.b16 %v1989
      %v2085 = vunpack.c.l.b16 %v1990
      %v2086 = vunpack.c.h.b16 %v1990
      %v2087 = vunpack.c.l.b16 %v1991
      %v2088 = vunpack.c.h.b16 %v1991
      %v2089 = vunpack.c.l.b16 %v1992
      %v2090 = vunpack.c.h.b16 %v1992
      %v2091 = vunpack.c.l.b16 %v1993
      %v2092 = vunpack.c.h.b16 %v1993
      %v2093 = vunpack.c.l.b16 %v1994
      %v2094 = vunpack.c.h.b16 %v1994
      %v2095 = vunpack.c.l.b16 %v1995
      %v2096 = vunpack.c.h.b16 %v1995
      %v2097 = vunpack.c.l.b16 %v1996
      %v2098 = vunpack.c.h.b16 %v1996
      %v2099 = vunpack.c.l.b16 %v1997
      %v2100 = vunpack.c.h.b16 %v1997
      %v2101 = vunpack.c.l.b16 %v1998
      %v2102 = vunpack.c.h.b16 %v1998
      %v2103 = vunpack.c.l.b16 %v1999
      %v2104 = vunpack.c.h.b16 %v1999
      %v2105 = vunpack.c.l.b16 %v2000
      %v2106 = vunpack.c.h.b16 %v2000
      %v2107 = vunpack.c.l.b16 %v2001
      %v2108 = vunpack.c.h.b16 %v2001
      %v2109 = vunpack.c.l.b16 %v2002
      %v2110 = vunpack.c.h.b16 %v2002
      %v2111 = vunpack.c.l.b16 %v2003
      %v2112 = vunpack.c.h.b16 %v2003
      %v2113 = vunpack.c.l.b16 %v2004
      %v2114 = vunpack.c.h.b16 %v2004
      %v2115 = vunpack.c.l.b16 %v2005
      %v2116 = vunpack.c.h.b16 %v2005
      %v2117 = vunpack.c.l.b16 %v2006
      %v2118 = vunpack.c.h.b16 %v2006
      %v2119 = vpack.c.b16 %v2057, %v2055
      %v2120 = vpack.c.b16 %v2058, %v2056
      %v2121 = vpack.c.b16 %v2061, %v2059
      %v2122 = vpack.c.b16 %v2062, %v2060
      %v2123 = vpack.c.b16 %v2065, %v2063
      %v2124 = vpack.c.b16 %v2066, %v2064
      %v2125 = vpack.c.b16 %v2069, %v2067
      %v2126 = vpack.c.b16 %v2070, %v2068
      %v2127 = vpack.c.b16 %v2073, %v2071
      %v2128 = vpack.c.b16 %v2074, %v2072
      %v2129 = vpack.c.b16 %v2077, %v2075
      %v2130 = vpack.c.b16 %v2078, %v2076
      %v2131 = vpack.c.b16 %v2081, %v2079
      %v2132 = vpack.c.b16 %v2082, %v2080
      %v2133 = vpack.c.b16 %v2085, %v2083
      %v2134 = vpack.c.b16 %v2086, %v2084
      %v2135 = vpack.c.b16 %v2089, %v2087
      %v2136 = vpack.c.b16 %v2090, %v2088
      %v2137 = vpack.c.b16 %v2093, %v2091
      %v2138 = vpack.c.b16 %v2094, %v2092
      %v2139 = vpack.c.b16 %v2097, %v2095
      %v2140 = vpack.c.b16 %v2098, %v2096
      %v2141 = vpack.c.b16 %v2101, %v2099
      %v2142 = vpack.c.b16 %v2102, %v2100
      %v2143 = vpack.c.b16 %v2105, %v2103
      %v2144 = vpack.c.b16 %v2106, %v2104
      %v2145 = vpack.c.b16 %v2109, %v2107
      %v2146 = vpack.c.b16 %v2110, %v2108
      %v2147 = vpack.c.b16 %v2113, %v2111
      %v2148 = vpack.c.b16 %v2114, %v2112
      %v2149 = vpack.c.b16 %v2117, %v2115
      %v2150 = vpack.c.b16 %v2118, %v2116
      %2183 = vmatprep.subr.bf16.mxu0 %v2120
      %2184 = vmatpush1.bf16.msra.mxu0 %v2119
      %2185 = vmatprep.subr.bf16.mxu0 %v2122
      %2186 = vmatpush1.bf16.msra.mxu0 %v2121
      %2187 = vmatprep.subr.bf16.mxu0 %v2124
      %2188 = vmatpush1.bf16.msra.mxu0 %v2123
      %2189 = vmatprep.subr.bf16.mxu0 %v2126
      %2190 = vmatpush1.bf16.msra.mxu0 %v2125
      %2191 = vmatprep.subr.bf16.mxu0 %v2128
      %2192 = vmatpush1.bf16.msra.mxu0 %v2127
      %2193 = vmatprep.subr.bf16.mxu0 %v2130
      %2194 = vmatpush1.bf16.msra.mxu0 %v2129
      %2195 = vmatprep.subr.bf16.mxu0 %v2132
      %2196 = vmatpush1.bf16.msra.mxu0 %v2131
      %2197 = vmatprep.subr.bf16.mxu0 %v2134
      %2198 = vmatpush1.bf16.msra.mxu0 %v2133
      %2199 = vmatprep.subr.bf16.mxu0 %v2136
      %2200 = vmatpush1.bf16.msra.mxu0 %v2135
      %2201 = vmatprep.subr.bf16.mxu0 %v2138
      %2202 = vmatpush1.bf16.msra.mxu0 %v2137
      %2203 = vmatprep.subr.bf16.mxu0 %v2140
      %2204 = vmatpush1.bf16.msra.mxu0 %v2139
      %2205 = vmatprep.subr.bf16.mxu0 %v2142
      %2206 = vmatpush1.bf16.msra.mxu0 %v2141
      %2207 = vmatprep.subr.bf16.mxu0 %v2144
      %2208 = vmatpush1.bf16.msra.mxu0 %v2143
      %2209 = vmatprep.subr.bf16.mxu0 %v2146
      %2210 = vmatpush1.bf16.msra.mxu0 %v2145
      %2211 = vmatprep.subr.bf16.mxu0 %v2148
      %2212 = vmatpush1.bf16.msra.mxu0 %v2147
      %2213 = vmatprep.subr.bf16.mxu0 %v2150
      %2214 = vmatpush1.bf16.msra.mxu0 %v2149
      %2215 = vmatprep.mubr.bf16.mxu0 %v2020
      %2216 = vmatmul.mubr.bf16.gmra.mrb[0].mxu0 %v2013
      %v2217 = vpop.f32.mrb[0].mxu0
      %v2218 = vadd.f32 0.0, %v2217
      %v2219 = vpop.f32.mrb[0].mxu0
      %v2220 = vadd.f32 0.0, %v2219
      %v2221 = vpop.f32.mrb[0].mxu0
      %v2222 = vpop.f32.mrb[0].mxu0
      %2223 = vdwg.mxu0
      %v2256 = vunpack.c.l.b16 %v1936
      %v2257 = vunpack.c.h.b16 %v1936
      %v2258 = vunpack.c.l.b16 %v1937
      %v2259 = vunpack.c.h.b16 %v1937
      %v2260 = vunpack.c.l.b16 %v1938
      %v2261 = vunpack.c.h.b16 %v1938
      %v2262 = vunpack.c.l.b16 %v1939
      %v2263 = vunpack.c.h.b16 %v1939
      %v2264 = vunpack.c.l.b16 %v1940
      %v2265 = vunpack.c.h.b16 %v1940
      %v2266 = vunpack.c.l.b16 %v1941
      %v2267 = vunpack.c.h.b16 %v1941
      %v2268 = vunpack.c.l.b16 %v1942
      %v2269 = vunpack.c.h.b16 %v1942
      %v2270 = vunpack.c.l.b16 %v1943
      %v2271 = vunpack.c.h.b16 %v1943
      %v2272 = vunpack.c.l.b16 %v1944
      %v2273 = vunpack.c.h.b16 %v1944
      %v2274 = vunpack.c.l.b16 %v1945
      %v2275 = vunpack.c.h.b16 %v1945
      %v2276 = vunpack.c.l.b16 %v1946
      %v2277 = vunpack.c.h.b16 %v1946
      %v2278 = vunpack.c.l.b16 %v1947
      %v2279 = vunpack.c.h.b16 %v1947
      %v2280 = vunpack.c.l.b16 %v1948
      %v2281 = vunpack.c.h.b16 %v1948
      %v2282 = vunpack.c.l.b16 %v1949
      %v2283 = vunpack.c.h.b16 %v1949
      %v2284 = vunpack.c.l.b16 %v1950
      %v2285 = vunpack.c.h.b16 %v1950
      %v2286 = vunpack.c.l.b16 %v1951
      %v2287 = vunpack.c.h.b16 %v1951
      %v2288 = vunpack.c.l.b16 %v1952
      %v2289 = vunpack.c.h.b16 %v1952
      %v2290 = vunpack.c.l.b16 %v1953
      %v2291 = vunpack.c.h.b16 %v1953
      %v2292 = vunpack.c.l.b16 %v1954
      %v2293 = vunpack.c.h.b16 %v1954
      %v2294 = vunpack.c.l.b16 %v1955
      %v2295 = vunpack.c.h.b16 %v1955
      %v2296 = vunpack.c.l.b16 %v1956
      %v2297 = vunpack.c.h.b16 %v1956
      %v2298 = vunpack.c.l.b16 %v1957
      %v2299 = vunpack.c.h.b16 %v1957
      %v2300 = vunpack.c.l.b16 %v1958
      %v2301 = vunpack.c.h.b16 %v1958
      %v2302 = vunpack.c.l.b16 %v1959
      %v2303 = vunpack.c.h.b16 %v1959
      %v2304 = vunpack.c.l.b16 %v1960
      %v2305 = vunpack.c.h.b16 %v1960
      %v2306 = vunpack.c.l.b16 %v1961
      %v2307 = vunpack.c.h.b16 %v1961
      %v2308 = vunpack.c.l.b16 %v1962
      %v2309 = vunpack.c.h.b16 %v1962
      %v2310 = vunpack.c.l.b16 %v1963
      %v2311 = vunpack.c.h.b16 %v1963
      %v2312 = vunpack.c.l.b16 %v1964
      %v2313 = vunpack.c.h.b16 %v1964
      %v2314 = vunpack.c.l.b16 %v1965
      %v2315 = vunpack.c.h.b16 %v1965
      %v2316 = vunpack.c.l.b16 %v1966
      %v2317 = vunpack.c.h.b16 %v1966
      %v2318 = vunpack.c.l.b16 %v1967
      %v2319 = vunpack.c.h.b16 %v1967
      %v2320 = vpack.c.b16 %v2258, %v2256
      %v2321 = vpack.c.b16 %v2259, %v2257
      %v2322 = vpack.c.b16 %v2262, %v2260
      %v2323 = vpack.c.b16 %v2263, %v2261
      %v2324 = vpack.c.b16 %v2266, %v2264
      %v2325 = vpack.c.b16 %v2267, %v2265
      %v2326 = vpack.c.b16 %v2270, %v2268
      %v2327 = vpack.c.b16 %v2271, %v2269
      %v2328 = vpack.c.b16 %v2274, %v2272
      %v2329 = vpack.c.b16 %v2275, %v2273
      %v2330 = vpack.c.b16 %v2278, %v2276
      %v2331 = vpack.c.b16 %v2279, %v2277
      %v2332 = vpack.c.b16 %v2282, %v2280
      %v2333 = vpack.c.b16 %v2283, %v2281
      %v2334 = vpack.c.b16 %v2286, %v2284
      %v2335 = vpack.c.b16 %v2287, %v2285
      %v2336 = vpack.c.b16 %v2290, %v2288
      %v2337 = vpack.c.b16 %v2291, %v2289
      %v2338 = vpack.c.b16 %v2294, %v2292
      %v2339 = vpack.c.b16 %v2295, %v2293
      %v2340 = vpack.c.b16 %v2298, %v2296
      %v2341 = vpack.c.b16 %v2299, %v2297
      %v2342 = vpack.c.b16 %v2302, %v2300
      %v2343 = vpack.c.b16 %v2303, %v2301
      %v2344 = vpack.c.b16 %v2306, %v2304
      %v2345 = vpack.c.b16 %v2307, %v2305
      %v2346 = vpack.c.b16 %v2310, %v2308
      %v2347 = vpack.c.b16 %v2311, %v2309
      %v2348 = vpack.c.b16 %v2314, %v2312
      %v2349 = vpack.c.b16 %v2315, %v2313
      %v2350 = vpack.c.b16 %v2318, %v2316
      %v2351 = vpack.c.b16 %v2319, %v2317
      %2384 = vmatprep.subr.bf16.mxu0 %v2321
      %2385 = vmatpush1.bf16.msra.mxu0 %v2320
      %2386 = vmatprep.subr.bf16.mxu0 %v2323
      %2387 = vmatpush1.bf16.msra.mxu0 %v2322
      %2388 = vmatprep.subr.bf16.mxu0 %v2325
      %2389 = vmatpush1.bf16.msra.mxu0 %v2324
      %2390 = vmatprep.subr.bf16.mxu0 %v2327
      %2391 = vmatpush1.bf16.msra.mxu0 %v2326
      %2392 = vmatprep.subr.bf16.mxu0 %v2329
      %2393 = vmatpush1.bf16.msra.mxu0 %v2328
      %2394 = vmatprep.subr.bf16.mxu0 %v2331
      %2395 = vmatpush1.bf16.msra.mxu0 %v2330
      %2396 = vmatprep.subr.bf16.mxu0 %v2333
      %2397 = vmatpush1.bf16.msra.mxu0 %v2332
      %2398 = vmatprep.subr.bf16.mxu0 %v2335
      %2399 = vmatpush1.bf16.msra.mxu0 %v2334
      %2400 = vmatprep.subr.bf16.mxu0 %v2337
      %2401 = vmatpush1.bf16.msra.mxu0 %v2336
      %2402 = vmatprep.subr.bf16.mxu0 %v2339
      %2403 = vmatpush1.bf16.msra.mxu0 %v2338
      %2404 = vmatprep.subr.bf16.mxu0 %v2341
      %2405 = vmatpush1.bf16.msra.mxu0 %v2340
      %2406 = vmatprep.subr.bf16.mxu0 %v2343
      %2407 = vmatpush1.bf16.msra.mxu0 %v2342
      %2408 = vmatprep.subr.bf16.mxu0 %v2345
      %2409 = vmatpush1.bf16.msra.mxu0 %v2344
      %2410 = vmatprep.subr.bf16.mxu0 %v2347
      %2411 = vmatpush1.bf16.msra.mxu0 %v2346
      %2412 = vmatprep.subr.bf16.mxu0 %v2349
      %2413 = vmatpush1.bf16.msra.mxu0 %v2348
      %2414 = vmatprep.subr.bf16.mxu0 %v2351
      %2415 = vmatpush1.bf16.msra.mxu0 %v2350
      %2416 = vmatprep.mubr.bf16.mxu0 %v1935
      %2417 = vmatmul.mubr.bf16.gmra.mrb[0].mxu0 %v1934
      %v2418 = vpop.f32.mrb[0].mxu0
      %v2419 = vadd.f32 %v2218, %v2418
      %v2420 = vpop.f32.mrb[0].mxu0
      %v2421 = vadd.f32 %v2220, %v2420
      %v2422 = vpop.f32.mrb[0].mxu0
      %v2423 = vpop.f32.mrb[0].mxu0
      %2424 = vdwg.mxu0
      %v2425 = vld [vmem:[#allocation3] sm:$0xfc]
      %v2426 = vld [vmem:[#allocation3 + $0x8] sm:$0xfc]
      %v2427 = vld [vmem:[#allocation3 + $0x10] sm:$0x3]
      %v2428 = vld [vmem:[#allocation3 + $0x18] sm:$0x3]
      %v2429 = vpack.c.bf16 %v2427, %v2425
      %v2430 = vpack.c.bf16 %v2428, %v2426
      %s2431 = scalar_lea.vmem %s8, 512
      %v2432 = vld [vmem:[%s2431] sm:$0xff]
      %v2433 = vld [vmem:[%s2431 + $0x8] sm:$0xff]
      %v2434 = vld [vmem:[%s2431 + $0x10] sm:$0xff]
      %v2435 = vld [vmem:[%s2431 + $0x18] sm:$0xff]
      %v2436 = vld [vmem:[%s2431 + $0x20] sm:$0xff]
      %v2437 = vld [vmem:[%s2431 + $0x28] sm:$0xff]
      %v2438 = vld [vmem:[%s2431 + $0x30] sm:$0xff]
      %v2439 = vld [vmem:[%s2431 + $0x38] sm:$0xff]
      %v2440 = vld [vmem:[%s2431 + $0x40] sm:$0xff]
      %v2441 = vld [vmem:[%s2431 + $0x48] sm:$0xff]
      %v2442 = vld [vmem:[%s2431 + $0x50] sm:$0xff]
      %v2443 = vld [vmem:[%s2431 + $0x58] sm:$0xff]
      %v2444 = vld [vmem:[%s2431 + $0x60] sm:$0xff]
      %v2445 = vld [vmem:[%s2431 + $0x68] sm:$0xff]
      %v2446 = vld [vmem:[%s2431 + $0x70] sm:$0xff]
      %v2447 = vld [vmem:[%s2431 + $0x78] sm:$0xff]
      %v2448 = vld [vmem:[%s2431 + $0x80] sm:$0xff]
      %v2449 = vld [vmem:[%s2431 + $0x88] sm:$0xff]
      %v2450 = vld [vmem:[%s2431 + $0x90] sm:$0xff]
      %v2451 = vld [vmem:[%s2431 + $0x98] sm:$0xff]
      %v2452 = vld [vmem:[%s2431 + $0xa0] sm:$0xff]
      %v2453 = vld [vmem:[%s2431 + $0xa8] sm:$0xff]
      %v2454 = vld [vmem:[%s2431 + $0xb0] sm:$0xff]
      %v2455 = vld [vmem:[%s2431 + $0xb8] sm:$0xff]
      %v2456 = vld [vmem:[%s2431 + $0xc0] sm:$0xff]
      %v2457 = vld [vmem:[%s2431 + $0xc8] sm:$0xff]
      %v2458 = vld [vmem:[%s2431 + $0xd0] sm:$0xff]
      %v2459 = vld [vmem:[%s2431 + $0xd8] sm:$0xff]
      %v2460 = vld [vmem:[%s2431 + $0xe0] sm:$0xff]
      %v2461 = vld [vmem:[%s2431 + $0xe8] sm:$0xff]
      %v2462 = vld [vmem:[%s2431 + $0xf0] sm:$0xff]
      %v2463 = vld [vmem:[%s2431 + $0xf8] sm:$0xff]
      %v2466 = vrot.slane %v2429, 1
      %v2467 = vrot.slane %v2430, 1
      %v2502 = vunpack.c.l.b16 %v2432
      %v2503 = vunpack.c.h.b16 %v2432
      %v2504 = vunpack.c.l.b16 %v2433
      %v2505 = vunpack.c.h.b16 %v2433
      %v2506 = vunpack.c.l.b16 %v2434
      %v2507 = vunpack.c.h.b16 %v2434
      %v2508 = vunpack.c.l.b16 %v2435
      %v2509 = vunpack.c.h.b16 %v2435
      %v2510 = vunpack.c.l.b16 %v2436
      %v2511 = vunpack.c.h.b16 %v2436
      %v2512 = vunpack.c.l.b16 %v2437
      %v2513 = vunpack.c.h.b16 %v2437
      %v2514 = vunpack.c.l.b16 %v2438
      %v2515 = vunpack.c.h.b16 %v2438
      %v2516 = vunpack.c.l.b16 %v2439
      %v2517 = vunpack.c.h.b16 %v2439
      %v2518 = vunpack.c.l.b16 %v2440
      %v2519 = vunpack.c.h.b16 %v2440
      %v2520 = vunpack.c.l.b16 %v2441
      %v2521 = vunpack.c.h.b16 %v2441
      %v2522 = vunpack.c.l.b16 %v2442
      %v2523 = vunpack.c.h.b16 %v2442
      %v2524 = vunpack.c.l.b16 %v2443
      %v2525 = vunpack.c.h.b16 %v2443
      %v2526 = vunpack.c.l.b16 %v2444
      %v2527 = vunpack.c.h.b16 %v2444
      %v2528 = vunpack.c.l.b16 %v2445
      %v2529 = vunpack.c.h.b16 %v2445
      %v2530 = vunpack.c.l.b16 %v2446
      %v2531 = vunpack.c.h.b16 %v2446
      %v2532 = vunpack.c.l.b16 %v2447
      %v2533 = vunpack.c.h.b16 %v2447
      %v2534 = vunpack.c.l.b16 %v2448
      %v2535 = vunpack.c.h.b16 %v2448
      %v2536 = vunpack.c.l.b16 %v2449
      %v2537 = vunpack.c.h.b16 %v2449
      %v2538 = vunpack.c.l.b16 %v2450
      %v2539 = vunpack.c.h.b16 %v2450
      %v2540 = vunpack.c.l.b16 %v2451
      %v2541 = vunpack.c.h.b16 %v2451
      %v2542 = vunpack.c.l.b16 %v2452
      %v2543 = vunpack.c.h.b16 %v2452
      %v2544 = vunpack.c.l.b16 %v2453
      %v2545 = vunpack.c.h.b16 %v2453
      %v2546 = vunpack.c.l.b16 %v2454
      %v2547 = vunpack.c.h.b16 %v2454
      %v2548 = vunpack.c.l.b16 %v2455
      %v2549 = vunpack.c.h.b16 %v2455
      %v2550 = vunpack.c.l.b16 %v2456
      %v2551 = vunpack.c.h.b16 %v2456
      %v2552 = vunpack.c.l.b16 %v2457
      %v2553 = vunpack.c.h.b16 %v2457
      %v2554 = vunpack.c.l.b16 %v2458
      %v2555 = vunpack.c.h.b16 %v2458
      %v2556 = vunpack.c.l.b16 %v2459
      %v2557 = vunpack.c.h.b16 %v2459
      %v2558 = vunpack.c.l.b16 %v2460
      %v2559 = vunpack.c.h.b16 %v2460
      %v2560 = vunpack.c.l.b16 %v2461
      %v2561 = vunpack.c.h.b16 %v2461
      %v2562 = vunpack.c.l.b16 %v2462
      %v2563 = vunpack.c.h.b16 %v2462
      %v2564 = vunpack.c.l.b16 %v2463
      %v2565 = vunpack.c.h.b16 %v2463
      %v2566 = vpack.c.b16 %v2504, %v2502
      %v2567 = vpack.c.b16 %v2505, %v2503
      %v2568 = vpack.c.b16 %v2508, %v2506
      %v2569 = vpack.c.b16 %v2509, %v2507
      %v2570 = vpack.c.b16 %v2512, %v2510
      %v2571 = vpack.c.b16 %v2513, %v2511
      %v2572 = vpack.c.b16 %v2516, %v2514
      %v2573 = vpack.c.b16 %v2517, %v2515
      %v2574 = vpack.c.b16 %v2520, %v2518
      %v2575 = vpack.c.b16 %v2521, %v2519
      %v2576 = vpack.c.b16 %v2524, %v2522
      %v2577 = vpack.c.b16 %v2525, %v2523
      %v2578 = vpack.c.b16 %v2528, %v2526
      %v2579 = vpack.c.b16 %v2529, %v2527
      %v2580 = vpack.c.b16 %v2532, %v2530
      %v2581 = vpack.c.b16 %v2533, %v2531
      %v2582 = vpack.c.b16 %v2536, %v2534
      %v2583 = vpack.c.b16 %v2537, %v2535
      %v2584 = vpack.c.b16 %v2540, %v2538
      %v2585 = vpack.c.b16 %v2541, %v2539
      %v2586 = vpack.c.b16 %v2544, %v2542
      %v2587 = vpack.c.b16 %v2545, %v2543
      %v2588 = vpack.c.b16 %v2548, %v2546
      %v2589 = vpack.c.b16 %v2549, %v2547
      %v2590 = vpack.c.b16 %v2552, %v2550
      %v2591 = vpack.c.b16 %v2553, %v2551
      %v2592 = vpack.c.b16 %v2556, %v2554
      %v2593 = vpack.c.b16 %v2557, %v2555
      %v2594 = vpack.c.b16 %v2560, %v2558
      %v2595 = vpack.c.b16 %v2561, %v2559
      %v2596 = vpack.c.b16 %v2564, %v2562
      %v2597 = vpack.c.b16 %v2565, %v2563
      %2630 = vmatprep.subr.bf16.mxu0 %v2567
      %2631 = vmatpush1.bf16.msra.mxu0 %v2566
      %2632 = vmatprep.subr.bf16.mxu0 %v2569
      %2633 = vmatpush1.bf16.msra.mxu0 %v2568
      %2634 = vmatprep.subr.bf16.mxu0 %v2571
      %2635 = vmatpush1.bf16.msra.mxu0 %v2570
      %2636 = vmatprep.subr.bf16.mxu0 %v2573
      %2637 = vmatpush1.bf16.msra.mxu0 %v2572
      %2638 = vmatprep.subr.bf16.mxu0 %v2575
      %2639 = vmatpush1.bf16.msra.mxu0 %v2574
      %2640 = vmatprep.subr.bf16.mxu0 %v2577
      %2641 = vmatpush1.bf16.msra.mxu0 %v2576
      %2642 = vmatprep.subr.bf16.mxu0 %v2579
      %2643 = vmatpush1.bf16.msra.mxu0 %v2578
      %2644 = vmatprep.subr.bf16.mxu0 %v2581
      %2645 = vmatpush1.bf16.msra.mxu0 %v2580
      %2646 = vmatprep.subr.bf16.mxu0 %v2583
      %2647 = vmatpush1.bf16.msra.mxu0 %v2582
      %2648 = vmatprep.subr.bf16.mxu0 %v2585
      %2649 = vmatpush1.bf16.msra.mxu0 %v2584
      %2650 = vmatprep.subr.bf16.mxu0 %v2587
      %2651 = vmatpush1.bf16.msra.mxu0 %v2586
      %2652 = vmatprep.subr.bf16.mxu0 %v2589
      %2653 = vmatpush1.bf16.msra.mxu0 %v2588
      %2654 = vmatprep.subr.bf16.mxu0 %v2591
      %2655 = vmatpush1.bf16.msra.mxu0 %v2590
      %2656 = vmatprep.subr.bf16.mxu0 %v2593
      %2657 = vmatpush1.bf16.msra.mxu0 %v2592
      %2658 = vmatprep.subr.bf16.mxu0 %v2595
      %2659 = vmatpush1.bf16.msra.mxu0 %v2594
      %2660 = vmatprep.subr.bf16.mxu0 %v2597
      %2661 = vmatpush1.bf16.msra.mxu0 %v2596
      %2662 = vmatprep.mubr.bf16.mxu0 %v2467
      %2663 = vmatmul.mubr.bf16.gmra.mrb[0].mxu0 %v2466
      %v2664 = vpop.f32.mrb[0].mxu0
      %v2665 = vadd.f32 0.0, %v2664
      %v2666 = vpop.f32.mrb[0].mxu0
      %v2667 = vadd.f32 0.0, %v2666
      %v2668 = vpop.f32.mrb[0].mxu0
      %v2669 = vpop.f32.mrb[0].mxu0
      %2670 = vdwg.mxu0
      %v2671 = vadd.f32 %v2419, %v2665
      %v2672 = vadd.f32 %v2421, %v2667
      %v2673 = vld [vmem:[%s9] sm:$0x3]
      %v2675 = vlaneseq
      %v2676 = vshrl.u32 %v2675, 7
      %v2677 = vsub.s32 0, %v2676
      %v2678 = vrot.slane %v2673, %v2677
      %v2679 = vlaneseq
      %v2680 = vshrl.u32 %v2679, 7
      %v2681 = vsub.s32 1, %v2680
      %v2682 = vrot.slane %v2673, %v2681
      %v2685 = vadd.f32 %v2671, %v2678
      %v2686 = vadd.f32 %v2672, %v2682
      %v2687 = vmin.f32 %v2685, 30.0
      %v2688 = vmin.f32 %v2686, 30.0
      %v2689 = vmul.f32 %v2687, 1.442695
      %v2690 = vpow.pop %v2689
      %v2691 = vmul.f32 %v2688, 1.442695
      %v2692 = vpow.pop %v2691
      %v2693 = vadd.f32 %v2690, 1.0
      %v2694 = vadd.f32 %v2692, 1.0
      %v2695 = vmul.f32 %v2693, %v2693
      %v2696 = vmul.f32 %v2694, %v2694
      %v2697 = vadd.f32 %v2695, 1.0
      %v2698 = vadd.f32 %v2696, 1.0
      %v2699 = vrcp.pop %v2697
      %v2700 = vrcp.pop %v2698
      %v2701 = vmul.f32 %v2699, 2.0
      %v2702 = vmul.f32 %v2700, 2.0
      %v2703 = vsub.f32 1.0, %v2701
      %v2704 = vsub.f32 1.0, %v2702
      %v2705 = vmul.f32 %v2685, %v2703
      %v2706 = vmul.f32 %v2686, %v2704
      %v2707 = vld [vmem:[%s10] sm:$0xf]
      %v2708 = vld [vmem:[%s10 + $0x4] sm:$0xf]
      %v2709 = vld [vmem:[%s10 + $0x8] sm:$0x1]
      %v2710 = vpack.c.bf16 %v2705, %v2705
      %v2711 = vpack.c.bf16 %v2706, %v2706
      %v2715 = vunpack.c.l.b16 %v2707
      %v2716 = vunpack.c.l.b16 %v2708
      %v2717 = vunpack.c.l.b16 %v2709
      %v2718 = vpack.c.b16 %v2716, %v2715
      %v2719 = vpack.c.b16 %v2717, %v2717
      %vm2720 = vcmask 64512
      %v2722 = vsel %vm2720, %v2718, 0
      %v2725 = vsel %vm2720, %v2719, 0
      %vm2727 = vcmask 1043456
      %v2729 = vsel %vm2727, %v2710, 0
      %v2732 = vsel %vm2727, %v2711, 0
      %2734 = vmatprep.subr.bf16.mxu0 %v2732
      %2735 = vmatpush1.bf16.msra.mxu0 %v2729
      %2736 = vmatprep.subr.bf16.mxu0 0
      %2737 = vmatpush1.bf16.msra.mxu0 0
      %2738 = vmatprep.subr.bf16.mxu0 0
      %2739 = vmatpush1.bf16.msra.mxu0 0
      %2740 = vmatprep.subr.bf16.mxu0 0
      %2741 = vmatpush1.bf16.msra.mxu0 0
      %2742 = vmatprep.subr.bf16.mxu0 0
      %2743 = vmatpush1.bf16.msra.mxu0 0
      %2744 = vmatprep.subr.bf16.mxu0 0
      %2745 = vmatpush1.bf16.msra.mxu0 0
      %2746 = vmatprep.subr.bf16.mxu0 0
      %2747 = vmatpush1.bf16.msra.mxu0 0
      %2748 = vmatprep.subr.bf16.mxu0 0
      %2749 = vmatpush1.bf16.msra.mxu0 0
      %2750 = vmatprep.subr.bf16.mxu0 0
      %2751 = vmatpush1.bf16.msra.mxu0 0
      %2752 = vmatprep.subr.bf16.mxu0 0
      %2753 = vmatpush1.bf16.msra.mxu0 0
      %2754 = vmatprep.subr.bf16.mxu0 0
      %2755 = vmatpush1.bf16.msra.mxu0 0
      %2756 = vmatprep.subr.bf16.mxu0 0
      %2757 = vmatpush1.bf16.msra.mxu0 0
      %2758 = vmatprep.subr.bf16.mxu0 0
      %2759 = vmatpush1.bf16.msra.mxu0 0
      %2760 = vmatprep.subr.bf16.mxu0 0
      %2761 = vmatpush1.bf16.msra.mxu0 0
      %2762 = vmatprep.subr.bf16.mxu0 0
      %2763 = vmatpush1.bf16.msra.mxu0 0
      %2764 = vmatprep.subr.bf16.mxu0 0
      %2765 = vmatpush1.bf16.msra.mxu0 0
      %2766 = vmatprep.mubr.bf16.mxu0 0
      %2767 = vmatmul.mubr.bf16.gmra.mrb[0].mxu0 %v2722
      %v2768 = vpop.f32.mrb[0].mxu0
      %v2769 = vadd.f32 0.0, %v2768
      %v2770 = vpop.f32.mrb[0].mxu0
      %v2771 = vadd.f32 0.0, %v2770
      %v2772 = vpop.f32.mrb[0].mxu0
      %v2773 = vadd.f32 0.0, %v2772
      %v2774 = vpop.f32.mrb[0].mxu0
      %v2775 = vadd.f32 0.0, %v2774
      %2776 = vmatprep.mubr.bf16.mxu0 0
      %2777 = vmatmul.mubr.bf16.gmra.mrb[0].mxu0 %v2725
      %v2778 = vpop.f32.mrb[0].mxu0
      %v2779 = vadd.f32 0.0, %v2778
      %v2780 = vpop.f32.mrb[0].mxu0
      %v2781 = vadd.f32 0.0, %v2780
      %v2782 = vpop.f32.mrb[0].mxu0
      %v2783 = vpop.f32.mrb[0].mxu0
      %2784 = vdwg.mxu0
      %2785 = vst [vmem:[#allocation4] sm:$0xff] %v2769
      %2786 = vst [vmem:[#allocation4 + $0x8] sm:$0xff] %v2771
      %2787 = vst [vmem:[#allocation4 + $0x10] sm:$0xff] %v2773
      %2788 = vst [vmem:[#allocation4 + $0x18] sm:$0xff] %v2775
      %2789 = vst [vmem:[#allocation4 + $0x20] sm:$0x3] %v2779
      %2790 = vst [vmem:[#allocation4 + $0x28] sm:$0x3] %v2781
      %v2791 = vld [vmem:[#allocation4] sm:$0xff]
      %v2792 = vld [vmem:[#allocation4 + $0x8] sm:$0xff]
      %v2793 = vld [vmem:[#allocation4 + $0x10] sm:$0xff]
      %v2794 = vld [vmem:[#allocation4 + $0x18] sm:$0xff]
      %v2795 = vpack.c.bf16 %v2793, %v2791
      %v2796 = vpack.c.bf16 %v2794, %v2792
      %v2797 = vld [vmem:[%s11] sm:$0xff]
      %v2798 = vld [vmem:[%s11 + $0x8] sm:$0xff]
      %v2799 = vld [vmem:[%s11 + $0x10] sm:$0xff]
      %v2800 = vld [vmem:[%s11 + $0x18] sm:$0xff]
      %v2801 = vld [vmem:[%s11 + $0x20] sm:$0xff]
      %v2802 = vld [vmem:[%s11 + $0x28] sm:$0xff]
      %v2803 = vld [vmem:[%s11 + $0x30] sm:$0xff]
      %v2804 = vld [vmem:[%s11 + $0x38] sm:$0xff]
      %v2805 = vld [vmem:[%s11 + $0x40] sm:$0xff]
      %v2806 = vld [vmem:[%s11 + $0x48] sm:$0xff]
      %v2807 = vld [vmem:[%s11 + $0x50] sm:$0xff]
      %v2808 = vld [vmem:[%s11 + $0x58] sm:$0xff]
      %v2809 = vld [vmem:[%s11 + $0x60] sm:$0xff]
      %v2810 = vld [vmem:[%s11 + $0x68] sm:$0xff]
      %v2811 = vld [vmem:[%s11 + $0x70] sm:$0xff]
      %v2812 = vld [vmem:[%s11 + $0x78] sm:$0xff]
      %v2813 = vld [vmem:[%s11 + $0x80] sm:$0xff]
      %v2814 = vld [vmem:[%s11 + $0x88] sm:$0xff]
      %v2815 = vld [vmem:[%s11 + $0x90] sm:$0xff]
      %v2816 = vld [vmem:[%s11 + $0x98] sm:$0xff]
      %v2817 = vld [vmem:[%s11 + $0xa0] sm:$0xff]
      %v2818 = vld [vmem:[%s11 + $0xa8] sm:$0xff]
      %v2819 = vld [vmem:[%s11 + $0xb0] sm:$0xff]
      %v2820 = vld [vmem:[%s11 + $0xb8] sm:$0xff]
      %v2821 = vld [vmem:[%s11 + $0xc0] sm:$0xff]
      %v2822 = vld [vmem:[%s11 + $0xc8] sm:$0xff]
      %v2823 = vld [vmem:[%s11 + $0xd0] sm:$0xff]
      %v2824 = vld [vmem:[%s11 + $0xd8] sm:$0xff]
      %v2825 = vld [vmem:[%s11 + $0xe0] sm:$0xff]
      %v2826 = vld [vmem:[%s11 + $0xe8] sm:$0xff]
      %v2827 = vld [vmem:[%s11 + $0xf0] sm:$0xff]
      %v2828 = vld [vmem:[%s11 + $0xf8] sm:$0xff]
      %v2829 = vld [vmem:[#allocation4] sm:$0xfe]
      %v2830 = vld [vmem:[#allocation4 + $0x8] sm:$0xfe]
      %v2831 = vld [vmem:[#allocation4 + $0x20] sm:$0x1]
      %v2832 = vld [vmem:[#allocation4 + $0x28] sm:$0x1]
      %v2833 = vpack.c.bf16 %v2793, %v2829
      %v2834 = vpack.c.bf16 %v2794, %v2830
      %v2835 = vpack.c.bf16 %v2831, %v2831
      %v2836 = vpack.c.bf16 %v2832, %v2832
      %s2837 = scalar_lea.vmem %s11, 256
      %v2838 = vld [vmem:[%s2837] sm:$0xff]
      %v2839 = vld [vmem:[%s2837 + $0x8] sm:$0xff]
      %v2840 = vld [vmem:[%s2837 + $0x10] sm:$0xff]
      %v2841 = vld [vmem:[%s2837 + $0x18] sm:$0xff]
      %v2842 = vld [vmem:[%s2837 + $0x20] sm:$0xff]
      %v2843 = vld [vmem:[%s2837 + $0x28] sm:$0xff]
      %v2844 = vld [vmem:[%s2837 + $0x30] sm:$0xff]
      %v2845 = vld [vmem:[%s2837 + $0x38] sm:$0xff]
      %v2846 = vld [vmem:[%s2837 + $0x40] sm:$0xff]
      %v2847 = vld [vmem:[%s2837 + $0x48] sm:$0xff]
      %v2848 = vld [vmem:[%s2837 + $0x50] sm:$0xff]
      %v2849 = vld [vmem:[%s2837 + $0x58] sm:$0xff]
      %v2850 = vld [vmem:[%s2837 + $0x60] sm:$0xff]
      %v2851 = vld [vmem:[%s2837 + $0x68] sm:$0xff]
      %v2852 = vld [vmem:[%s2837 + $0x70] sm:$0xff]
      %v2853 = vld [vmem:[%s2837 + $0x78] sm:$0xff]
      %v2854 = vld [vmem:[%s2837 + $0x80] sm:$0xff]
      %v2855 = vld [vmem:[%s2837 + $0x88] sm:$0xff]
      %v2856 = vld [vmem:[%s2837 + $0x90] sm:$0xff]
      %v2857 = vld [vmem:[%s2837 + $0x98] sm:$0xff]
      %v2858 = vld [vmem:[%s2837 + $0xa0] sm:$0xff]
      %v2859 = vld [vmem:[%s2837 + $0xa8] sm:$0xff]
      %v2860 = vld [vmem:[%s2837 + $0xb0] sm:$0xff]
      %v2861 = vld [vmem:[%s2837 + $0xb8] sm:$0xff]
      %v2862 = vld [vmem:[%s2837 + $0xc0] sm:$0xff]
      %v2863 = vld [vmem:[%s2837 + $0xc8] sm:$0xff]
      %v2864 = vld [vmem:[%s2837 + $0xd0] sm:$0xff]
      %v2865 = vld [vmem:[%s2837 + $0xd8] sm:$0xff]
      %v2866 = vld [vmem:[%s2837 + $0xe0] sm:$0xff]
      %v2867 = vld [vmem:[%s2837 + $0xe8] sm:$0xff]
      %v2868 = vld [vmem:[%s2837 + $0xf0] sm:$0xff]
      %v2869 = vld [vmem:[%s2837 + $0xf8] sm:$0xff]
      %v2871 = vshrl.u32 %v2833, 16
      %v2873 = vshll.u32 %v2833, 16
      %v2875 = vrot.slane %v2873, 1
      %v2876 = vor.u32 %v2871, %v2875
      %v2878 = vshll.u32 %v2835, 16
      %v2880 = vrot.slane %v2878, 1
      %v2881 = vsel %vm1115, %v2876, %v2880
      %v2883 = vshrl.u32 %v2834, 16
      %v2885 = vshll.u32 %v2834, 16
      %v2887 = vrot.slane %v2885, 1
      %v2888 = vor.u32 %v2883, %v2887
      %v2890 = vshll.u32 %v2836, 16
      %v2892 = vrot.slane %v2890, 1
      %v2893 = vsel %vm1115, %v2888, %v2892
      %v2928 = vunpack.c.l.b16 %v2838
      %v2929 = vunpack.c.h.b16 %v2838
      %v2930 = vunpack.c.l.b16 %v2839
      %v2931 = vunpack.c.h.b16 %v2839
      %v2932 = vunpack.c.l.b16 %v2840
      %v2933 = vunpack.c.h.b16 %v2840
      %v2934 = vunpack.c.l.b16 %v2841
      %v2935 = vunpack.c.h.b16 %v2841
      %v2936 = vunpack.c.l.b16 %v2842
      %v2937 = vunpack.c.h.b16 %v2842
      %v2938 = vunpack.c.l.b16 %v2843
      %v2939 = vunpack.c.h.b16 %v2843
      %v2940 = vunpack.c.l.b16 %v2844
      %v2941 = vunpack.c.h.b16 %v2844
      %v2942 = vunpack.c.l.b16 %v2845
      %v2943 = vunpack.c.h.b16 %v2845
      %v2944 = vunpack.c.l.b16 %v2846
      %v2945 = vunpack.c.h.b16 %v2846
      %v2946 = vunpack.c.l.b16 %v2847
      %v2947 = vunpack.c.h.b16 %v2847
      %v2948 = vunpack.c.l.b16 %v2848
      %v2949 = vunpack.c.h.b16 %v2848
      %v2950 = vunpack.c.l.b16 %v2849
      %v2951 = vunpack.c.h.b16 %v2849
      %v2952 = vunpack.c.l.b16 %v2850
      %v2953 = vunpack.c.h.b16 %v2850
      %v2954 = vunpack.c.l.b16 %v2851
      %v2955 = vunpack.c.h.b16 %v2851
      %v2956 = vunpack.c.l.b16 %v2852
      %v2957 = vunpack.c.h.b16 %v2852
      %v2958 = vunpack.c.l.b16 %v2853
      %v2959 = vunpack.c.h.b16 %v2853
      %v2960 = vunpack.c.l.b16 %v2854
      %v2961 = vunpack.c.h.b16 %v2854
      %v2962 = vunpack.c.l.b16 %v2855
      %v2963 = vunpack.c.h.b16 %v2855
      %v2964 = vunpack.c.l.b16 %v2856
      %v2965 = vunpack.c.h.b16 %v2856
      %v2966 = vunpack.c.l.b16 %v2857
      %v2967 = vunpack.c.h.b16 %v2857
      %v2968 = vunpack.c.l.b16 %v2858
      %v2969 = vunpack.c.h.b16 %v2858
      %v2970 = vunpack.c.l.b16 %v2859
      %v2971 = vunpack.c.h.b16 %v2859
      %v2972 = vunpack.c.l.b16 %v2860
      %v2973 = vunpack.c.h.b16 %v2860
      %v2974 = vunpack.c.l.b16 %v2861
      %v2975 = vunpack.c.h.b16 %v2861
      %v2976 = vunpack.c.l.b16 %v2862
      %v2977 = vunpack.c.h.b16 %v2862
      %v2978 = vunpack.c.l.b16 %v2863
      %v2979 = vunpack.c.h.b16 %v2863
      %v2980 = vunpack.c.l.b16 %v2864
      %v2981 = vunpack.c.h.b16 %v2864
      %v2982 = vunpack.c.l.b16 %v2865
      %v2983 = vunpack.c.h.b16 %v2865
      %v2984 = vunpack.c.l.b16 %v2866
      %v2985 = vunpack.c.h.b16 %v2866
      %v2986 = vunpack.c.l.b16 %v2867
      %v2987 = vunpack.c.h.b16 %v2867
      %v2988 = vunpack.c.l.b16 %v2868
      %v2989 = vunpack.c.h.b16 %v2868
      %v2990 = vunpack.c.l.b16 %v2869
      %v2991 = vunpack.c.h.b16 %v2869
      %v2992 = vpack.c.b16 %v2930, %v2928
      %v2993 = vpack.c.b16 %v2931, %v2929
      %v2994 = vpack.c.b16 %v2934, %v2932
      %v2995 = vpack.c.b16 %v2935, %v2933
      %v2996 = vpack.c.b16 %v2938, %v2936
      %v2997 = vpack.c.b16 %v2939, %v2937
      %v2998 = vpack.c.b16 %v2942, %v2940
      %v2999 = vpack.c.b16 %v2943, %v2941
      %v3000 = vpack.c.b16 %v2946, %v2944
      %v3001 = vpack.c.b16 %v2947, %v2945
      %v3002 = vpack.c.b16 %v2950, %v2948
      %v3003 = vpack.c.b16 %v2951, %v2949
      %v3004 = vpack.c.b16 %v2954, %v2952
      %v3005 = vpack.c.b16 %v2955, %v2953
      %v3006 = vpack.c.b16 %v2958, %v2956
      %v3007 = vpack.c.b16 %v2959, %v2957
      %v3008 = vpack.c.b16 %v2962, %v2960
      %v3009 = vpack.c.b16 %v2963, %v2961
      %v3010 = vpack.c.b16 %v2966, %v2964
      %v3011 = vpack.c.b16 %v2967, %v2965
      %v3012 = vpack.c.b16 %v2970, %v2968
      %v3013 = vpack.c.b16 %v2971, %v2969
      %v3014 = vpack.c.b16 %v2974, %v2972
      %v3015 = vpack.c.b16 %v2975, %v2973
      %v3016 = vpack.c.b16 %v2978, %v2976
      %v3017 = vpack.c.b16 %v2979, %v2977
      %v3018 = vpack.c.b16 %v2982, %v2980
      %v3019 = vpack.c.b16 %v2983, %v2981
      %v3020 = vpack.c.b16 %v2986, %v2984
      %v3021 = vpack.c.b16 %v2987, %v2985
      %v3022 = vpack.c.b16 %v2990, %v2988
      %v3023 = vpack.c.b16 %v2991, %v2989
      %3056 = vmatprep.subr.bf16.mxu0 %v2993
      %3057 = vmatpush1.bf16.msra.mxu0 %v2992
      %3058 = vmatprep.subr.bf16.mxu0 %v2995
      %3059 = vmatpush1.bf16.msra.mxu0 %v2994
      %3060 = vmatprep.subr.bf16.mxu0 %v2997
      %3061 = vmatpush1.bf16.msra.mxu0 %v2996
      %3062 = vmatprep.subr.bf16.mxu0 %v2999
      %3063 = vmatpush1.bf16.msra.mxu0 %v2998
      %3064 = vmatprep.subr.bf16.mxu0 %v3001
      %3065 = vmatpush1.bf16.msra.mxu0 %v3000
      %3066 = vmatprep.subr.bf16.mxu0 %v3003
      %3067 = vmatpush1.bf16.msra.mxu0 %v3002
      %3068 = vmatprep.subr.bf16.mxu0 %v3005
      %3069 = vmatpush1.bf16.msra.mxu0 %v3004
      %3070 = vmatprep.subr.bf16.mxu0 %v3007
      %3071 = vmatpush1.bf16.msra.mxu0 %v3006
      %3072 = vmatprep.subr.bf16.mxu0 %v3009
      %3073 = vmatpush1.bf16.msra.mxu0 %v3008
      %3074 = vmatprep.subr.bf16.mxu0 %v3011
      %3075 = vmatpush1.bf16.msra.mxu0 %v3010
      %3076 = vmatprep.subr.bf16.mxu0 %v3013
      %3077 = vmatpush1.bf16.msra.mxu0 %v3012
      %3078 = vmatprep.subr.bf16.mxu0 %v3015
      %3079 = vmatpush1.bf16.msra.mxu0 %v3014
      %3080 = vmatprep.subr.bf16.mxu0 %v3017
      %3081 = vmatpush1.bf16.msra.mxu0 %v3016
      %3082 = vmatprep.subr.bf16.mxu0 %v3019
      %3083 = vmatpush1.bf16.msra.mxu0 %v3018
      %3084 = vmatprep.subr.bf16.mxu0 %v3021
      %3085 = vmatpush1.bf16.msra.mxu0 %v3020
      %3086 = vmatprep.subr.bf16.mxu0 %v3023
      %3087 = vmatpush1.bf16.msra.mxu0 %v3022
      %3088 = vmatprep.mubr.bf16.mxu0 %v2893
      %3089 = vmatmul.mubr.bf16.gmra.mrb[0].mxu0 %v2881
      %v3090 = vpop.f32.mrb[0].mxu0
      %v3091 = vadd.f32 0.0, %v3090
      %v3092 = vpop.f32.mrb[0].mxu0
      %v3093 = vadd.f32 0.0, %v3092
      %v3094 = vpop.f32.mrb[0].mxu0
      %v3095 = vadd.f32 0.0, %v3094
      %v3096 = vpop.f32.mrb[0].mxu0
      %v3097 = vadd.f32 0.0, %v3096
      %3098 = vdwg.mxu0
      %v3131 = vunpack.c.l.b16 %v2797
      %v3132 = vunpack.c.h.b16 %v2797
      %v3133 = vunpack.c.l.b16 %v2798
      %v3134 = vunpack.c.h.b16 %v2798
      %v3135 = vunpack.c.l.b16 %v2799
      %v3136 = vunpack.c.h.b16 %v2799
      %v3137 = vunpack.c.l.b16 %v2800
      %v3138 = vunpack.c.h.b16 %v2800
      %v3139 = vunpack.c.l.b16 %v2801
      %v3140 = vunpack.c.h.b16 %v2801
      %v3141 = vunpack.c.l.b16 %v2802
      %v3142 = vunpack.c.h.b16 %v2802
      %v3143 = vunpack.c.l.b16 %v2803
      %v3144 = vunpack.c.h.b16 %v2803
      %v3145 = vunpack.c.l.b16 %v2804
      %v3146 = vunpack.c.h.b16 %v2804
      %v3147 = vunpack.c.l.b16 %v2805
      %v3148 = vunpack.c.h.b16 %v2805
      %v3149 = vunpack.c.l.b16 %v2806
      %v3150 = vunpack.c.h.b16 %v2806
      %v3151 = vunpack.c.l.b16 %v2807
      %v3152 = vunpack.c.h.b16 %v2807
      %v3153 = vunpack.c.l.b16 %v2808
      %v3154 = vunpack.c.h.b16 %v2808
      %v3155 = vunpack.c.l.b16 %v2809
      %v3156 = vunpack.c.h.b16 %v2809
      %v3157 = vunpack.c.l.b16 %v2810
      %v3158 = vunpack.c.h.b16 %v2810
      %v3159 = vunpack.c.l.b16 %v2811
      %v3160 = vunpack.c.h.b16 %v2811
      %v3161 = vunpack.c.l.b16 %v2812
      %v3162 = vunpack.c.h.b16 %v2812
      %v3163 = vunpack.c.l.b16 %v2813
      %v3164 = vunpack.c.h.b16 %v2813
      %v3165 = vunpack.c.l.b16 %v2814
      %v3166 = vunpack.c.h.b16 %v2814
      %v3167 = vunpack.c.l.b16 %v2815
      %v3168 = vunpack.c.h.b16 %v2815
      %v3169 = vunpack.c.l.b16 %v2816
      %v3170 = vunpack.c.h.b16 %v2816
      %v3171 = vunpack.c.l.b16 %v2817
      %v3172 = vunpack.c.h.b16 %v2817
      %v3173 = vunpack.c.l.b16 %v2818
      %v3174 = vunpack.c.h.b16 %v2818
      %v3175 = vunpack.c.l.b16 %v2819
      %v3176 = vunpack.c.h.b16 %v2819
      %v3177 = vunpack.c.l.b16 %v2820
      %v3178 = vunpack.c.h.b16 %v2820
      %v3179 = vunpack.c.l.b16 %v2821
      %v3180 = vunpack.c.h.b16 %v2821
      %v3181 = vunpack.c.l.b16 %v2822
      %v3182 = vunpack.c.h.b16 %v2822
      %v3183 = vunpack.c.l.b16 %v2823
      %v3184 = vunpack.c.h.b16 %v2823
      %v3185 = vunpack.c.l.b16 %v2824
      %v3186 = vunpack.c.h.b16 %v2824
      %v3187 = vunpack.c.l.b16 %v2825
      %v3188 = vunpack.c.h.b16 %v2825
      %v3189 = vunpack.c.l.b16 %v2826
      %v3190 = vunpack.c.h.b16 %v2826
      %v3191 = vunpack.c.l.b16 %v2827
      %v3192 = vunpack.c.h.b16 %v2827
      %v3193 = vunpack.c.l.b16 %v2828
      %v3194 = vunpack.c.h.b16 %v2828
      %v3195 = vpack.c.b16 %v3133, %v3131
      %v3196 = vpack.c.b16 %v3134, %v3132
      %v3197 = vpack.c.b16 %v3137, %v3135
      %v3198 = vpack.c.b16 %v3138, %v3136
      %v3199 = vpack.c.b16 %v3141, %v3139
      %v3200 = vpack.c.b16 %v3142, %v3140
      %v3201 = vpack.c.b16 %v3145, %v3143
      %v3202 = vpack.c.b16 %v3146, %v3144
      %v3203 = vpack.c.b16 %v3149, %v3147
      %v3204 = vpack.c.b16 %v3150, %v3148
      %v3205 = vpack.c.b16 %v3153, %v3151
      %v3206 = vpack.c.b16 %v3154, %v3152
      %v3207 = vpack.c.b16 %v3157, %v3155
      %v3208 = vpack.c.b16 %v3158, %v3156
      %v3209 = vpack.c.b16 %v3161, %v3159
      %v3210 = vpack.c.b16 %v3162, %v3160
      %v3211 = vpack.c.b16 %v3165, %v3163
      %v3212 = vpack.c.b16 %v3166, %v3164
      %v3213 = vpack.c.b16 %v3169, %v3167
      %v3214 = vpack.c.b16 %v3170, %v3168
      %v3215 = vpack.c.b16 %v3173, %v3171
      %v3216 = vpack.c.b16 %v3174, %v3172
      %v3217 = vpack.c.b16 %v3177, %v3175
      %v3218 = vpack.c.b16 %v3178, %v3176
      %v3219 = vpack.c.b16 %v3181, %v3179
      %v3220 = vpack.c.b16 %v3182, %v3180
      %v3221 = vpack.c.b16 %v3185, %v3183
      %v3222 = vpack.c.b16 %v3186, %v3184
      %v3223 = vpack.c.b16 %v3189, %v3187
      %v3224 = vpack.c.b16 %v3190, %v3188
      %v3225 = vpack.c.b16 %v3193, %v3191
      %v3226 = vpack.c.b16 %v3194, %v3192
      %3259 = vmatprep.subr.bf16.mxu0 %v3196
      %3260 = vmatpush1.bf16.msra.mxu0 %v3195
      %3261 = vmatprep.subr.bf16.mxu0 %v3198
      %3262 = vmatpush1.bf16.msra.mxu0 %v3197
      %3263 = vmatprep.subr.bf16.mxu0 %v3200
      %3264 = vmatpush1.bf16.msra.mxu0 %v3199
      %3265 = vmatprep.subr.bf16.mxu0 %v3202
      %3266 = vmatpush1.bf16.msra.mxu0 %v3201
      %3267 = vmatprep.subr.bf16.mxu0 %v3204
      %3268 = vmatpush1.bf16.msra.mxu0 %v3203
      %3269 = vmatprep.subr.bf16.mxu0 %v3206
      %3270 = vmatpush1.bf16.msra.mxu0 %v3205
      %3271 = vmatprep.subr.bf16.mxu0 %v3208
      %3272 = vmatpush1.bf16.msra.mxu0 %v3207
      %3273 = vmatprep.subr.bf16.mxu0 %v3210
      %3274 = vmatpush1.bf16.msra.mxu0 %v3209
      %3275 = vmatprep.subr.bf16.mxu0 %v3212
      %3276 = vmatpush1.bf16.msra.mxu0 %v3211
      %3277 = vmatprep.subr.bf16.mxu0 %v3214
      %3278 = vmatpush1.bf16.msra.mxu0 %v3213
      %3279 = vmatprep.subr.bf16.mxu0 %v3216
      %3280 = vmatpush1.bf16.msra.mxu0 %v3215
      %3281 = vmatprep.subr.bf16.mxu0 %v3218
      %3282 = vmatpush1.bf16.msra.mxu0 %v3217
      %3283 = vmatprep.subr.bf16.mxu0 %v3220
      %3284 = vmatpush1.bf16.msra.mxu0 %v3219
      %3285 = vmatprep.subr.bf16.mxu0 %v3222
      %3286 = vmatpush1.bf16.msra.mxu0 %v3221
      %3287 = vmatprep.subr.bf16.mxu0 %v3224
      %3288 = vmatpush1.bf16.msra.mxu0 %v3223
      %3289 = vmatprep.subr.bf16.mxu0 %v3226
      %3290 = vmatpush1.bf16.msra.mxu0 %v3225
      %3291 = vmatprep.mubr.bf16.mxu0 %v2796
      %3292 = vmatmul.mubr.bf16.gmra.mrb[0].mxu0 %v2795
      %v3293 = vpop.f32.mrb[0].mxu0
      %v3294 = vadd.f32 %v3091, %v3293
      %v3295 = vpop.f32.mrb[0].mxu0
      %v3296 = vadd.f32 %v3093, %v3295
      %v3297 = vpop.f32.mrb[0].mxu0
      %v3298 = vadd.f32 %v3095, %v3297
      %v3299 = vpop.f32.mrb[0].mxu0
      %v3300 = vadd.f32 %v3097, %v3299
      %3301 = vdwg.mxu0
      %v3302 = vld [vmem:[#allocation4] sm:$0xfc]
      %v3303 = vld [vmem:[#allocation4 + $0x8] sm:$0xfc]
      %v3304 = vld [vmem:[#allocation4 + $0x20] sm:$0x3]
      %v3305 = vld [vmem:[#allocation4 + $0x28] sm:$0x3]
      %v3306 = vpack.c.bf16 %v2793, %v3302
      %v3307 = vpack.c.bf16 %v2794, %v3303
      %v3308 = vpack.c.bf16 %v3304, %v3304
      %v3309 = vpack.c.bf16 %v3305, %v3305
      %s3310 = scalar_lea.vmem %s11, 512
      %v3311 = vld [vmem:[%s3310] sm:$0xff]
      %v3312 = vld [vmem:[%s3310 + $0x8] sm:$0xff]
      %v3313 = vld [vmem:[%s3310 + $0x10] sm:$0xff]
      %v3314 = vld [vmem:[%s3310 + $0x18] sm:$0xff]
      %v3315 = vld [vmem:[%s3310 + $0x20] sm:$0xff]
      %v3316 = vld [vmem:[%s3310 + $0x28] sm:$0xff]
      %v3317 = vld [vmem:[%s3310 + $0x30] sm:$0xff]
      %v3318 = vld [vmem:[%s3310 + $0x38] sm:$0xff]
      %v3319 = vld [vmem:[%s3310 + $0x40] sm:$0xff]
      %v3320 = vld [vmem:[%s3310 + $0x48] sm:$0xff]
      %v3321 = vld [vmem:[%s3310 + $0x50] sm:$0xff]
      %v3322 = vld [vmem:[%s3310 + $0x58] sm:$0xff]
      %v3323 = vld [vmem:[%s3310 + $0x60] sm:$0xff]
      %v3324 = vld [vmem:[%s3310 + $0x68] sm:$0xff]
      %v3325 = vld [vmem:[%s3310 + $0x70] sm:$0xff]
      %v3326 = vld [vmem:[%s3310 + $0x78] sm:$0xff]
      %v3327 = vld [vmem:[%s3310 + $0x80] sm:$0xff]
      %v3328 = vld [vmem:[%s3310 + $0x88] sm:$0xff]
      %v3329 = vld [vmem:[%s3310 + $0x90] sm:$0xff]
      %v3330 = vld [vmem:[%s3310 + $0x98] sm:$0xff]
      %v3331 = vld [vmem:[%s3310 + $0xa0] sm:$0xff]
      %v3332 = vld [vmem:[%s3310 + $0xa8] sm:$0xff]
      %v3333 = vld [vmem:[%s3310 + $0xb0] sm:$0xff]
      %v3334 = vld [vmem:[%s3310 + $0xb8] sm:$0xff]
      %v3335 = vld [vmem:[%s3310 + $0xc0] sm:$0xff]
      %v3336 = vld [vmem:[%s3310 + $0xc8] sm:$0xff]
      %v3337 = vld [vmem:[%s3310 + $0xd0] sm:$0xff]
      %v3338 = vld [vmem:[%s3310 + $0xd8] sm:$0xff]
      %v3339 = vld [vmem:[%s3310 + $0xe0] sm:$0xff]
      %v3340 = vld [vmem:[%s3310 + $0xe8] sm:$0xff]
      %v3341 = vld [vmem:[%s3310 + $0xf0] sm:$0xff]
      %v3342 = vld [vmem:[%s3310 + $0xf8] sm:$0xff]
      %v3347 = vrot.slane %v3306, 1
      %v3348 = vrot.slane %v3308, 1
      %v3349 = vsel %vm1593, %v3347, %v3348
      %v3350 = vrot.slane %v3307, 1
      %v3351 = vrot.slane %v3309, 1
      %v3352 = vsel %vm1593, %v3350, %v3351
      %v3387 = vunpack.c.l.b16 %v3311
      %v3388 = vunpack.c.h.b16 %v3311
      %v3389 = vunpack.c.l.b16 %v3312
      %v3390 = vunpack.c.h.b16 %v3312
      %v3391 = vunpack.c.l.b16 %v3313
      %v3392 = vunpack.c.h.b16 %v3313
      %v3393 = vunpack.c.l.b16 %v3314
      %v3394 = vunpack.c.h.b16 %v3314
      %v3395 = vunpack.c.l.b16 %v3315
      %v3396 = vunpack.c.h.b16 %v3315
      %v3397 = vunpack.c.l.b16 %v3316
      %v3398 = vunpack.c.h.b16 %v3316
      %v3399 = vunpack.c.l.b16 %v3317
      %v3400 = vunpack.c.h.b16 %v3317
      %v3401 = vunpack.c.l.b16 %v3318
      %v3402 = vunpack.c.h.b16 %v3318
      %v3403 = vunpack.c.l.b16 %v3319
      %v3404 = vunpack.c.h.b16 %v3319
      %v3405 = vunpack.c.l.b16 %v3320
      %v3406 = vunpack.c.h.b16 %v3320
      %v3407 = vunpack.c.l.b16 %v3321
      %v3408 = vunpack.c.h.b16 %v3321
      %v3409 = vunpack.c.l.b16 %v3322
      %v3410 = vunpack.c.h.b16 %v3322
      %v3411 = vunpack.c.l.b16 %v3323
      %v3412 = vunpack.c.h.b16 %v3323
      %v3413 = vunpack.c.l.b16 %v3324
      %v3414 = vunpack.c.h.b16 %v3324
      %v3415 = vunpack.c.l.b16 %v3325
      %v3416 = vunpack.c.h.b16 %v3325
      %v3417 = vunpack.c.l.b16 %v3326
      %v3418 = vunpack.c.h.b16 %v3326
      %v3419 = vunpack.c.l.b16 %v3327
      %v3420 = vunpack.c.h.b16 %v3327
      %v3421 = vunpack.c.l.b16 %v3328
      %v3422 = vunpack.c.h.b16 %v3328
      %v3423 = vunpack.c.l.b16 %v3329
      %v3424 = vunpack.c.h.b16 %v3329
      %v3425 = vunpack.c.l.b16 %v3330
      %v3426 = vunpack.c.h.b16 %v3330
      %v3427 = vunpack.c.l.b16 %v3331
      %v3428 = vunpack.c.h.b16 %v3331
      %v3429 = vunpack.c.l.b16 %v3332
      %v3430 = vunpack.c.h.b16 %v3332
      %v3431 = vunpack.c.l.b16 %v3333
      %v3432 = vunpack.c.h.b16 %v3333
      %v3433 = vunpack.c.l.b16 %v3334
      %v3434 = vunpack.c.h.b16 %v3334
      %v3435 = vunpack.c.l.b16 %v3335
      %v3436 = vunpack.c.h.b16 %v3335
      %v3437 = vunpack.c.l.b16 %v3336
      %v3438 = vunpack.c.h.b16 %v3336
      %v3439 = vunpack.c.l.b16 %v3337
      %v3440 = vunpack.c.h.b16 %v3337
      %v3441 = vunpack.c.l.b16 %v3338
      %v3442 = vunpack.c.h.b16 %v3338
      %v3443 = vunpack.c.l.b16 %v3339
      %v3444 = vunpack.c.h.b16 %v3339
      %v3445 = vunpack.c.l.b16 %v3340
      %v3446 = vunpack.c.h.b16 %v3340
      %v3447 = vunpack.c.l.b16 %v3341
      %v3448 = vunpack.c.h.b16 %v3341
      %v3449 = vunpack.c.l.b16 %v3342
      %v3450 = vunpack.c.h.b16 %v3342
      %v3451 = vpack.c.b16 %v3389, %v3387
      %v3452 = vpack.c.b16 %v3390, %v3388
      %v3453 = vpack.c.b16 %v3393, %v3391
      %v3454 = vpack.c.b16 %v3394, %v3392
      %v3455 = vpack.c.b16 %v3397, %v3395
      %v3456 = vpack.c.b16 %v3398, %v3396
      %v3457 = vpack.c.b16 %v3401, %v3399
      %v3458 = vpack.c.b16 %v3402, %v3400
      %v3459 = vpack.c.b16 %v3405, %v3403
      %v3460 = vpack.c.b16 %v3406, %v3404
      %v3461 = vpack.c.b16 %v3409, %v3407
      %v3462 = vpack.c.b16 %v3410, %v3408
      %v3463 = vpack.c.b16 %v3413, %v3411
      %v3464 = vpack.c.b16 %v3414, %v3412
      %v3465 = vpack.c.b16 %v3417, %v3415
      %v3466 = vpack.c.b16 %v3418, %v3416
      %v3467 = vpack.c.b16 %v3421, %v3419
      %v3468 = vpack.c.b16 %v3422, %v3420
      %v3469 = vpack.c.b16 %v3425, %v3423
      %v3470 = vpack.c.b16 %v3426, %v3424
      %v3471 = vpack.c.b16 %v3429, %v3427
      %v3472 = vpack.c.b16 %v3430, %v3428
      %v3473 = vpack.c.b16 %v3433, %v3431
      %v3474 = vpack.c.b16 %v3434, %v3432
      %v3475 = vpack.c.b16 %v3437, %v3435
      %v3476 = vpack.c.b16 %v3438, %v3436
      %v3477 = vpack.c.b16 %v3441, %v3439
      %v3478 = vpack.c.b16 %v3442, %v3440
      %v3479 = vpack.c.b16 %v3445, %v3443
      %v3480 = vpack.c.b16 %v3446, %v3444
      %v3481 = vpack.c.b16 %v3449, %v3447
      %v3482 = vpack.c.b16 %v3450, %v3448
      %3515 = vmatprep.subr.bf16.mxu0 %v3452
      %3516 = vmatpush1.bf16.msra.mxu0 %v3451
      %3517 = vmatprep.subr.bf16.mxu0 %v3454
      %3518 = vmatpush1.bf16.msra.mxu0 %v3453
      %3519 = vmatprep.subr.bf16.mxu0 %v3456
      %3520 = vmatpush1.bf16.msra.mxu0 %v3455
      %3521 = vmatprep.subr.bf16.mxu0 %v3458
      %3522 = vmatpush1.bf16.msra.mxu0 %v3457
      %3523 = vmatprep.subr.bf16.mxu0 %v3460
      %3524 = vmatpush1.bf16.msra.mxu0 %v3459
      %3525 = vmatprep.subr.bf16.mxu0 %v3462
      %3526 = vmatpush1.bf16.msra.mxu0 %v3461
      %3527 = vmatprep.subr.bf16.mxu0 %v3464
      %3528 = vmatpush1.bf16.msra.mxu0 %v3463
      %3529 = vmatprep.subr.bf16.mxu0 %v3466
      %3530 = vmatpush1.bf16.msra.mxu0 %v3465
      %3531 = vmatprep.subr.bf16.mxu0 %v3468
      %3532 = vmatpush1.bf16.msra.mxu0 %v3467
      %3533 = vmatprep.subr.bf16.mxu0 %v3470
      %3534 = vmatpush1.bf16.msra.mxu0 %v3469
      %3535 = vmatprep.subr.bf16.mxu0 %v3472
      %3536 = vmatpush1.bf16.msra.mxu0 %v3471
      %3537 = vmatprep.subr.bf16.mxu0 %v3474
      %3538 = vmatpush1.bf16.msra.mxu0 %v3473
      %3539 = vmatprep.subr.bf16.mxu0 %v3476
      %3540 = vmatpush1.bf16.msra.mxu0 %v3475
      %3541 = vmatprep.subr.bf16.mxu0 %v3478
      %3542 = vmatpush1.bf16.msra.mxu0 %v3477
      %3543 = vmatprep.subr.bf16.mxu0 %v3480
      %3544 = vmatpush1.bf16.msra.mxu0 %v3479
      %3545 = vmatprep.subr.bf16.mxu0 %v3482
      %3546 = vmatpush1.bf16.msra.mxu0 %v3481
      %3547 = vmatprep.mubr.bf16.mxu0 %v3352
      %3548 = vmatmul.mubr.bf16.gmra.mrb[0].mxu0 %v3349
      %v3549 = vpop.f32.mrb[0].mxu0
      %v3550 = vadd.f32 0.0, %v3549
      %v3551 = vpop.f32.mrb[0].mxu0
      %v3552 = vadd.f32 0.0, %v3551
      %v3553 = vpop.f32.mrb[0].mxu0
      %v3554 = vadd.f32 0.0, %v3553
      %v3555 = vpop.f32.mrb[0].mxu0
      %v3556 = vadd.f32 0.0, %v3555
      %3557 = vdwg.mxu0
      %v3558 = vadd.f32 %v3294, %v3550
      %v3559 = vadd.f32 %v3296, %v3552
      %v3560 = vadd.f32 %v3298, %v3554
      %v3561 = vadd.f32 %v3300, %v3556
      %v3562 = vld [vmem:[%s12] sm:$0x3]
      %v3564 = vlaneseq
      %v3565 = vshrl.u32 %v3564, 7
      %v3566 = vsub.s32 0, %v3565
      %v3567 = vrot.slane %v3562, %v3566
      %v3568 = vlaneseq
      %v3569 = vshrl.u32 %v3568, 7
      %v3570 = vsub.s32 1, %v3569
      %v3571 = vrot.slane %v3562, %v3570
      %v3574 = vadd.f32 %v3558, %v3567
      %v3575 = vadd.f32 %v3559, %v3571
      %v3576 = vadd.f32 %v3560, %v3567
      %v3577 = vadd.f32 %v3561, %v3571
      %v3578 = vmin.f32 %v3574, 30.0
      %v3579 = vmin.f32 %v3575, 30.0
      %v3580 = vmin.f32 %v3576, 30.0
      %v3581 = vmin.f32 %v3577, 30.0
      %v3582 = vmul.f32 %v3578, 1.442695
      %v3583 = vpow.pop %v3582
      %v3584 = vmul.f32 %v3579, 1.442695
      %v3585 = vpow.pop %v3584
      %v3586 = vmul.f32 %v3580, 1.442695
      %v3587 = vpow.pop %v3586
      %v3588 = vmul.f32 %v3581, 1.442695
      %v3589 = vpow.pop %v3588
      %v3590 = vadd.f32 %v3583, 1.0
      %v3591 = vadd.f32 %v3585, 1.0
      %v3592 = vadd.f32 %v3587, 1.0
      %v3593 = vadd.f32 %v3589, 1.0
      %v3594 = vmul.f32 %v3590, %v3590
      %v3595 = vmul.f32 %v3591, %v3591
      %v3596 = vmul.f32 %v3592, %v3592
      %v3597 = vmul.f32 %v3593, %v3593
      %v3598 = vadd.f32 %v3594, 1.0
      %v3599 = vadd.f32 %v3595, 1.0
      %v3600 = vadd.f32 %v3596, 1.0
      %v3601 = vadd.f32 %v3597, 1.0
      %v3602 = vrcp.pop %v3598
      %v3603 = vrcp.pop %v3599
      %v3604 = vrcp.pop %v3600
      %v3605 = vrcp.pop %v3601
      %v3606 = vmul.f32 %v3602, 2.0
      %v3607 = vmul.f32 %v3603, 2.0
      %v3608 = vmul.f32 %v3604, 2.0
      %v3609 = vmul.f32 %v3605, 2.0
      %v3610 = vsub.f32 1.0, %v3606
      %v3611 = vsub.f32 1.0, %v3607
      %v3612 = vsub.f32 1.0, %v3608
      %v3613 = vsub.f32 1.0, %v3609
      %v3614 = vmul.f32 %v3574, %v3610
      %v3615 = vmul.f32 %v3575, %v3611
      %v3616 = vmul.f32 %v3576, %v3612
      %v3617 = vmul.f32 %v3577, %v3613
      %v3618 = vpack.c.bf16 %v3616, %v3614
      %v3619 = vpack.c.bf16 %v3617, %v3615
      %v3620 = vld [vmem:[%s13] sm:$0xf]
      %v3621 = vld [vmem:[%s13 + $0x4] sm:$0xf]
      %v3622 = vld [vmem:[%s13 + $0x8] sm:$0xf]
      %v3623 = vld [vmem:[%s13 + $0xc] sm:$0xf]
      %v3624 = vld [vmem:[%s13 + $0x10] sm:$0xf]
      %v3625 = vld [vmem:[%s13 + $0x14] sm:$0xf]
      %v3626 = vld [vmem:[%s13 + $0x18] sm:$0xf]
      %v3627 = vld [vmem:[%s13 + $0x1c] sm:$0xf]
      %v3628 = vld [vmem:[%s13 + $0x20] sm:$0xf]
      %v3629 = vld [vmem:[%s13 + $0x24] sm:$0xf]
      %v3630 = vld [vmem:[%s13 + $0x28] sm:$0xf]
      %v3631 = vld [vmem:[%s13 + $0x2c] sm:$0xf]
      %v3632 = vld [vmem:[%s13 + $0x30] sm:$0xf]
      %v3633 = vld [vmem:[%s13 + $0x34] sm:$0xf]
      %v3634 = vld [vmem:[%s13 + $0x38] sm:$0xf]
      %v3635 = vld [vmem:[%s13 + $0x3c] sm:$0xf]
      %v3636 = vld [vmem:[%s13 + $0x40] sm:$0xf]
      %v3637 = vld [vmem:[%s13 + $0x44] sm:$0xf]
      %v3638 = vld [vmem:[%s13 + $0x48] sm:$0xf]
      %v3639 = vld [vmem:[%s13 + $0x4c] sm:$0xf]
      %v3640 = vld [vmem:[%s13 + $0x50] sm:$0xf]
      %v3641 = vld [vmem:[%s13 + $0x54] sm:$0xf]
      %v3642 = vld [vmem:[%s13 + $0x58] sm:$0xf]
      %v3643 = vld [vmem:[%s13 + $0x5c] sm:$0xf]
      %v3644 = vld [vmem:[%s13 + $0x60] sm:$0xf]
      %v3645 = vld [vmem:[%s13 + $0x64] sm:$0xf]
      %v3646 = vld [vmem:[%s13 + $0x68] sm:$0xf]
      %v3647 = vld [vmem:[%s13 + $0x6c] sm:$0xf]
      %v3648 = vld [vmem:[%s13 + $0x70] sm:$0xf]
      %v3649 = vld [vmem:[%s13 + $0x74] sm:$0xf]
      %v3650 = vld [vmem:[%s13 + $0x78] sm:$0xf]
      %v3651 = vld [vmem:[%s13 + $0x7c] sm:$0xf]
      %v3652 = vld [vmem:[%s14] sm:$0x1]
      %v3654 = vlaneseq
      %v3655 = vshrl.u32 %v3654, 7
      %v3656 = vsub.s32 0, %v3655
      %v3657 = vrot.slane %v3652, %v3656
      %v3691 = vunpack.c.l.b16 %v3620
      %v3692 = vunpack.c.l.b16 %v3621
      %v3693 = vunpack.c.l.b16 %v3622
      %v3694 = vunpack.c.l.b16 %v3623
      %v3695 = vunpack.c.l.b16 %v3624
      %v3696 = vunpack.c.l.b16 %v3625
      %v3697 = vunpack.c.l.b16 %v3626
      %v3698 = vunpack.c.l.b16 %v3627
      %v3699 = vunpack.c.l.b16 %v3628
      %v3700 = vunpack.c.l.b16 %v3629
      %v3701 = vunpack.c.l.b16 %v3630
      %v3702 = vunpack.c.l.b16 %v3631
      %v3703 = vunpack.c.l.b16 %v3632
      %v3704 = vunpack.c.l.b16 %v3633
      %v3705 = vunpack.c.l.b16 %v3634
      %v3706 = vunpack.c.l.b16 %v3635
      %v3707 = vunpack.c.l.b16 %v3636
      %v3708 = vunpack.c.l.b16 %v3637
      %v3709 = vunpack.c.l.b16 %v3638
      %v3710 = vunpack.c.l.b16 %v3639
      %v3711 = vunpack.c.l.b16 %v3640
      %v3712 = vunpack.c.l.b16 %v3641
      %v3713 = vunpack.c.l.b16 %v3642
      %v3714 = vunpack.c.l.b16 %v3643
      %v3715 = vunpack.c.l.b16 %v3644
      %v3716 = vunpack.c.l.b16 %v3645
      %v3717 = vunpack.c.l.b16 %v3646
      %v3718 = vunpack.c.l.b16 %v3647
      %v3719 = vunpack.c.l.b16 %v3648
      %v3720 = vunpack.c.l.b16 %v3649
      %v3721 = vunpack.c.l.b16 %v3650
      %v3722 = vunpack.c.l.b16 %v3651
      %v3723 = vpack.c.b16 %v3692, %v3691
      %v3724 = vpack.c.b16 %v3694, %v3693
      %v3725 = vpack.c.b16 %v3696, %v3695
      %v3726 = vpack.c.b16 %v3698, %v3697
      %v3727 = vpack.c.b16 %v3700, %v3699
      %v3728 = vpack.c.b16 %v3702, %v3701
      %v3729 = vpack.c.b16 %v3704, %v3703
      %v3730 = vpack.c.b16 %v3706, %v3705
      %v3731 = vpack.c.b16 %v3708, %v3707
      %v3732 = vpack.c.b16 %v3710, %v3709
      %v3733 = vpack.c.b16 %v3712, %v3711
      %v3734 = vpack.c.b16 %v3714, %v3713
      %v3735 = vpack.c.b16 %v3716, %v3715
      %v3736 = vpack.c.b16 %v3718, %v3717
      %v3737 = vpack.c.b16 %v3720, %v3719
      %v3738 = vpack.c.b16 %v3722, %v3721
      %3755 = vmatprep.subr.bf16.mxu0 0
      %3756 = vmatpush1.bf16.msra.mxu0 %v3723
      %3757 = vmatprep.subr.bf16.mxu0 0
      %3758 = vmatpush1.bf16.msra.mxu0 %v3724
      %3759 = vmatprep.subr.bf16.mxu0 0
      %3760 = vmatpush1.bf16.msra.mxu0 %v3725
      %3761 = vmatprep.subr.bf16.mxu0 0
      %3762 = vmatpush1.bf16.msra.mxu0 %v3726
      %3763 = vmatprep.subr.bf16.mxu0 0
      %3764 = vmatpush1.bf16.msra.mxu0 %v3727
      %3765 = vmatprep.subr.bf16.mxu0 0
      %3766 = vmatpush1.bf16.msra.mxu0 %v3728
      %3767 = vmatprep.subr.bf16.mxu0 0
      %3768 = vmatpush1.bf16.msra.mxu0 %v3729
      %3769 = vmatprep.subr.bf16.mxu0 0
      %3770 = vmatpush1.bf16.msra.mxu0 %v3730
      %3771 = vmatprep.subr.bf16.mxu0 0
      %3772 = vmatpush1.bf16.msra.mxu0 %v3731
      %3773 = vmatprep.subr.bf16.mxu0 0
      %3774 = vmatpush1.bf16.msra.mxu0 %v3732
      %3775 = vmatprep.subr.bf16.mxu0 0
      %3776 = vmatpush1.bf16.msra.mxu0 %v3733
      %3777 = vmatprep.subr.bf16.mxu0 0
      %3778 = vmatpush1.bf16.msra.mxu0 %v3734
      %3779 = vmatprep.subr.bf16.mxu0 0
      %3780 = vmatpush1.bf16.msra.mxu0 %v3735
      %3781 = vmatprep.subr.bf16.mxu0 0
      %3782 = vmatpush1.bf16.msra.mxu0 %v3736
      %3783 = vmatprep.subr.bf16.mxu0 0
      %3784 = vmatpush1.bf16.msra.mxu0 %v3737
      %3785 = vmatprep.subr.bf16.mxu0 0
      %3786 = vmatpush1.bf16.msra.mxu0 %v3738
      %3787 = vmatprep.mubr.bf16.mxu0 %v3619
      %3788 = vmatmul.mubr.bf16.gmra.mrb[0].mxu0 %v3618
      %v3789 = vpop.f32.mrb[0].mxu0
      %v3790 = vadd.f32 %v3657, %v3789
      %v3791 = vpop.f32.mrb[0].mxu0
      %v3792 = vpop.f32.mrb[0].mxu0
      %v3793 = vadd.f32 %v3657, %v3792
      %v3794 = vpop.f32.mrb[0].mxu0
      %3795 = vdwg.mxu0
      %v3796 = vld [vmem:[%s2] sm:$0xff]
      %v3797 = vld [vmem:[%s2 + $0x8] sm:$0xff]
      %v3798 = vld [vmem:[%s509] sm:$0xff]
      %v3799 = vld [vmem:[%s509 + $0x8] sm:$0xff]
      %v3800 = vmul.f32 %v3798, %v3796
      %v3801 = vmul.f32 %v3799, %v3797
      %v3802 = vsub.f32 1.0, %v3796
      %v3803 = vsub.f32 1.0, %v3797
      %v3804 = vmul.f32 %v3790, %v3802
      %v3805 = vmul.f32 %v3793, %v3803
      %v3806 = vadd.f32 %v3800, %v3804
      %v3807 = vadd.f32 %v3801, %v3805
      %vm3808 = vcmask 523264
      %3809 = vst.msk [vmem:[%s514] sm:$0xff] %vm3808, %v3806
      %3810 = vst.msk [vmem:[%s514 + $0x8] sm:$0xff] %vm3808, %v3807
      %p3811 = scmp.lt.s32.totalorder %s26, 1
      %s3812 = scalar_select %p3811, %s26, 1
      %s3813 = smul.addr %s3812, 2
      %s3814 = smul.addr %s3813, 8
      %s3815 = scalar_lea.vmem %s15, %s3814
      // Predicated region
      $region81: #{outer_seg_predictor_forward.1} parent=79 // pred_check
        %p3816 = pneg %p369
      $region82: #{outer_seg_predictor_forward.1} parent=79 // pred_check_branch
        %3818 = sbr.rel (%p3816) target = $region84
      $region83: #{outer_seg_predictor_forward.1} parent=79 // pred_region
        _
      $region84: #{outer_seg_predictor_forward.1} parent=79 // pred_fallthru
        _
    $region80: #{outer_seg_predictor_forward.1} parent=5 // pred_fallthru
      _
    %p3819 = scmp.le.s32.totalorder 2, %s21
    // Predicated region
    $region85: #{outer_seg_predictor_forward.1} parent=5 // pred_check
      %p3820 = pneg %p3819
    $region86: #{outer_seg_predictor_forward.1} parent=5 // pred_check_branch
      %3822 = sbr.rel (%p3820) target = $region88
    $region87: #{outer_seg_predictor_forward.1} parent=5 // pred_region
      %s3823 = ssub.s32 %s21, 2
      // Predicated region
      $region89: #{outer_seg_predictor_forward.1} parent=87 // pred_check
        %p3824 = pneg %p375
      $region90: #{outer_seg_predictor_forward.1} parent=87 // pred_check_branch
        %3826 = sbr.rel (%p3824) target = $region92
      $region91: #{outer_seg_predictor_forward.1} parent=87 // pred_region
        %p3827 = scmp.lt.s32.totalorder %s27, 1
        %s3828 = scalar_select %p3827, %s27, 1
        %s3829 = smul.addr %s3828, 2
        %s3830 = smul.addr %s3829, 8
        %s3831 = scalar_lea.vmem %s15, %s3830
      $region92: #{outer_seg_predictor_forward.1} parent=87 // pred_fallthru
        _
    $region88: #{outer_seg_predictor_forward.1} parent=5 // pred_fallthru
      _
  $region6: #{outer_seg_predictor_forward.1} parent=0 // loop_footer
    %s25 = sadd.s32 1, %s21
  $region7: #{outer_seg_predictor_forward.1} parent=0 // loop_footer_branch
    %20 = sbr.rel target = $region3
  $region8: #{outer_seg_predictor_forward.1} parent=0 // loop_exit
    _

</llo_original>
